<compile_context>
chip_gen: v7x
topology: tpu7x:2x2x1
jax: 0.10.0
libtpu: 0.0.40
codegen_flags: <defaults>
</compile_context>

<pallas_src>
import jax
import jax.numpy as jnp
from jax.experimental import pallas as pl
from jax.experimental.pallas import tpu as pltpu


NEG_INF = -1e30


# ----------------------------- device helpers ------------------------------
def _vmem_capacity_bytes():
    try:
        return int(pltpu.get_tpu_info().vmem_capacity_bytes)
    except Exception:
        return 64 << 20          # conservative (v7x per-TensorCore VMEM)


def _round_up(x, m):
    return (x + m - 1) // m * m


# ------------------------------ fused kernel -------------------------------
def _make_fused_kernel(n_valid_rows):
    """Both GCN layers in one grid step; H1 stays in a VMEM scratch."""

    def kernel(a_ref, x_ref, w1_ref, b1_ref, w2_ref, b2_ref, cmask_ref,
               out_ref, h1_ref):
        # ---- layer 1: H1 = relu((A @ X) @ W1 + b1), padded rows zeroed -----
        ax = jnp.dot(a_ref[...], x_ref[...],
                     preferred_element_type=jnp.float32)
        h1 = jnp.dot(ax.astype(jnp.bfloat16), w1_ref[...],
                     preferred_element_type=jnp.float32) + b1_ref[...]
        h1 = jnp.maximum(h1, 0.0)
        row = jax.lax.broadcasted_iota(jnp.int32, h1.shape, 0)
        h1 = jnp.where(row < n_valid_rows, h1, 0.0)
        h1_ref[...] = h1.astype(h1_ref.dtype)

        # ---- layer 2: out = log_softmax((A @ H1) @ W2 + b2) -----------------
        ah = jnp.dot(a_ref[...], h1_ref[...],
                     preferred_element_type=jnp.float32)
        z = jnp.dot(ah.astype(jnp.bfloat16), w2_ref[...],
                    preferred_element_type=jnp.float32)
        z = z + b2_ref[...] + cmask_ref[...]      # -1e30 on padded class lanes
        m = jnp.max(z, axis=1, keepdims=True)
        e = jnp.exp(z - m)                        # padded lanes underflow to 0
        lse = m + jnp.log(jnp.sum(e, axis=1, keepdims=True))
        out_ref[...] = (z - lse).astype(out_ref.dtype)

    return kernel


def _gcn_fused(a_p, x_p, w1_p, b1_p, w2_p, b2_p, cmask, *, n_valid_rows,
               vmem_limit):
    n_pad, f_pad = x_p.shape
    h_pad = w1_p.shape[1]
    c_pad = w2_p.shape[1]

    flops = (2 * n_pad * n_pad * f_pad + 2 * n_pad * f_pad * h_pad
             + 2 * n_pad * n_pad * h_pad + 2 * n_pad * h_pad * c_pad)
    bytes_accessed = (a_p.size * 2 + x_p.size * 2 + w1_p.size * 2
                      + w2_p.size * 2
                      + (b1_p.size + b2_p.size + cmask.size) * 4
                      + n_pad * c_pad * 4)

    def full(shape):
        return pl.BlockSpec(shape, lambda i: (0,) * len(shape))

    return pl.pallas_call(
        _make_fused_kernel(n_valid_rows),
        out_shape=jax.ShapeDtypeStruct((n_pad, c_pad), jnp.float32),
        grid_spec=pltpu.PrefetchScalarGridSpec(
            num_scalar_prefetch=0,
            grid=(1,),
            in_specs=[
                full((n_pad, n_pad)),    # A_hat (bf16, resident)
                full((n_pad, f_pad)),    # X     (bf16, resident)
                full((f_pad, h_pad)),    # W1
                full((1, h_pad)),        # b1
                full((h_pad, c_pad)),    # W2
                full((1, c_pad)),        # b2
                full((1, c_pad)),        # class-validity additive mask
            ],
            out_specs=full((n_pad, c_pad)),
            scratch_shapes=[pltpu.VMEM((n_pad, h_pad), jnp.bfloat16)],  # H1
        ),
        compiler_params=pltpu.CompilerParams(
            # TODO(synk): shard layer-2 row blocks across v7x's 2 TensorCores
            # (needs H1 in shared memory); a single step is fine at these sizes.
            dimension_semantics=("arbitrary",),
            vmem_limit_bytes=vmem_limit,
        ),
        cost_estimate=pl.CostEstimate(
            flops=int(flops),
            transcendentals=int(n_pad * c_pad),
            bytes_accessed=int(bytes_accessed),
        ),
    )(a_p, x_p, w1_p, b1_p, w2_p, b2_p, cmask)


# ---------------------------- tiled fallback path ---------------------------
def _make_layer_kernel(*, tm, n_valid_rows, last_layer):
    """One GCN layer over a (tm, n_pad) A row block with resident X / W / b."""

    def kernel(*refs):
        if last_layer:
            a_ref, x_ref, w_ref, b_ref, cmask_ref, out_ref = refs
        else:
            a_ref, x_ref, w_ref, b_ref, out_ref = refs

        ax = jnp.dot(a_ref[...], x_ref[...],
                     preferred_element_type=jnp.float32)
        z = jnp.dot(ax.astype(jnp.bfloat16), w_ref[...],
                    preferred_element_type=jnp.float32) + b_ref[...]

        if last_layer:
            z = z + cmask_ref[...]
            m = jnp.max(z, axis=1, keepdims=True)
            e = jnp.exp(z - m)
            lse = m + jnp.log(jnp.sum(e, axis=1, keepdims=True))
            z = z - lse
        else:
            z = jnp.maximum(z, 0.0)
            row = (pl.program_id(0) * tm
                   + jax.lax.broadcasted_iota(jnp.int32, z.shape, 0))
            z = jnp.where(row < n_valid_rows, z, 0.0)   # zero padded H1 rows

        out_ref[...] = z.astype(out_ref.dtype)

    return kernel


def _gcn_layer_tiled(a_p, x_p, w_p, b_p, cmask, *, tm, n_valid_rows,
                     last_layer, out_dtype, vmem_limit):
    n_pad, f_pad = x_p.shape
    out_dim = w_p.shape[1]
    grid = (n_pad // tm,)

    out_itemsize = jnp.dtype(out_dtype).itemsize
    flops = 2 * n_pad * n_pad * f_pad + 2 * n_pad * f_pad * out_dim
    bytes_accessed = (a_p.size * 2 + x_p.size * 2 + w_p.size * 2
                      + b_p.size * 4 + n_pad * out_dim * out_itemsize)

    in_specs = [
        pl.BlockSpec((tm, n_pad), lambda i: (i, 0)),        # A row block
        pl.BlockSpec((n_pad, f_pad), lambda i: (0, 0)),     # X resident
        pl.BlockSpec((f_pad, out_dim), lambda i: (0, 0)),   # W resident
        pl.BlockSpec((1, out_dim), lambda i: (0, 0)),       # b resident
    ]
    args = [a_p, x_p, w_p, b_p]
    if last_layer:
        in_specs.append(pl.BlockSpec((1, out_dim), lambda i: (0, 0)))
        args.append(cmask)

    return pl.pallas_call(
        _make_layer_kernel(tm=tm, n_valid_rows=n_valid_rows,
                           last_layer=last_layer),
        out_shape=jax.ShapeDtypeStruct((n_pad, out_dim), out_dtype),
        grid_spec=pltpu.PrefetchScalarGridSpec(
            num_scalar_prefetch=0,
            grid=grid,
            in_specs=in_specs,
            out_specs=pl.BlockSpec((tm, out_dim), lambda i: (i, 0)),
        ),
        compiler_params=pltpu.CompilerParams(
            dimension_semantics=("parallel",),
            vmem_limit_bytes=vmem_limit,
        ),
        cost_estimate=pl.CostEstimate(
            flops=int(flops),
            transcendentals=int(n_pad * out_dim) if last_layer else 0,
            bytes_accessed=int(bytes_accessed),
        ),
    )(*args)


# ------------------------------ host wrapper -------------------------------
def gcn_forward(a_hat, x, w1, b1, w2, b2, *, tm=128, force_tiled=False):
    """2-layer GCN forward: log_softmax(A (relu(A X W1 + b1)) W2 + b2)."""
    n, f_in = x.shape
    h = w1.shape[1]
    c = w2.shape[1]

    n_pad = _round_up(n, 2 * tm)      # even #row-blocks for v7x megacore
    f_pad = _round_up(f_in, 128)
    h_pad = _round_up(h, 128)
    c_pad = _round_up(c, 128)

    a_p = jnp.zeros((n_pad, n_pad), jnp.bfloat16).at[:n, :n].set(
        a_hat.astype(jnp.bfloat16))
    x_p = jnp.zeros((n_pad, f_pad), jnp.bfloat16).at[:n, :f_in].set(
        x.astype(jnp.bfloat16))
    w1_p = jnp.zeros((f_pad, h_pad), jnp.bfloat16).at[:f_in, :h].set(
        w1.astype(jnp.bfloat16))
    b1_p = jnp.zeros((1, h_pad), jnp.float32).at[:, :h].set(
        b1.reshape(1, h).astype(jnp.float32))
    w2_p = jnp.zeros((h_pad, c_pad), jnp.bfloat16).at[:h, :c].set(
        w2.astype(jnp.bfloat16))
    b2_p = jnp.zeros((1, c_pad), jnp.float32).at[:, :c].set(
        b2.reshape(1, c).astype(jnp.float32))
    # Additive class-validity mask, built once on the host (hoisted out of the
    # kernel epilogue): 0 on real classes, -1e30 on padded lanes.
    cmask = jnp.where(jnp.arange(c_pad) < c, 0.0, NEG_INF).astype(
        jnp.float32).reshape(1, c_pad)

    cap = _vmem_capacity_bytes()

    # Fully-resident fused footprint: A + X + W + H1 scratch + out + f32 temps.
    fused_bytes = (
        n_pad * n_pad * 2 + n_pad * f_pad * 2
        + (f_pad * h_pad + h_pad * c_pad) * 2
        + n_pad * h_pad * 2 + n_pad * c_pad * 4
        + 3 * n_pad * max(f_pad, h_pad, c_pad) * 4)

    if (not force_tiled) and fused_bytes <= (3 * cap) // 4:
        vmem_limit = int(min(max(fused_bytes + (8 << 20), 32 << 20),
                             (7 * cap) // 8))
        z = _gcn_fused(a_p, x_p, w1_p, b1_p, w2_p, b2_p, cmask,
                       n_valid_rows=n, vmem_limit=vmem_limit)
    else:
        # Row-blocked fallback (A tile streamed, X / W / b resident per layer).
        tiled_bytes = (
            2 * tm * n_pad * 2                       # double-buffered A tiles
            + 2 * n_pad * max(f_pad, h_pad) * 2      # resident X / H1
            + (f_pad * h_pad + h_pad * c_pad) * 2    # resident W
            + 2 * tm * max(h_pad, c_pad) * 4         # output tiles
            + 3 * tm * max(f_pad, h_pad, c_pad) * 4)  # f32 temporaries
        vmem_limit = int(min(max(tiled_bytes + (8 << 20), 32 << 20),
                             (7 * cap) // 8))
        h1 = _gcn_layer_tiled(a_p, x_p, w1_p, b1_p, None, tm=tm,
                              n_valid_rows=n, last_layer=False,
                              out_dtype=jnp.bfloat16, vmem_limit=vmem_limit)
        z = _gcn_layer_tiled(a_p, h1, w2_p, b2_p, cmask, tm=tm,
                             n_valid_rows=n, last_layer=True,
                             out_dtype=jnp.float32, vmem_limit=vmem_limit)

    return z[:n, :c]


gcn_forward_jit = jax.jit(gcn_forward, static_argnames=("tm", "force_tiled"))


# ------------------------------ graph helpers ------------------------------
def build_norm_adj(edge_index, num_nodes):
    """Dense D^-1/2 (A + I) D^-1/2 matching torch_geometric's gcn_norm
    (self loops only added to nodes that do not already have one)."""
    src = edge_index[0]
    dst = edge_index[1]
    a = jnp.zeros((num_nodes, num_nodes), jnp.float32)
    # aggregation happens at the target node: out[dst] += msg(x[src])
    a = a.at[dst, src].add(1.0)
    diag = jnp.diagonal(a)
    a = a + jnp.diag(jnp.where(diag > 0.0, 0.0, 1.0))      # remaining self loops
    deg = jnp.sum(a, axis=1)
    d_inv_sqrt = jnp.where(deg > 0.0, 1.0 / jnp.sqrt(deg), 0.0)
    return d_inv_sqrt[:, None] * a * d_inv_sqrt[None, :]


class GCNParams:
    """Deterministic parameter init (glorot-ish weights, zero bias)."""

    def __init__(self, key, num_node_features, hidden_channels, num_classes):
        k1, k2 = jax.random.split(key)
        s1 = (2.0 / (num_node_features + hidden_channels)) ** 0.5
        s2 = (2.0 / (hidden_channels + num_classes)) ** 0.5
        self.w1 = s1 * jax.random.normal(
            k1, (num_node_features, hidden_channels), jnp.float32)
        self.b1 = jnp.zeros((1, hidden_channels), jnp.float32)
        self.w2 = s2 * jax.random.normal(
            k2, (hidden_channels, num_classes), jnp.float32)
        self.b2 = jnp.zeros((1, num_classes), jnp.float32)


# ------------------------------- references --------------------------------
def gcn_reference_f32(a_hat, x, p):
    """Pure-f32 reference of the original module semantics."""
    h = jax.nn.relu(a_hat @ (x @ p.w1) + p.b1)
    z = a_hat @ (h @ p.w2) + p.b2
    return jax.nn.log_softmax(z, axis=1)


def gcn_reference_matched(a_hat, x, p):
    """Reference mirroring the kernel's mixed-precision cast points."""
    a_bf = a_hat.astype(jnp.bfloat16)
    ax = jnp.dot(a_bf, x.astype(jnp.bfloat16),
                 preferred_element_type=jnp.float32)
    h = jnp.dot(ax.astype(jnp.bfloat16), p.w1.astype(jnp.bfloat16),
                preferred_element_type=jnp.float32) + p.b1
    h = jnp.maximum(h, 0.0).astype(jnp.bfloat16)
    ah = jnp.dot(a_bf, h, preferred_element_type=jnp.float32)
    z = jnp.dot(ah.astype(jnp.bfloat16), p.w2.astype(jnp.bfloat16),
                preferred_element_type=jnp.float32) + p.b2
    return jax.nn.log_softmax(z, axis=1)


# ---------------------------------- main ------------------------------------
if __name__ == "__main__":
    # Synthetic graph: ring of N nodes with bidirectional edges.
    N = 300                # number of nodes (padded to 512 = 2*tm*2)
    F_IN = 8               # num_node_features
    H = 32                 # hidden_channels
    C = 4                  # num_classes
    TM = 128               # row-block tile for the tiled fallback path

    key = jax.random.PRNGKey(0)
    kx, kp = jax.random.split(key)

    x = jax.random.normal(kx, (N, F_IN), jnp.float32)

    nxt = (jnp.arange(N) + 1) % N
    src = jnp.concatenate([jnp.arange(N), nxt])
    dst = jnp.concatenate([nxt, jnp.arange(N)])
    edge_index = jnp.stack([src, dst]).astype(jnp.int32)    # [2, 2N]

    params = GCNParams(kp, F_IN, H, C)
    a_hat = build_norm_adj(edge_index, N)

    # Fused single-call, fully VMEM-resident fast path.
    out = gcn_forward_jit(a_hat, x, params.w1, params.b1, params.w2, params.b2,
                          tm=TM, force_tiled=False)
    out = jax.block_until_ready(out)
    assert out.shape == (N, C)

    # Mechanics check: matches a reference with identical bf16 cast points.
    ref_m = gcn_reference_matched(a_hat, x, params)
    err_m = float(jnp.max(jnp.abs(out - ref_m)))
    assert jnp.allclose(out, ref_m, atol=2e-2, rtol=2e-2), err_m

    # Semantics check: close to the pure-f32 original module math.
    ref_f = gcn_reference_f32(a_hat, x, params)
    err_f = float(jnp.max(jnp.abs(out - ref_f)))
    assert jnp.allclose(out, ref_f, atol=1e-1, rtol=1e-1), err_f

    # Also exercise the tiled fallback path (used when residency doesn't fit).
    out_t = gcn_forward_jit(a_hat, x, params.w1, params.b1, params.w2,
                            params.b2, tm=TM, force_tiled=True)
    out_t = jax.block_until_ready(out_t)
    err_t = float(jnp.max(jnp.abs(out_t - ref_m)))
    assert jnp.allclose(out_t, ref_m, atol=2e-2, rtol=2e-2), err_t

    print("KERNEL_OK")
</pallas_src>

<mosaic_0001>
module attributes {stable_mosaic.version = 11 : i64} {
  func.func @kernel(%arg0: i32, %arg1: memref<512x512xbf16, #tpu.memory_space<vmem>>, %arg2: memref<512x128xbf16, #tpu.memory_space<vmem>>, %arg3: memref<128x128xbf16, #tpu.memory_space<vmem>>, %arg4: memref<1x128xf32, #tpu.memory_space<vmem>>, %arg5: memref<128x128xbf16, #tpu.memory_space<vmem>>, %arg6: memref<1x128xf32, #tpu.memory_space<vmem>>, %arg7: memref<1x128xf32, #tpu.memory_space<vmem>>, %arg8: memref<512x128xf32, #tpu.memory_space<vmem>>, %arg9: memref<512x128xbf16, #tpu.memory_space<vmem>>) attributes {dimension_semantics = [#tpu.dimension_semantics<arbitrary>], iteration_bounds = array<i64: 1>, scalar_prefetch = 0 : i64, scratch_operands = 1 : i64, tpu.core_type = #tpu.core_type<tc>, window_params = [{pipeline_mode = #tpu.pipeline_mode<synchronous>, transform_indices = @transform_0, window_bounds = array<i64: 512, 512>}, {pipeline_mode = #tpu.pipeline_mode<synchronous>, transform_indices = @transform_1, window_bounds = array<i64: 512, 128>}, {pipeline_mode = #tpu.pipeline_mode<synchronous>, transform_indices = @transform_2, window_bounds = array<i64: 128, 128>}, {pipeline_mode = #tpu.pipeline_mode<synchronous>, transform_indices = @transform_3, window_bounds = array<i64: 1, 128>}, {pipeline_mode = #tpu.pipeline_mode<synchronous>, transform_indices = @transform_4, window_bounds = array<i64: 128, 128>}, {pipeline_mode = #tpu.pipeline_mode<synchronous>, transform_indices = @transform_5, window_bounds = array<i64: 1, 128>}, {pipeline_mode = #tpu.pipeline_mode<synchronous>, transform_indices = @transform_6, window_bounds = array<i64: 1, 128>}, {pipeline_mode = #tpu.pipeline_mode<synchronous>, transform_indices = @transform_7, window_bounds = array<i64: 512, 128>}]} {
    %c0 = arith.constant 0 : index
    %c0_0 = arith.constant 0 : index
    %0 = vector.load %arg1[%c0, %c0_0] : memref<512x512xbf16, #tpu.memory_space<vmem>>, vector<512x512xbf16>
    %c0_1 = arith.constant 0 : index
    %c0_2 = arith.constant 0 : index
    %1 = vector.load %arg2[%c0_1, %c0_2] : memref<512x128xbf16, #tpu.memory_space<vmem>>, vector<512x128xbf16>
    %cst = arith.constant dense<0.000000e+00> : vector<512x128xf32>
    %2 = tpu.matmul %0, %1, %cst {dimension_numbers = #tpu.dot_dimension_numbers<[1], [0], [0], [1], [0, 0, 1, 1], [], []>} : vector<512x512xbf16>, vector<512x128xbf16>, vector<512x128xf32> -> vector<512x128xf32>
    %3 = arith.truncf %2 : vector<512x128xf32> to vector<512x128xbf16>
    %c0_3 = arith.constant 0 : index
    %c0_4 = arith.constant 0 : index
    %4 = vector.load %arg3[%c0_3, %c0_4] : memref<128x128xbf16, #tpu.memory_space<vmem>>, vector<128x128xbf16>
    %cst_5 = arith.constant dense<0.000000e+00> : vector<512x128xf32>
    %5 = tpu.matmul %3, %4, %cst_5 {dimension_numbers = #tpu.dot_dimension_numbers<[1], [0], [0], [1], [0, 0, 1, 1], [], []>} : vector<512x128xbf16>, vector<128x128xbf16>, vector<512x128xf32> -> vector<512x128xf32>
    %c0_6 = arith.constant 0 : index
    %c0_7 = arith.constant 0 : index
    %6 = vector.load %arg4[%c0_6, %c0_7] : memref<1x128xf32, #tpu.memory_space<vmem>>, vector<1x128xf32>
    %7 = vector.broadcast %6 : vector<1x128xf32> to vector<512x128xf32>
    %8 = arith.addf %5, %7 : vector<512x128xf32>
    %cst_8 = arith.constant 0.000000e+00 : f32
    %9 = vector.broadcast %cst_8 : f32 to vector<512x128xf32>
    %10 = arith.maximumf %8, %9 : vector<512x128xf32>
    %11 = tpu.iota {dimensions = array<i32: 0>} : vector<512x128xi32>
    %c300_i32 = arith.constant 300 : i32
    %12 = vector.broadcast %c300_i32 : i32 to vector<512x128xi32>
    %13 = arith.cmpi slt, %11, %12 : vector<512x128xi32>
    %cst_9 = arith.constant 0.000000e+00 : f32
    %14 = vector.broadcast %cst_9 : f32 to vector<512x128xf32>
    %15 = arith.select %13, %10, %14 : vector<512x128xi1>, vector<512x128xf32>
    %16 = arith.truncf %15 : vector<512x128xf32> to vector<512x128xbf16>
    %c0_10 = arith.constant 0 : index
    %c0_11 = arith.constant 0 : index
    %17 = vector.load %arg9[%c0_10, %c0_11] : memref<512x128xbf16, #tpu.memory_space<vmem>>, vector<512x128xbf16>
    tpu.vector_store %arg9[%c0_10, %c0_11], %16 {strides = array<i32>} : memref<512x128xbf16, #tpu.memory_space<vmem>>, vector<512x128xbf16>,
    %c0_12 = arith.constant 0 : index
    %c0_13 = arith.constant 0 : index
    %18 = vector.load %arg1[%c0_12, %c0_13] : memref<512x512xbf16, #tpu.memory_space<vmem>>, vector<512x512xbf16>
    %c0_14 = arith.constant 0 : index
    %c0_15 = arith.constant 0 : index
    %19 = vector.load %arg9[%c0_14, %c0_15] : memref<512x128xbf16, #tpu.memory_space<vmem>>, vector<512x128xbf16>
    %cst_16 = arith.constant dense<0.000000e+00> : vector<512x128xf32>
    %20 = tpu.matmul %18, %19, %cst_16 {dimension_numbers = #tpu.dot_dimension_numbers<[1], [0], [0], [1], [0, 0, 1, 1], [], []>} : vector<512x512xbf16>, vector<512x128xbf16>, vector<512x128xf32> -> vector<512x128xf32>
    %21 = arith.truncf %20 : vector<512x128xf32> to vector<512x128xbf16>
    %c0_17 = arith.constant 0 : index
    %c0_18 = arith.constant 0 : index
    %22 = vector.load %arg5[%c0_17, %c0_18] : memref<128x128xbf16, #tpu.memory_space<vmem>>, vector<128x128xbf16>
    %cst_19 = arith.constant dense<0.000000e+00> : vector<512x128xf32>
    %23 = tpu.matmul %21, %22, %cst_19 {dimension_numbers = #tpu.dot_dimension_numbers<[1], [0], [0], [1], [0, 0, 1, 1], [], []>} : vector<512x128xbf16>, vector<128x128xbf16>, vector<512x128xf32> -> vector<512x128xf32>
    %c0_20 = arith.constant 0 : index
    %c0_21 = arith.constant 0 : index
    %24 = vector.load %arg6[%c0_20, %c0_21] : memref<1x128xf32, #tpu.memory_space<vmem>>, vector<1x128xf32>
    %25 = vector.broadcast %24 : vector<1x128xf32> to vector<512x128xf32>
    %26 = arith.addf %23, %25 : vector<512x128xf32>
    %c0_22 = arith.constant 0 : index
    %c0_23 = arith.constant 0 : index
    %27 = vector.load %arg7[%c0_22, %c0_23] : memref<1x128xf32, #tpu.memory_space<vmem>>, vector<1x128xf32>
    %28 = vector.broadcast %27 : vector<1x128xf32> to vector<512x128xf32>
    %29 = arith.addf %26, %28 : vector<512x128xf32>
    %cst_24 = arith.constant dense<0xFF800000> : vector<512xf32>
    %30 = vector.multi_reduction <maximumf>, %29, %cst_24 [1] : vector<512x128xf32> to vector<512xf32>
    %31 = vector.shape_cast %30 : vector<512xf32> to vector<512x1xf32>
    %32 = vector.broadcast %31 : vector<512x1xf32> to vector<512x128xf32>
    %33 = arith.subf %29, %32 : vector<512x128xf32>
    %34 = math.exp %33 : vector<512x128xf32>
    %cst_25 = arith.constant dense<0.000000e+00> : vector<512xf32>
    %35 = vector.multi_reduction <add>, %34, %cst_25 [1] : vector<512x128xf32> to vector<512xf32>
    %36 = vector.shape_cast %35 : vector<512xf32> to vector<512x1xf32>
    %37 = math.log %36 : vector<512x1xf32>
    %38 = arith.addf %31, %37 : vector<512x1xf32>
    %39 = vector.broadcast %38 : vector<512x1xf32> to vector<512x128xf32>
    %40 = arith.subf %29, %39 : vector<512x128xf32>
    %c0_26 = arith.constant 0 : index
    %c0_27 = arith.constant 0 : index
    %41 = vector.load %arg8[%c0_26, %c0_27] : memref<512x128xf32, #tpu.memory_space<vmem>>, vector<512x128xf32>
    tpu.vector_store %arg8[%c0_26, %c0_27], %40 {strides = array<i32>} : memref<512x128xf32, #tpu.memory_space<vmem>>, vector<512x128xf32>,
    return
  }
  func.func @transform_0(%arg0: i32) -> (i32, i32) {
    %c0_i32 = arith.constant 0 : i32
    %c0_i32_0 = arith.constant 0 : i32
    %c0_i32_1 = arith.constant 0 : i32
    return %c0_i32, %c0_i32_0 : i32, i32
  }
  func.func @transform_1(%arg0: i32) -> (i32, i32) {
    %c0_i32 = arith.constant 0 : i32
    %c0_i32_0 = arith.constant 0 : i32
    %c0_i32_1 = arith.constant 0 : i32
    return %c0_i32, %c0_i32_0 : i32, i32
  }
  func.func @transform_2(%arg0: i32) -> (i32, i32) {
    %c0_i32 = arith.constant 0 : i32
    %c0_i32_0 = arith.constant 0 : i32
    %c0_i32_1 = arith.constant 0 : i32
    return %c0_i32, %c0_i32_0 : i32, i32
  }
  func.func @transform_3(%arg0: i32) -> (i32, i32) {
    %c0_i32 = arith.constant 0 : i32
    %c0_i32_0 = arith.constant 0 : i32
    %c0_i32_1 = arith.constant 0 : i32
    return %c0_i32, %c0_i32_0 : i32, i32
  }
  func.func @transform_4(%arg0: i32) -> (i32, i32) {
    %c0_i32 = arith.constant 0 : i32
    %c0_i32_0 = arith.constant 0 : i32
    %c0_i32_1 = arith.constant 0 : i32
    return %c0_i32, %c0_i32_0 : i32, i32
  }
  func.func @transform_5(%arg0: i32) -> (i32, i32) {
    %c0_i32 = arith.constant 0 : i32
    %c0_i32_0 = arith.constant 0 : i32
    %c0_i32_1 = arith.constant 0 : i32
    return %c0_i32, %c0_i32_0 : i32, i32
  }
  func.func @transform_6(%arg0: i32) -> (i32, i32) {
    %c0_i32 = arith.constant 0 : i32
    %c0_i32_0 = arith.constant 0 : i32
    %c0_i32_1 = arith.constant 0 : i32
    return %c0_i32, %c0_i32_0 : i32, i32
  }
  func.func @transform_7(%arg0: i32) -> (i32, i32) {
    %c0_i32 = arith.constant 0 : i32
    %c0_i32_0 = arith.constant 0 : i32
    %c0_i32_1 = arith.constant 0 : i32
    return %c0_i32, %c0_i32_0 : i32, i32
  }
}

</mosaic_0001>

<llo_original>
// kernel: gcn_forward.1
$region0: #{gcn_forward.1}
  #allocation0 [shape = 'u32[]', space=smem, size = 0x4, offset = 0x4, fixed_abs, tag = 'smem constant byte address 0x4 - core index']
  #allocation1 [shape = 'u32[144,128]{1,0:T(1,128)}', space=vmem, size = 0x12000, scoped, tag = 'internal scratch']
  #allocation2 [shape = 'bf16[512,128]{1,0:T(16,128)(2,1)}', space=vmem, size = 0x20000, scoped, tag = 'scratch operand']
  %s0 = inlined_call_operand.vmem [shape: bf16[512,512], index: 0, kind: input, shape index: {}]
  %s1 = inlined_call_operand.vmem [shape: bf16[512,128], index: 1, kind: input, shape index: {}]
  %s2 = inlined_call_operand.vmem [shape: bf16[128,128], index: 2, kind: input, shape index: {}]
  %s3 = inlined_call_operand.vmem [shape: f32[1,128], index: 3, kind: input, shape index: {}]
  %s4 = inlined_call_operand.vmem [shape: bf16[128,128], index: 4, kind: input, shape index: {}]
  %s5 = inlined_call_operand.vmem [shape: f32[1,128], index: 5, kind: input, shape index: {}]
  %s6 = inlined_call_operand.vmem [shape: f32[1,128], index: 6, kind: input, shape index: {}]
  %s7 = inlined_call_operand.vmem [shape: f32[512,128], index: 7, kind: output, shape index: {}]
  %s8 = sld [smem:[#allocation0]]
  $region38: #{gcn_forward.1} parent=0
    _
  %s10 = ssub.s32 1, %s8
  %s11 = scalar_select 0, %s10, %s8
  // Predicated region
  $region2: #{gcn_forward.1} parent=0 // pred_check
    _
  $region3: #{gcn_forward.1} parent=0 // pred_check_branch
    %13 = sbr.rel (0) target = $region5
  $region4: #{gcn_forward.1} parent=0 // pred_region
    _
  $region5: #{gcn_forward.1} parent=0 // pred_fallthru
    _
  // Predicated region
  $region6: #{gcn_forward.1} parent=0 // pred_check
    _
  $region7: #{gcn_forward.1} parent=0 // pred_check_branch
    %15 = sbr.rel (0) target = $region9
  $region8: #{gcn_forward.1} parent=0 // pred_region
    _
  $region9: #{gcn_forward.1} parent=0 // pred_fallthru
    _
  // Predicated region
  $region10: #{gcn_forward.1} parent=0 // pred_check
    _
  $region11: #{gcn_forward.1} parent=0 // pred_check_branch
    %17 = sbr.rel (0) target = $region13
  $region12: #{gcn_forward.1} parent=0 // pred_region
    _
  $region13: #{gcn_forward.1} parent=0 // pred_fallthru
    _
  // Predicated region
  $region14: #{gcn_forward.1} parent=0 // pred_check
    _
  $region15: #{gcn_forward.1} parent=0 // pred_check_branch
    %19 = sbr.rel (0) target = $region17
  $region16: #{gcn_forward.1} parent=0 // pred_region
    _
  $region17: #{gcn_forward.1} parent=0 // pred_fallthru
    _
  // Predicated region
  $region18: #{gcn_forward.1} parent=0 // pred_check
    _
  $region19: #{gcn_forward.1} parent=0 // pred_check_branch
    %21 = sbr.rel (0) target = $region21
  $region20: #{gcn_forward.1} parent=0 // pred_region
    _
  $region21: #{gcn_forward.1} parent=0 // pred_fallthru
    _
  // Predicated region
  $region22: #{gcn_forward.1} parent=0 // pred_check
    _
  $region23: #{gcn_forward.1} parent=0 // pred_check_branch
    %23 = sbr.rel (0) target = $region25
  $region24: #{gcn_forward.1} parent=0 // pred_region
    _
  $region25: #{gcn_forward.1} parent=0 // pred_fallthru
    _
  // Predicated region
  $region26: #{gcn_forward.1} parent=0 // pred_check
    _
  $region27: #{gcn_forward.1} parent=0 // pred_check_branch
    %25 = sbr.rel (0) target = $region29
  $region28: #{gcn_forward.1} parent=0 // pred_region
    _
  $region29: #{gcn_forward.1} parent=0 // pred_fallthru
    _
  %v27 = vld [vmem:[%s0] sm:$0xff]
  %v28 = vld [vmem:[%s0 + $0x8] sm:$0xff]
  %v29 = vld [vmem:[%s0 + $0x10] sm:$0xff]
  %v30 = vld [vmem:[%s0 + $0x18] sm:$0xff]
  %v31 = vld [vmem:[%s0 + $0x20] sm:$0xff]
  %v32 = vld [vmem:[%s0 + $0x28] sm:$0xff]
  %v33 = vld [vmem:[%s0 + $0x30] sm:$0xff]
  %v34 = vld [vmem:[%s0 + $0x38] sm:$0xff]
  %v35 = vld [vmem:[%s0 + $0x40] sm:$0xff]
  %v36 = vld [vmem:[%s0 + $0x48] sm:$0xff]
  %v37 = vld [vmem:[%s0 + $0x50] sm:$0xff]
  %v38 = vld [vmem:[%s0 + $0x58] sm:$0xff]
  %v39 = vld [vmem:[%s0 + $0x60] sm:$0xff]
  %v40 = vld [vmem:[%s0 + $0x68] sm:$0xff]
  %v41 = vld [vmem:[%s0 + $0x70] sm:$0xff]
  %v42 = vld [vmem:[%s0 + $0x78] sm:$0xff]
  %v43 = vld [vmem:[%s0 + $0x80] sm:$0xff]
  %v44 = vld [vmem:[%s0 + $0x88] sm:$0xff]
  %v45 = vld [vmem:[%s0 + $0x90] sm:$0xff]
  %v46 = vld [vmem:[%s0 + $0x98] sm:$0xff]
  %v47 = vld [vmem:[%s0 + $0xa0] sm:$0xff]
  %v48 = vld [vmem:[%s0 + $0xa8] sm:$0xff]
  %v49 = vld [vmem:[%s0 + $0xb0] sm:$0xff]
  %v50 = vld [vmem:[%s0 + $0xb8] sm:$0xff]
  %v51 = vld [vmem:[%s0 + $0xc0] sm:$0xff]
  %v52 = vld [vmem:[%s0 + $0xc8] sm:$0xff]
  %v53 = vld [vmem:[%s0 + $0xd0] sm:$0xff]
  %v54 = vld [vmem:[%s0 + $0xd8] sm:$0xff]
  %v55 = vld [vmem:[%s0 + $0xe0] sm:$0xff]
  %v56 = vld [vmem:[%s0 + $0xe8] sm:$0xff]
  %v57 = vld [vmem:[%s0 + $0xf0] sm:$0xff]
  %v58 = vld [vmem:[%s0 + $0xf8] sm:$0xff]
  %v59 = vld [vmem:[%s0 + $0x100] sm:$0xff]
  %v60 = vld [vmem:[%s0 + $0x108] sm:$0xff]
  %v61 = vld [vmem:[%s0 + $0x110] sm:$0xff]
  %v62 = vld [vmem:[%s0 + $0x118] sm:$0xff]
  %v63 = vld [vmem:[%s0 + $0x120] sm:$0xff]
  %v64 = vld [vmem:[%s0 + $0x128] sm:$0xff]
  %v65 = vld [vmem:[%s0 + $0x130] sm:$0xff]
  %v66 = vld [vmem:[%s0 + $0x138] sm:$0xff]
  %v67 = vld [vmem:[%s0 + $0x140] sm:$0xff]
  %v68 = vld [vmem:[%s0 + $0x148] sm:$0xff]
  %v69 = vld [vmem:[%s0 + $0x150] sm:$0xff]
  %v70 = vld [vmem:[%s0 + $0x158] sm:$0xff]
  %v71 = vld [vmem:[%s0 + $0x160] sm:$0xff]
  %v72 = vld [vmem:[%s0 + $0x168] sm:$0xff]
  %v73 = vld [vmem:[%s0 + $0x170] sm:$0xff]
  %v74 = vld [vmem:[%s0 + $0x178] sm:$0xff]
  %v75 = vld [vmem:[%s0 + $0x180] sm:$0xff]
  %v76 = vld [vmem:[%s0 + $0x188] sm:$0xff]
  %v77 = vld [vmem:[%s0 + $0x190] sm:$0xff]
  %v78 = vld [vmem:[%s0 + $0x198] sm:$0xff]
  %v79 = vld [vmem:[%s0 + $0x1a0] sm:$0xff]
  %v80 = vld [vmem:[%s0 + $0x1a8] sm:$0xff]
  %v81 = vld [vmem:[%s0 + $0x1b0] sm:$0xff]
  %v82 = vld [vmem:[%s0 + $0x1b8] sm:$0xff]
  %v83 = vld [vmem:[%s0 + $0x1c0] sm:$0xff]
  %v84 = vld [vmem:[%s0 + $0x1c8] sm:$0xff]
  %v85 = vld [vmem:[%s0 + $0x1d0] sm:$0xff]
  %v86 = vld [vmem:[%s0 + $0x1d8] sm:$0xff]
  %v87 = vld [vmem:[%s0 + $0x1e0] sm:$0xff]
  %v88 = vld [vmem:[%s0 + $0x1e8] sm:$0xff]
  %v89 = vld [vmem:[%s0 + $0x1f0] sm:$0xff]
  %v90 = vld [vmem:[%s0 + $0x1f8] sm:$0xff]
  %v91 = vld [vmem:[%s0 + $0x200] sm:$0xff]
  %v92 = vld [vmem:[%s0 + $0x208] sm:$0xff]
  %v93 = vld [vmem:[%s0 + $0x210] sm:$0xff]
  %v94 = vld [vmem:[%s0 + $0x218] sm:$0xff]
  %v95 = vld [vmem:[%s0 + $0x220] sm:$0xff]
  %v96 = vld [vmem:[%s0 + $0x228] sm:$0xff]
  %v97 = vld [vmem:[%s0 + $0x230] sm:$0xff]
  %v98 = vld [vmem:[%s0 + $0x238] sm:$0xff]
  %v99 = vld [vmem:[%s0 + $0x240] sm:$0xff]
  %v100 = vld [vmem:[%s0 + $0x248] sm:$0xff]
  %v101 = vld [vmem:[%s0 + $0x250] sm:$0xff]
  %v102 = vld [vmem:[%s0 + $0x258] sm:$0xff]
  %v103 = vld [vmem:[%s0 + $0x260] sm:$0xff]
  %v104 = vld [vmem:[%s0 + $0x268] sm:$0xff]
  %v105 = vld [vmem:[%s0 + $0x270] sm:$0xff]
  %v106 = vld [vmem:[%s0 + $0x278] sm:$0xff]
  %v107 = vld [vmem:[%s0 + $0x280] sm:$0xff]
  %v108 = vld [vmem:[%s0 + $0x288] sm:$0xff]
  %v109 = vld [vmem:[%s0 + $0x290] sm:$0xff]
  %v110 = vld [vmem:[%s0 + $0x298] sm:$0xff]
  %v111 = vld [vmem:[%s0 + $0x2a0] sm:$0xff]
  %v112 = vld [vmem:[%s0 + $0x2a8] sm:$0xff]
  %v113 = vld [vmem:[%s0 + $0x2b0] sm:$0xff]
  %v114 = vld [vmem:[%s0 + $0x2b8] sm:$0xff]
  %v115 = vld [vmem:[%s0 + $0x2c0] sm:$0xff]
  %v116 = vld [vmem:[%s0 + $0x2c8] sm:$0xff]
  %v117 = vld [vmem:[%s0 + $0x2d0] sm:$0xff]
  %v118 = vld [vmem:[%s0 + $0x2d8] sm:$0xff]
  %v119 = vld [vmem:[%s0 + $0x2e0] sm:$0xff]
  %v120 = vld [vmem:[%s0 + $0x2e8] sm:$0xff]
  %v121 = vld [vmem:[%s0 + $0x2f0] sm:$0xff]
  %v122 = vld [vmem:[%s0 + $0x2f8] sm:$0xff]
  %v123 = vld [vmem:[%s0 + $0x300] sm:$0xff]
  %v124 = vld [vmem:[%s0 + $0x308] sm:$0xff]
  %v125 = vld [vmem:[%s0 + $0x310] sm:$0xff]
  %v126 = vld [vmem:[%s0 + $0x318] sm:$0xff]
  %v127 = vld [vmem:[%s0 + $0x320] sm:$0xff]
  %v128 = vld [vmem:[%s0 + $0x328] sm:$0xff]
  %v129 = vld [vmem:[%s0 + $0x330] sm:$0xff]
  %v130 = vld [vmem:[%s0 + $0x338] sm:$0xff]
  %v131 = vld [vmem:[%s0 + $0x340] sm:$0xff]
  %v132 = vld [vmem:[%s0 + $0x348] sm:$0xff]
  %v133 = vld [vmem:[%s0 + $0x350] sm:$0xff]
  %v134 = vld [vmem:[%s0 + $0x358] sm:$0xff]
  %v135 = vld [vmem:[%s0 + $0x360] sm:$0xff]
  %v136 = vld [vmem:[%s0 + $0x368] sm:$0xff]
  %v137 = vld [vmem:[%s0 + $0x370] sm:$0xff]
  %v138 = vld [vmem:[%s0 + $0x378] sm:$0xff]
  %v139 = vld [vmem:[%s0 + $0x380] sm:$0xff]
  %v140 = vld [vmem:[%s0 + $0x388] sm:$0xff]
  %v141 = vld [vmem:[%s0 + $0x390] sm:$0xff]
  %v142 = vld [vmem:[%s0 + $0x398] sm:$0xff]
  %v143 = vld [vmem:[%s0 + $0x3a0] sm:$0xff]
  %v144 = vld [vmem:[%s0 + $0x3a8] sm:$0xff]
  %v145 = vld [vmem:[%s0 + $0x3b0] sm:$0xff]
  %v146 = vld [vmem:[%s0 + $0x3b8] sm:$0xff]
  %v147 = vld [vmem:[%s0 + $0x3c0] sm:$0xff]
  %v148 = vld [vmem:[%s0 + $0x3c8] sm:$0xff]
  %v149 = vld [vmem:[%s0 + $0x3d0] sm:$0xff]
  %v150 = vld [vmem:[%s0 + $0x3d8] sm:$0xff]
  %v151 = vld [vmem:[%s0 + $0x3e0] sm:$0xff]
  %v152 = vld [vmem:[%s0 + $0x3e8] sm:$0xff]
  %v153 = vld [vmem:[%s0 + $0x3f0] sm:$0xff]
  %v154 = vld [vmem:[%s0 + $0x3f8] sm:$0xff]
  %v155 = vld [vmem:[%s1] sm:$0xf]
  %v156 = vld [vmem:[%s1 + $0x4] sm:$0xf]
  %v157 = vld [vmem:[%s1 + $0x8] sm:$0xf]
  %v158 = vld [vmem:[%s1 + $0xc] sm:$0xf]
  %v159 = vld [vmem:[%s1 + $0x10] sm:$0xf]
  %v160 = vld [vmem:[%s1 + $0x14] sm:$0xf]
  %v161 = vld [vmem:[%s1 + $0x18] sm:$0xf]
  %v162 = vld [vmem:[%s1 + $0x1c] sm:$0xf]
  %v163 = vld [vmem:[%s1 + $0x20] sm:$0xf]
  %v164 = vld [vmem:[%s1 + $0x24] sm:$0xf]
  %v165 = vld [vmem:[%s1 + $0x28] sm:$0xf]
  %v166 = vld [vmem:[%s1 + $0x2c] sm:$0xf]
  %v167 = vld [vmem:[%s1 + $0x30] sm:$0xf]
  %v168 = vld [vmem:[%s1 + $0x34] sm:$0xf]
  %v169 = vld [vmem:[%s1 + $0x38] sm:$0xf]
  %v170 = vld [vmem:[%s1 + $0x3c] sm:$0xf]
  %v171 = vld [vmem:[%s1 + $0x40] sm:$0xf]
  %v172 = vld [vmem:[%s1 + $0x44] sm:$0xf]
  %v173 = vld [vmem:[%s1 + $0x48] sm:$0xf]
  %v174 = vld [vmem:[%s1 + $0x4c] sm:$0xf]
  %v175 = vld [vmem:[%s1 + $0x50] sm:$0xf]
  %v176 = vld [vmem:[%s1 + $0x54] sm:$0xf]
  %v177 = vld [vmem:[%s1 + $0x58] sm:$0xf]
  %v178 = vld [vmem:[%s1 + $0x5c] sm:$0xf]
  %v179 = vld [vmem:[%s1 + $0x60] sm:$0xf]
  %v180 = vld [vmem:[%s1 + $0x64] sm:$0xf]
  %v181 = vld [vmem:[%s1 + $0x68] sm:$0xf]
  %v182 = vld [vmem:[%s1 + $0x6c] sm:$0xf]
  %v183 = vld [vmem:[%s1 + $0x70] sm:$0xf]
  %v184 = vld [vmem:[%s1 + $0x74] sm:$0xf]
  %v185 = vld [vmem:[%s1 + $0x78] sm:$0xf]
  %v186 = vld [vmem:[%s1 + $0x7c] sm:$0xf]
  %v187 = vld [vmem:[%s1 + $0x80] sm:$0xf]
  %v188 = vld [vmem:[%s1 + $0x84] sm:$0xf]
  %v189 = vld [vmem:[%s1 + $0x88] sm:$0xf]
  %v190 = vld [vmem:[%s1 + $0x8c] sm:$0xf]
  %v191 = vld [vmem:[%s1 + $0x90] sm:$0xf]
  %v192 = vld [vmem:[%s1 + $0x94] sm:$0xf]
  %v193 = vld [vmem:[%s1 + $0x98] sm:$0xf]
  %v194 = vld [vmem:[%s1 + $0x9c] sm:$0xf]
  %v195 = vld [vmem:[%s1 + $0xa0] sm:$0xf]
  %v196 = vld [vmem:[%s1 + $0xa4] sm:$0xf]
  %v197 = vld [vmem:[%s1 + $0xa8] sm:$0xf]
  %v198 = vld [vmem:[%s1 + $0xac] sm:$0xf]
  %v199 = vld [vmem:[%s1 + $0xb0] sm:$0xf]
  %v200 = vld [vmem:[%s1 + $0xb4] sm:$0xf]
  %v201 = vld [vmem:[%s1 + $0xb8] sm:$0xf]
  %v202 = vld [vmem:[%s1 + $0xbc] sm:$0xf]
  %v203 = vld [vmem:[%s1 + $0xc0] sm:$0xf]
  %v204 = vld [vmem:[%s1 + $0xc4] sm:$0xf]
  %v205 = vld [vmem:[%s1 + $0xc8] sm:$0xf]
  %v206 = vld [vmem:[%s1 + $0xcc] sm:$0xf]
  %v207 = vld [vmem:[%s1 + $0xd0] sm:$0xf]
  %v208 = vld [vmem:[%s1 + $0xd4] sm:$0xf]
  %v209 = vld [vmem:[%s1 + $0xd8] sm:$0xf]
  %v210 = vld [vmem:[%s1 + $0xdc] sm:$0xf]
  %v211 = vld [vmem:[%s1 + $0xe0] sm:$0xf]
  %v212 = vld [vmem:[%s1 + $0xe4] sm:$0xf]
  %v213 = vld [vmem:[%s1 + $0xe8] sm:$0xf]
  %v214 = vld [vmem:[%s1 + $0xec] sm:$0xf]
  %v215 = vld [vmem:[%s1 + $0xf0] sm:$0xf]
  %v216 = vld [vmem:[%s1 + $0xf4] sm:$0xf]
  %v217 = vld [vmem:[%s1 + $0xf8] sm:$0xf]
  %v218 = vld [vmem:[%s1 + $0xfc] sm:$0xf]
  %v347 = vunpack.c.l.b16 %v27
  %v348 = vunpack.c.h.b16 %v27
  %v349 = vunpack.c.l.b16 %v28
  %v350 = vunpack.c.h.b16 %v28
  %v351 = vunpack.c.l.b16 %v29
  %v352 = vunpack.c.h.b16 %v29
  %v353 = vunpack.c.l.b16 %v30
  %v354 = vunpack.c.h.b16 %v30
  %v355 = vunpack.c.l.b16 %v31
  %v356 = vunpack.c.h.b16 %v31
  %v357 = vunpack.c.l.b16 %v32
  %v358 = vunpack.c.h.b16 %v32
  %v359 = vunpack.c.l.b16 %v33
  %v360 = vunpack.c.h.b16 %v33
  %v361 = vunpack.c.l.b16 %v34
  %v362 = vunpack.c.h.b16 %v34
  %v363 = vunpack.c.l.b16 %v35
  %v364 = vunpack.c.h.b16 %v35
  %v365 = vunpack.c.l.b16 %v36
  %v366 = vunpack.c.h.b16 %v36
  %v367 = vunpack.c.l.b16 %v37
  %v368 = vunpack.c.h.b16 %v37
  %v369 = vunpack.c.l.b16 %v38
  %v370 = vunpack.c.h.b16 %v38
  %v371 = vunpack.c.l.b16 %v39
  %v372 = vunpack.c.h.b16 %v39
  %v373 = vunpack.c.l.b16 %v40
  %v374 = vunpack.c.h.b16 %v40
  %v375 = vunpack.c.l.b16 %v41
  %v376 = vunpack.c.h.b16 %v41
  %v377 = vunpack.c.l.b16 %v42
  %v378 = vunpack.c.h.b16 %v42
  %v379 = vunpack.c.l.b16 %v43
  %v380 = vunpack.c.h.b16 %v43
  %v381 = vunpack.c.l.b16 %v44
  %v382 = vunpack.c.h.b16 %v44
  %v383 = vunpack.c.l.b16 %v45
  %v384 = vunpack.c.h.b16 %v45
  %v385 = vunpack.c.l.b16 %v46
  %v386 = vunpack.c.h.b16 %v46
  %v387 = vunpack.c.l.b16 %v47
  %v388 = vunpack.c.h.b16 %v47
  %v389 = vunpack.c.l.b16 %v48
  %v390 = vunpack.c.h.b16 %v48
  %v391 = vunpack.c.l.b16 %v49
  %v392 = vunpack.c.h.b16 %v49
  %v393 = vunpack.c.l.b16 %v50
  %v394 = vunpack.c.h.b16 %v50
  %v395 = vunpack.c.l.b16 %v51
  %v396 = vunpack.c.h.b16 %v51
  %v397 = vunpack.c.l.b16 %v52
  %v398 = vunpack.c.h.b16 %v52
  %v399 = vunpack.c.l.b16 %v53
  %v400 = vunpack.c.h.b16 %v53
  %v401 = vunpack.c.l.b16 %v54
  %v402 = vunpack.c.h.b16 %v54
  %v403 = vunpack.c.l.b16 %v55
  %v404 = vunpack.c.h.b16 %v55
  %v405 = vunpack.c.l.b16 %v56
  %v406 = vunpack.c.h.b16 %v56
  %v407 = vunpack.c.l.b16 %v57
  %v408 = vunpack.c.h.b16 %v57
  %v409 = vunpack.c.l.b16 %v58
  %v410 = vunpack.c.h.b16 %v58
  %v411 = vunpack.c.l.b16 %v59
  %v412 = vunpack.c.h.b16 %v59
  %v413 = vunpack.c.l.b16 %v60
  %v414 = vunpack.c.h.b16 %v60
  %v415 = vunpack.c.l.b16 %v61
  %v416 = vunpack.c.h.b16 %v61
  %v417 = vunpack.c.l.b16 %v62
  %v418 = vunpack.c.h.b16 %v62
  %v419 = vunpack.c.l.b16 %v63
  %v420 = vunpack.c.h.b16 %v63
  %v421 = vunpack.c.l.b16 %v64
  %v422 = vunpack.c.h.b16 %v64
  %v423 = vunpack.c.l.b16 %v65
  %v424 = vunpack.c.h.b16 %v65
  %v425 = vunpack.c.l.b16 %v66
  %v426 = vunpack.c.h.b16 %v66
  %v427 = vunpack.c.l.b16 %v67
  %v428 = vunpack.c.h.b16 %v67
  %v429 = vunpack.c.l.b16 %v68
  %v430 = vunpack.c.h.b16 %v68
  %v431 = vunpack.c.l.b16 %v69
  %v432 = vunpack.c.h.b16 %v69
  %v433 = vunpack.c.l.b16 %v70
  %v434 = vunpack.c.h.b16 %v70
  %v435 = vunpack.c.l.b16 %v71
  %v436 = vunpack.c.h.b16 %v71
  %v437 = vunpack.c.l.b16 %v72
  %v438 = vunpack.c.h.b16 %v72
  %v439 = vunpack.c.l.b16 %v73
  %v440 = vunpack.c.h.b16 %v73
  %v441 = vunpack.c.l.b16 %v74
  %v442 = vunpack.c.h.b16 %v74
  %v443 = vunpack.c.l.b16 %v75
  %v444 = vunpack.c.h.b16 %v75
  %v445 = vunpack.c.l.b16 %v76
  %v446 = vunpack.c.h.b16 %v76
  %v447 = vunpack.c.l.b16 %v77
  %v448 = vunpack.c.h.b16 %v77
  %v449 = vunpack.c.l.b16 %v78
  %v450 = vunpack.c.h.b16 %v78
  %v451 = vunpack.c.l.b16 %v79
  %v452 = vunpack.c.h.b16 %v79
  %v453 = vunpack.c.l.b16 %v80
  %v454 = vunpack.c.h.b16 %v80
  %v455 = vunpack.c.l.b16 %v81
  %v456 = vunpack.c.h.b16 %v81
  %v457 = vunpack.c.l.b16 %v82
  %v458 = vunpack.c.h.b16 %v82
  %v459 = vunpack.c.l.b16 %v83
  %v460 = vunpack.c.h.b16 %v83
  %v461 = vunpack.c.l.b16 %v84
  %v462 = vunpack.c.h.b16 %v84
  %v463 = vunpack.c.l.b16 %v85
  %v464 = vunpack.c.h.b16 %v85
  %v465 = vunpack.c.l.b16 %v86
  %v466 = vunpack.c.h.b16 %v86
  %v467 = vunpack.c.l.b16 %v87
  %v468 = vunpack.c.h.b16 %v87
  %v469 = vunpack.c.l.b16 %v88
  %v470 = vunpack.c.h.b16 %v88
  %v471 = vunpack.c.l.b16 %v89
  %v472 = vunpack.c.h.b16 %v89
  %v473 = vunpack.c.l.b16 %v90
  %v474 = vunpack.c.h.b16 %v90
  %v475 = vunpack.c.l.b16 %v91
  %v476 = vunpack.c.h.b16 %v91
  %v477 = vunpack.c.l.b16 %v92
  %v478 = vunpack.c.h.b16 %v92
  %v479 = vunpack.c.l.b16 %v93
  %v480 = vunpack.c.h.b16 %v93
  %v481 = vunpack.c.l.b16 %v94
  %v482 = vunpack.c.h.b16 %v94
  %v483 = vunpack.c.l.b16 %v95
  %v484 = vunpack.c.h.b16 %v95
  %v485 = vunpack.c.l.b16 %v96
  %v486 = vunpack.c.h.b16 %v96
  %v487 = vunpack.c.l.b16 %v97
  %v488 = vunpack.c.h.b16 %v97
  %v489 = vunpack.c.l.b16 %v98
  %v490 = vunpack.c.h.b16 %v98
  %v491 = vunpack.c.l.b16 %v99
  %v492 = vunpack.c.h.b16 %v99
  %v493 = vunpack.c.l.b16 %v100
  %v494 = vunpack.c.h.b16 %v100
  %v495 = vunpack.c.l.b16 %v101
  %v496 = vunpack.c.h.b16 %v101
  %v497 = vunpack.c.l.b16 %v102
  %v498 = vunpack.c.h.b16 %v102
  %v499 = vunpack.c.l.b16 %v103
  %v500 = vunpack.c.h.b16 %v103
  %v501 = vunpack.c.l.b16 %v104
  %v502 = vunpack.c.h.b16 %v104
  %v503 = vunpack.c.l.b16 %v105
  %v504 = vunpack.c.h.b16 %v105
  %v505 = vunpack.c.l.b16 %v106
  %v506 = vunpack.c.h.b16 %v106
  %v507 = vunpack.c.l.b16 %v107
  %v508 = vunpack.c.h.b16 %v107
  %v509 = vunpack.c.l.b16 %v108
  %v510 = vunpack.c.h.b16 %v108
  %v511 = vunpack.c.l.b16 %v109
  %v512 = vunpack.c.h.b16 %v109
  %v513 = vunpack.c.l.b16 %v110
  %v514 = vunpack.c.h.b16 %v110
  %v515 = vunpack.c.l.b16 %v111
  %v516 = vunpack.c.h.b16 %v111
  %v517 = vunpack.c.l.b16 %v112
  %v518 = vunpack.c.h.b16 %v112
  %v519 = vunpack.c.l.b16 %v113
  %v520 = vunpack.c.h.b16 %v113
  %v521 = vunpack.c.l.b16 %v114
  %v522 = vunpack.c.h.b16 %v114
  %v523 = vunpack.c.l.b16 %v115
  %v524 = vunpack.c.h.b16 %v115
  %v525 = vunpack.c.l.b16 %v116
  %v526 = vunpack.c.h.b16 %v116
  %v527 = vunpack.c.l.b16 %v117
  %v528 = vunpack.c.h.b16 %v117
  %v529 = vunpack.c.l.b16 %v118
  %v530 = vunpack.c.h.b16 %v118
  %v531 = vunpack.c.l.b16 %v119
  %v532 = vunpack.c.h.b16 %v119
  %v533 = vunpack.c.l.b16 %v120
  %v534 = vunpack.c.h.b16 %v120
  %v535 = vunpack.c.l.b16 %v121
  %v536 = vunpack.c.h.b16 %v121
  %v537 = vunpack.c.l.b16 %v122
  %v538 = vunpack.c.h.b16 %v122
  %v539 = vunpack.c.l.b16 %v123
  %v540 = vunpack.c.h.b16 %v123
  %v541 = vunpack.c.l.b16 %v124
  %v542 = vunpack.c.h.b16 %v124
  %v543 = vunpack.c.l.b16 %v125
  %v544 = vunpack.c.h.b16 %v125
  %v545 = vunpack.c.l.b16 %v126
  %v546 = vunpack.c.h.b16 %v126
  %v547 = vunpack.c.l.b16 %v127
  %v548 = vunpack.c.h.b16 %v127
  %v549 = vunpack.c.l.b16 %v128
  %v550 = vunpack.c.h.b16 %v128
  %v551 = vunpack.c.l.b16 %v129
  %v552 = vunpack.c.h.b16 %v129
  %v553 = vunpack.c.l.b16 %v130
  %v554 = vunpack.c.h.b16 %v130
  %v555 = vunpack.c.l.b16 %v131
  %v556 = vunpack.c.h.b16 %v131
  %v557 = vunpack.c.l.b16 %v132
  %v558 = vunpack.c.h.b16 %v132
  %v559 = vunpack.c.l.b16 %v133
  %v560 = vunpack.c.h.b16 %v133
  %v561 = vunpack.c.l.b16 %v134
  %v562 = vunpack.c.h.b16 %v134
  %v563 = vunpack.c.l.b16 %v135
  %v564 = vunpack.c.h.b16 %v135
  %v565 = vunpack.c.l.b16 %v136
  %v566 = vunpack.c.h.b16 %v136
  %v567 = vunpack.c.l.b16 %v137
  %v568 = vunpack.c.h.b16 %v137
  %v569 = vunpack.c.l.b16 %v138
  %v570 = vunpack.c.h.b16 %v138
  %v571 = vunpack.c.l.b16 %v139
  %v572 = vunpack.c.h.b16 %v139
  %v573 = vunpack.c.l.b16 %v140
  %v574 = vunpack.c.h.b16 %v140
  %v575 = vunpack.c.l.b16 %v141
  %v576 = vunpack.c.h.b16 %v141
  %v577 = vunpack.c.l.b16 %v142
  %v578 = vunpack.c.h.b16 %v142
  %v579 = vunpack.c.l.b16 %v143
  %v580 = vunpack.c.h.b16 %v143
  %v581 = vunpack.c.l.b16 %v144
  %v582 = vunpack.c.h.b16 %v144
  %v583 = vunpack.c.l.b16 %v145
  %v584 = vunpack.c.h.b16 %v145
  %v585 = vunpack.c.l.b16 %v146
  %v586 = vunpack.c.h.b16 %v146
  %v587 = vunpack.c.l.b16 %v147
  %v588 = vunpack.c.h.b16 %v147
  %v589 = vunpack.c.l.b16 %v148
  %v590 = vunpack.c.h.b16 %v148
  %v591 = vunpack.c.l.b16 %v149
  %v592 = vunpack.c.h.b16 %v149
  %v593 = vunpack.c.l.b16 %v150
  %v594 = vunpack.c.h.b16 %v150
  %v595 = vunpack.c.l.b16 %v151
  %v596 = vunpack.c.h.b16 %v151
  %v597 = vunpack.c.l.b16 %v152
  %v598 = vunpack.c.h.b16 %v152
  %v599 = vunpack.c.l.b16 %v153
  %v600 = vunpack.c.h.b16 %v153
  %v601 = vunpack.c.l.b16 %v154
  %v602 = vunpack.c.h.b16 %v154
  %v603 = vpack.c.b16 %v351, %v347
  %v604 = vpack.c.b16 %v352, %v348
  %v605 = vpack.c.b16 %v353, %v349
  %v606 = vpack.c.b16 %v354, %v350
  %v607 = vpack.c.b16 %v359, %v355
  %v608 = vpack.c.b16 %v360, %v356
  %v609 = vpack.c.b16 %v361, %v357
  %v610 = vpack.c.b16 %v362, %v358
  %v611 = vpack.c.b16 %v367, %v363
  %v612 = vpack.c.b16 %v368, %v364
  %v613 = vpack.c.b16 %v369, %v365
  %v614 = vpack.c.b16 %v370, %v366
  %v615 = vpack.c.b16 %v375, %v371
  %v616 = vpack.c.b16 %v376, %v372
  %v617 = vpack.c.b16 %v377, %v373
  %v618 = vpack.c.b16 %v378, %v374
  %v619 = vpack.c.b16 %v383, %v379
  %v620 = vpack.c.b16 %v384, %v380
  %v621 = vpack.c.b16 %v385, %v381
  %v622 = vpack.c.b16 %v386, %v382
  %v623 = vpack.c.b16 %v391, %v387
  %v624 = vpack.c.b16 %v392, %v388
  %v625 = vpack.c.b16 %v393, %v389
  %v626 = vpack.c.b16 %v394, %v390
  %v627 = vpack.c.b16 %v399, %v395
  %v628 = vpack.c.b16 %v400, %v396
  %v629 = vpack.c.b16 %v401, %v397
  %v630 = vpack.c.b16 %v402, %v398
  %v631 = vpack.c.b16 %v407, %v403
  %v632 = vpack.c.b16 %v408, %v404
  %v633 = vpack.c.b16 %v409, %v405
  %v634 = vpack.c.b16 %v410, %v406
  %v635 = vpack.c.b16 %v415, %v411
  %v636 = vpack.c.b16 %v416, %v412
  %v637 = vpack.c.b16 %v417, %v413
  %v638 = vpack.c.b16 %v418, %v414
  %v639 = vpack.c.b16 %v423, %v419
  %v640 = vpack.c.b16 %v424, %v420
  %v641 = vpack.c.b16 %v425, %v421
  %v642 = vpack.c.b16 %v426, %v422
  %v643 = vpack.c.b16 %v431, %v427
  %v644 = vpack.c.b16 %v432, %v428
  %v645 = vpack.c.b16 %v433, %v429
  %v646 = vpack.c.b16 %v434, %v430
  %v647 = vpack.c.b16 %v439, %v435
  %v648 = vpack.c.b16 %v440, %v436
  %v649 = vpack.c.b16 %v441, %v437
  %v650 = vpack.c.b16 %v442, %v438
  %v651 = vpack.c.b16 %v447, %v443
  %v652 = vpack.c.b16 %v448, %v444
  %v653 = vpack.c.b16 %v449, %v445
  %v654 = vpack.c.b16 %v450, %v446
  %v655 = vpack.c.b16 %v455, %v451
  %v656 = vpack.c.b16 %v456, %v452
  %v657 = vpack.c.b16 %v457, %v453
  %v658 = vpack.c.b16 %v458, %v454
  %v659 = vpack.c.b16 %v463, %v459
  %v660 = vpack.c.b16 %v464, %v460
  %v661 = vpack.c.b16 %v465, %v461
  %v662 = vpack.c.b16 %v466, %v462
  %v663 = vpack.c.b16 %v471, %v467
  %v664 = vpack.c.b16 %v472, %v468
  %v665 = vpack.c.b16 %v473, %v469
  %v666 = vpack.c.b16 %v474, %v470
  %v667 = vpack.c.b16 %v479, %v475
  %v668 = vpack.c.b16 %v480, %v476
  %v669 = vpack.c.b16 %v481, %v477
  %v670 = vpack.c.b16 %v482, %v478
  %v671 = vpack.c.b16 %v487, %v483
  %v672 = vpack.c.b16 %v488, %v484
  %v673 = vpack.c.b16 %v489, %v485
  %v674 = vpack.c.b16 %v490, %v486
  %v675 = vpack.c.b16 %v495, %v491
  %v676 = vpack.c.b16 %v496, %v492
  %v677 = vpack.c.b16 %v497, %v493
  %v678 = vpack.c.b16 %v498, %v494
  %v679 = vpack.c.b16 %v503, %v499
  %v680 = vpack.c.b16 %v504, %v500
  %v681 = vpack.c.b16 %v505, %v501
  %v682 = vpack.c.b16 %v506, %v502
  %v683 = vpack.c.b16 %v511, %v507
  %v684 = vpack.c.b16 %v512, %v508
  %v685 = vpack.c.b16 %v513, %v509
  %v686 = vpack.c.b16 %v514, %v510
  %v687 = vpack.c.b16 %v519, %v515
  %v688 = vpack.c.b16 %v520, %v516
  %v689 = vpack.c.b16 %v521, %v517
  %v690 = vpack.c.b16 %v522, %v518
  %v691 = vpack.c.b16 %v527, %v523
  %v692 = vpack.c.b16 %v528, %v524
  %v693 = vpack.c.b16 %v529, %v525
  %v694 = vpack.c.b16 %v530, %v526
  %v695 = vpack.c.b16 %v535, %v531
  %v696 = vpack.c.b16 %v536, %v532
  %v697 = vpack.c.b16 %v537, %v533
  %v698 = vpack.c.b16 %v538, %v534
  %v699 = vpack.c.b16 %v543, %v539
  %v700 = vpack.c.b16 %v544, %v540
  %v701 = vpack.c.b16 %v545, %v541
  %v702 = vpack.c.b16 %v546, %v542
  %v703 = vpack.c.b16 %v551, %v547
  %v704 = vpack.c.b16 %v552, %v548
  %v705 = vpack.c.b16 %v553, %v549
  %v706 = vpack.c.b16 %v554, %v550
  %v707 = vpack.c.b16 %v559, %v555
  %v708 = vpack.c.b16 %v560, %v556
  %v709 = vpack.c.b16 %v561, %v557
  %v710 = vpack.c.b16 %v562, %v558
  %v711 = vpack.c.b16 %v567, %v563
  %v712 = vpack.c.b16 %v568, %v564
  %v713 = vpack.c.b16 %v569, %v565
  %v714 = vpack.c.b16 %v570, %v566
  %v715 = vpack.c.b16 %v575, %v571
  %v716 = vpack.c.b16 %v576, %v572
  %v717 = vpack.c.b16 %v577, %v573
  %v718 = vpack.c.b16 %v578, %v574
  %v719 = vpack.c.b16 %v583, %v579
  %v720 = vpack.c.b16 %v584, %v580
  %v721 = vpack.c.b16 %v585, %v581
  %v722 = vpack.c.b16 %v586, %v582
  %v723 = vpack.c.b16 %v591, %v587
  %v724 = vpack.c.b16 %v592, %v588
  %v725 = vpack.c.b16 %v593, %v589
  %v726 = vpack.c.b16 %v594, %v590
  %v727 = vpack.c.b16 %v599, %v595
  %v728 = vpack.c.b16 %v600, %v596
  %v729 = vpack.c.b16 %v601, %v597
  %v730 = vpack.c.b16 %v602, %v598
  %v923 = vunpack.c.l.b16 %v155
  %v924 = vunpack.c.l.b16 %v156
  %v925 = vunpack.c.l.b16 %v157
  %v926 = vunpack.c.l.b16 %v158
  %v927 = vunpack.c.l.b16 %v159
  %v928 = vunpack.c.l.b16 %v160
  %v929 = vunpack.c.l.b16 %v161
  %v930 = vunpack.c.l.b16 %v162
  %v931 = vunpack.c.l.b16 %v163
  %v932 = vunpack.c.l.b16 %v164
  %v933 = vunpack.c.l.b16 %v165
  %v934 = vunpack.c.l.b16 %v166
  %v935 = vunpack.c.l.b16 %v167
  %v936 = vunpack.c.l.b16 %v168
  %v937 = vunpack.c.l.b16 %v169
  %v938 = vunpack.c.l.b16 %v170
  %v939 = vunpack.c.l.b16 %v171
  %v940 = vunpack.c.l.b16 %v172
  %v941 = vunpack.c.l.b16 %v173
  %v942 = vunpack.c.l.b16 %v174
  %v943 = vunpack.c.l.b16 %v175
  %v944 = vunpack.c.l.b16 %v176
  %v945 = vunpack.c.l.b16 %v177
  %v946 = vunpack.c.l.b16 %v178
  %v947 = vunpack.c.l.b16 %v179
  %v948 = vunpack.c.l.b16 %v180
  %v949 = vunpack.c.l.b16 %v181
  %v950 = vunpack.c.l.b16 %v182
  %v951 = vunpack.c.l.b16 %v183
  %v952 = vunpack.c.l.b16 %v184
  %v953 = vunpack.c.l.b16 %v185
  %v954 = vunpack.c.l.b16 %v186
  %v955 = vunpack.c.l.b16 %v187
  %v956 = vunpack.c.l.b16 %v188
  %v957 = vunpack.c.l.b16 %v189
  %v958 = vunpack.c.l.b16 %v190
  %v959 = vunpack.c.l.b16 %v191
  %v960 = vunpack.c.l.b16 %v192
  %v961 = vunpack.c.l.b16 %v193
  %v962 = vunpack.c.l.b16 %v194
  %v963 = vunpack.c.l.b16 %v195
  %v964 = vunpack.c.l.b16 %v196
  %v965 = vunpack.c.l.b16 %v197
  %v966 = vunpack.c.l.b16 %v198
  %v967 = vunpack.c.l.b16 %v199
  %v968 = vunpack.c.l.b16 %v200
  %v969 = vunpack.c.l.b16 %v201
  %v970 = vunpack.c.l.b16 %v202
  %v971 = vunpack.c.l.b16 %v203
  %v972 = vunpack.c.l.b16 %v204
  %v973 = vunpack.c.l.b16 %v205
  %v974 = vunpack.c.l.b16 %v206
  %v975 = vunpack.c.l.b16 %v207
  %v976 = vunpack.c.l.b16 %v208
  %v977 = vunpack.c.l.b16 %v209
  %v978 = vunpack.c.l.b16 %v210
  %v979 = vunpack.c.l.b16 %v211
  %v980 = vunpack.c.l.b16 %v212
  %v981 = vunpack.c.l.b16 %v213
  %v982 = vunpack.c.l.b16 %v214
  %v983 = vunpack.c.l.b16 %v215
  %v984 = vunpack.c.l.b16 %v216
  %v985 = vunpack.c.l.b16 %v217
  %v986 = vunpack.c.l.b16 %v218
  %v987 = vpack.c.b16 %v924, %v923
  %v988 = vpack.c.b16 %v926, %v925
  %v989 = vpack.c.b16 %v928, %v927
  %v990 = vpack.c.b16 %v930, %v929
  %v991 = vpack.c.b16 %v932, %v931
  %v992 = vpack.c.b16 %v934, %v933
  %v993 = vpack.c.b16 %v936, %v935
  %v994 = vpack.c.b16 %v938, %v937
  %v995 = vpack.c.b16 %v940, %v939
  %v996 = vpack.c.b16 %v942, %v941
  %v997 = vpack.c.b16 %v944, %v943
  %v998 = vpack.c.b16 %v946, %v945
  %v999 = vpack.c.b16 %v948, %v947
  %v1000 = vpack.c.b16 %v950, %v949
  %v1001 = vpack.c.b16 %v952, %v951
  %v1002 = vpack.c.b16 %v954, %v953
  %v1003 = vpack.c.b16 %v956, %v955
  %v1004 = vpack.c.b16 %v958, %v957
  %v1005 = vpack.c.b16 %v960, %v959
  %v1006 = vpack.c.b16 %v962, %v961
  %v1007 = vpack.c.b16 %v964, %v963
  %v1008 = vpack.c.b16 %v966, %v965
  %v1009 = vpack.c.b16 %v968, %v967
  %v1010 = vpack.c.b16 %v970, %v969
  %v1011 = vpack.c.b16 %v972, %v971
  %v1012 = vpack.c.b16 %v974, %v973
  %v1013 = vpack.c.b16 %v976, %v975
  %v1014 = vpack.c.b16 %v978, %v977
  %v1015 = vpack.c.b16 %v980, %v979
  %v1016 = vpack.c.b16 %v982, %v981
  %v1017 = vpack.c.b16 %v984, %v983
  %v1018 = vpack.c.b16 %v986, %v985
  %1051 = vmatprep.subr.bf16.mxu0 0
  %1052 = vmatpush1.bf16.msra.mxu0 %v987
  %1053 = vmatprep.subr.bf16.mxu0 0
  %1054 = vmatpush1.bf16.msra.mxu0 %v988
  %1055 = vmatprep.subr.bf16.mxu0 0
  %1056 = vmatpush1.bf16.msra.mxu0 %v989
  %1057 = vmatprep.subr.bf16.mxu0 0
  %1058 = vmatpush1.bf16.msra.mxu0 %v990
  %1059 = vmatprep.subr.bf16.mxu0 0
  %1060 = vmatpush1.bf16.msra.mxu0 %v991
  %1061 = vmatprep.subr.bf16.mxu0 0
  %1062 = vmatpush1.bf16.msra.mxu0 %v992
  %1063 = vmatprep.subr.bf16.mxu0 0
  %1064 = vmatpush1.bf16.msra.mxu0 %v993
  %1065 = vmatprep.subr.bf16.mxu0 0
  %1066 = vmatpush1.bf16.msra.mxu0 %v994
  %1067 = vmatprep.subr.bf16.mxu0 0
  %1068 = vmatpush1.bf16.msra.mxu0 %v995
  %1069 = vmatprep.subr.bf16.mxu0 0
  %1070 = vmatpush1.bf16.msra.mxu0 %v996
  %1071 = vmatprep.subr.bf16.mxu0 0
  %1072 = vmatpush1.bf16.msra.mxu0 %v997
  %1073 = vmatprep.subr.bf16.mxu0 0
  %1074 = vmatpush1.bf16.msra.mxu0 %v998
  %1075 = vmatprep.subr.bf16.mxu0 0
  %1076 = vmatpush1.bf16.msra.mxu0 %v999
  %1077 = vmatprep.subr.bf16.mxu0 0
  %1078 = vmatpush1.bf16.msra.mxu0 %v1000
  %1079 = vmatprep.subr.bf16.mxu0 0
  %1080 = vmatpush1.bf16.msra.mxu0 %v1001
  %1081 = vmatprep.subr.bf16.mxu0 0
  %1082 = vmatpush1.bf16.msra.mxu0 %v1002
  %1083 = vmatprep.mubr.bf16.mxu0 %v604
  %1084 = vmatmul.mubr.bf16.gmra.mrb[0].mxu0 %v603
  %v1085 = vpop.f32.mrb[0].mxu0
  %v1086 = vadd.f32 0.0, %v1085
  %v1087 = vpop.f32.mrb[0].mxu0
  %v1088 = vpop.f32.mrb[0].mxu0
  %v1089 = vadd.f32 0.0, %v1088
  %v1090 = vpop.f32.mrb[0].mxu0
  %1091 = vmatprep.mubr.bf16.mxu0 %v608
  %1092 = vmatmul.mubr.bf16.gmra.mrb[0].mxu0 %v607
  %v1093 = vpop.f32.mrb[0].mxu0
  %v1094 = vadd.f32 0.0, %v1093
  %v1095 = vpop.f32.mrb[0].mxu0
  %v1096 = vpop.f32.mrb[0].mxu0
  %v1097 = vadd.f32 0.0, %v1096
  %v1098 = vpop.f32.mrb[0].mxu0
  %1099 = vmatprep.mubr.bf16.mxu0 %v612
  %1100 = vmatmul.mubr.bf16.gmra.mrb[0].mxu0 %v611
  %v1101 = vpop.f32.mrb[0].mxu0
  %v1102 = vadd.f32 0.0, %v1101
  %v1103 = vpop.f32.mrb[0].mxu0
  %v1104 = vpop.f32.mrb[0].mxu0
  %v1105 = vadd.f32 0.0, %v1104
  %v1106 = vpop.f32.mrb[0].mxu0
  %1107 = vmatprep.mubr.bf16.mxu0 %v616
  %1108 = vmatmul.mubr.bf16.gmra.mrb[0].mxu0 %v615
  %v1109 = vpop.f32.mrb[0].mxu0
  %v1110 = vadd.f32 0.0, %v1109
  %v1111 = vpop.f32.mrb[0].mxu0
  %v1112 = vpop.f32.mrb[0].mxu0
  %v1113 = vadd.f32 0.0, %v1112
  %v1114 = vpop.f32.mrb[0].mxu0
  %1115 = vmatprep.mubr.bf16.mxu0 %v620
  %1116 = vmatmul.mubr.bf16.gmra.mrb[0].mxu0 %v619
  %v1117 = vpop.f32.mrb[0].mxu0
  %v1118 = vadd.f32 0.0, %v1117
  %v1119 = vpop.f32.mrb[0].mxu0
  %v1120 = vpop.f32.mrb[0].mxu0
  %v1121 = vadd.f32 0.0, %v1120
  %v1122 = vpop.f32.mrb[0].mxu0
  %1123 = vmatprep.mubr.bf16.mxu0 %v624
  %1124 = vmatmul.mubr.bf16.gmra.mrb[0].mxu0 %v623
  %v1125 = vpop.f32.mrb[0].mxu0
  %v1126 = vadd.f32 0.0, %v1125
  %v1127 = vpop.f32.mrb[0].mxu0
  %v1128 = vpop.f32.mrb[0].mxu0
  %v1129 = vadd.f32 0.0, %v1128
  %v1130 = vpop.f32.mrb[0].mxu0
  %1131 = vmatprep.mubr.bf16.mxu0 %v628
  %1132 = vmatmul.mubr.bf16.gmra.mrb[0].mxu0 %v627
  %v1133 = vpop.f32.mrb[0].mxu0
  %v1134 = vadd.f32 0.0, %v1133
  %v1135 = vpop.f32.mrb[0].mxu0
  %v1136 = vpop.f32.mrb[0].mxu0
  %v1137 = vadd.f32 0.0, %v1136
  %v1138 = vpop.f32.mrb[0].mxu0
  %1139 = vmatprep.mubr.bf16.mxu0 %v632
  %1140 = vmatmul.mubr.bf16.gmra.mrb[0].mxu0 %v631
  %v1141 = vpop.f32.mrb[0].mxu0
  %v1142 = vadd.f32 0.0, %v1141
  %v1143 = vpop.f32.mrb[0].mxu0
  %v1144 = vpop.f32.mrb[0].mxu0
  %v1145 = vadd.f32 0.0, %v1144
  %v1146 = vpop.f32.mrb[0].mxu0
  %1147 = vmatprep.mubr.bf16.mxu0 %v636
  %1148 = vmatmul.mubr.bf16.gmra.mrb[0].mxu0 %v635
  %v1149 = vpop.f32.mrb[0].mxu0
  %v1150 = vadd.f32 0.0, %v1149
  %v1151 = vpop.f32.mrb[0].mxu0
  %v1152 = vpop.f32.mrb[0].mxu0
  %v1153 = vadd.f32 0.0, %v1152
  %v1154 = vpop.f32.mrb[0].mxu0
  %1155 = vmatprep.mubr.bf16.mxu0 %v640
  %1156 = vmatmul.mubr.bf16.gmra.mrb[0].mxu0 %v639
  %v1157 = vpop.f32.mrb[0].mxu0
  %v1158 = vadd.f32 0.0, %v1157
  %v1159 = vpop.f32.mrb[0].mxu0
  %v1160 = vpop.f32.mrb[0].mxu0
  %v1161 = vadd.f32 0.0, %v1160
  %v1162 = vpop.f32.mrb[0].mxu0
  %1163 = vmatprep.mubr.bf16.mxu0 %v644
  %1164 = vmatmul.mubr.bf16.gmra.mrb[0].mxu0 %v643
  %v1165 = vpop.f32.mrb[0].mxu0
  %v1166 = vadd.f32 0.0, %v1165
  %v1167 = vpop.f32.mrb[0].mxu0
  %v1168 = vpop.f32.mrb[0].mxu0
  %v1169 = vadd.f32 0.0, %v1168
  %v1170 = vpop.f32.mrb[0].mxu0
  %1171 = vmatprep.mubr.bf16.mxu0 %v648
  %1172 = vmatmul.mubr.bf16.gmra.mrb[0].mxu0 %v647
  %v1173 = vpop.f32.mrb[0].mxu0
  %v1174 = vadd.f32 0.0, %v1173
  %v1175 = vpop.f32.mrb[0].mxu0
  %v1176 = vpop.f32.mrb[0].mxu0
  %v1177 = vadd.f32 0.0, %v1176
  %v1178 = vpop.f32.mrb[0].mxu0
  %1179 = vmatprep.mubr.bf16.mxu0 %v652
  %1180 = vmatmul.mubr.bf16.gmra.mrb[0].mxu0 %v651
  %v1181 = vpop.f32.mrb[0].mxu0
  %v1182 = vadd.f32 0.0, %v1181
  %v1183 = vpop.f32.mrb[0].mxu0
  %v1184 = vpop.f32.mrb[0].mxu0
  %v1185 = vadd.f32 0.0, %v1184
  %v1186 = vpop.f32.mrb[0].mxu0
  %1187 = vmatprep.mubr.bf16.mxu0 %v656
  %1188 = vmatmul.mubr.bf16.gmra.mrb[0].mxu0 %v655
  %v1189 = vpop.f32.mrb[0].mxu0
  %v1190 = vadd.f32 0.0, %v1189
  %v1191 = vpop.f32.mrb[0].mxu0
  %v1192 = vpop.f32.mrb[0].mxu0
  %v1193 = vadd.f32 0.0, %v1192
  %v1194 = vpop.f32.mrb[0].mxu0
  %1195 = vmatprep.mubr.bf16.mxu0 %v660
  %1196 = vmatmul.mubr.bf16.gmra.mrb[0].mxu0 %v659
  %v1197 = vpop.f32.mrb[0].mxu0
  %v1198 = vadd.f32 0.0, %v1197
  %v1199 = vpop.f32.mrb[0].mxu0
  %v1200 = vpop.f32.mrb[0].mxu0
  %v1201 = vadd.f32 0.0, %v1200
  %v1202 = vpop.f32.mrb[0].mxu0
  %1203 = vmatprep.mubr.bf16.mxu0 %v664
  %1204 = vmatmul.mubr.bf16.gmra.mrb[0].mxu0 %v663
  %v1205 = vpop.f32.mrb[0].mxu0
  %v1206 = vadd.f32 0.0, %v1205
  %v1207 = vpop.f32.mrb[0].mxu0
  %v1208 = vpop.f32.mrb[0].mxu0
  %v1209 = vadd.f32 0.0, %v1208
  %v1210 = vpop.f32.mrb[0].mxu0
  %1211 = vmatprep.mubr.bf16.mxu0 %v668
  %1212 = vmatmul.mubr.bf16.gmra.mrb[0].mxu0 %v667
  %v1213 = vpop.f32.mrb[0].mxu0
  %v1214 = vadd.f32 0.0, %v1213
  %v1215 = vpop.f32.mrb[0].mxu0
  %v1216 = vpop.f32.mrb[0].mxu0
  %v1217 = vadd.f32 0.0, %v1216
  %v1218 = vpop.f32.mrb[0].mxu0
  %1219 = vmatprep.mubr.bf16.mxu0 %v672
  %1220 = vmatmul.mubr.bf16.gmra.mrb[0].mxu0 %v671
  %v1221 = vpop.f32.mrb[0].mxu0
  %v1222 = vadd.f32 0.0, %v1221
  %v1223 = vpop.f32.mrb[0].mxu0
  %v1224 = vpop.f32.mrb[0].mxu0
  %v1225 = vadd.f32 0.0, %v1224
  %v1226 = vpop.f32.mrb[0].mxu0
  %1227 = vmatprep.mubr.bf16.mxu0 %v676
  %1228 = vmatmul.mubr.bf16.gmra.mrb[0].mxu0 %v675
  %v1229 = vpop.f32.mrb[0].mxu0
  %v1230 = vadd.f32 0.0, %v1229
  %v1231 = vpop.f32.mrb[0].mxu0
  %v1232 = vpop.f32.mrb[0].mxu0
  %v1233 = vadd.f32 0.0, %v1232
  %v1234 = vpop.f32.mrb[0].mxu0
  %1235 = vmatprep.mubr.bf16.mxu0 %v680
  %1236 = vmatmul.mubr.bf16.gmra.mrb[0].mxu0 %v679
  %v1237 = vpop.f32.mrb[0].mxu0
  %v1238 = vadd.f32 0.0, %v1237
  %v1239 = vpop.f32.mrb[0].mxu0
  %v1240 = vpop.f32.mrb[0].mxu0
  %v1241 = vadd.f32 0.0, %v1240
  %v1242 = vpop.f32.mrb[0].mxu0
  %1243 = vmatprep.mubr.bf16.mxu0 %v684
  %1244 = vmatmul.mubr.bf16.gmra.mrb[0].mxu0 %v683
  %v1245 = vpop.f32.mrb[0].mxu0
  %v1246 = vadd.f32 0.0, %v1245
  %v1247 = vpop.f32.mrb[0].mxu0
  %v1248 = vpop.f32.mrb[0].mxu0
  %v1249 = vadd.f32 0.0, %v1248
  %v1250 = vpop.f32.mrb[0].mxu0
  %1251 = vmatprep.mubr.bf16.mxu0 %v688
  %1252 = vmatmul.mubr.bf16.gmra.mrb[0].mxu0 %v687
  %v1253 = vpop.f32.mrb[0].mxu0
  %v1254 = vadd.f32 0.0, %v1253
  %v1255 = vpop.f32.mrb[0].mxu0
  %v1256 = vpop.f32.mrb[0].mxu0
  %v1257 = vadd.f32 0.0, %v1256
  %v1258 = vpop.f32.mrb[0].mxu0
  %1259 = vmatprep.mubr.bf16.mxu0 %v692
  %1260 = vmatmul.mubr.bf16.gmra.mrb[0].mxu0 %v691
  %v1261 = vpop.f32.mrb[0].mxu0
  %v1262 = vadd.f32 0.0, %v1261
  %v1263 = vpop.f32.mrb[0].mxu0
  %v1264 = vpop.f32.mrb[0].mxu0
  %v1265 = vadd.f32 0.0, %v1264
  %v1266 = vpop.f32.mrb[0].mxu0
  %1267 = vmatprep.mubr.bf16.mxu0 %v696
  %1268 = vmatmul.mubr.bf16.gmra.mrb[0].mxu0 %v695
  %v1269 = vpop.f32.mrb[0].mxu0
  %v1270 = vadd.f32 0.0, %v1269
  %v1271 = vpop.f32.mrb[0].mxu0
  %v1272 = vpop.f32.mrb[0].mxu0
  %v1273 = vadd.f32 0.0, %v1272
  %v1274 = vpop.f32.mrb[0].mxu0
  %1275 = vmatprep.mubr.bf16.mxu0 %v700
  %1276 = vmatmul.mubr.bf16.gmra.mrb[0].mxu0 %v699
  %v1277 = vpop.f32.mrb[0].mxu0
  %v1278 = vadd.f32 0.0, %v1277
  %v1279 = vpop.f32.mrb[0].mxu0
  %v1280 = vpop.f32.mrb[0].mxu0
  %v1281 = vadd.f32 0.0, %v1280
  %v1282 = vpop.f32.mrb[0].mxu0
  %1283 = vmatprep.mubr.bf16.mxu0 %v704
  %1284 = vmatmul.mubr.bf16.gmra.mrb[0].mxu0 %v703
  %v1285 = vpop.f32.mrb[0].mxu0
  %v1286 = vadd.f32 0.0, %v1285
  %v1287 = vpop.f32.mrb[0].mxu0
  %v1288 = vpop.f32.mrb[0].mxu0
  %v1289 = vadd.f32 0.0, %v1288
  %v1290 = vpop.f32.mrb[0].mxu0
  %1291 = vmatprep.mubr.bf16.mxu0 %v708
  %1292 = vmatmul.mubr.bf16.gmra.mrb[0].mxu0 %v707
  %v1293 = vpop.f32.mrb[0].mxu0
  %v1294 = vadd.f32 0.0, %v1293
  %v1295 = vpop.f32.mrb[0].mxu0
  %v1296 = vpop.f32.mrb[0].mxu0
  %v1297 = vadd.f32 0.0, %v1296
  %v1298 = vpop.f32.mrb[0].mxu0
  %1299 = vmatprep.mubr.bf16.mxu0 %v712
  %1300 = vmatmul.mubr.bf16.gmra.mrb[0].mxu0 %v711
  %v1301 = vpop.f32.mrb[0].mxu0
  %v1302 = vadd.f32 0.0, %v1301
  %v1303 = vpop.f32.mrb[0].mxu0
  %v1304 = vpop.f32.mrb[0].mxu0
  %v1305 = vadd.f32 0.0, %v1304
  %v1306 = vpop.f32.mrb[0].mxu0
  %1307 = vmatprep.mubr.bf16.mxu0 %v716
  %1308 = vmatmul.mubr.bf16.gmra.mrb[0].mxu0 %v715
  %v1309 = vpop.f32.mrb[0].mxu0
  %v1310 = vadd.f32 0.0, %v1309
  %v1311 = vpop.f32.mrb[0].mxu0
  %v1312 = vpop.f32.mrb[0].mxu0
  %v1313 = vadd.f32 0.0, %v1312
  %v1314 = vpop.f32.mrb[0].mxu0
  %1315 = vmatprep.mubr.bf16.mxu0 %v720
  %1316 = vmatmul.mubr.bf16.gmra.mrb[0].mxu0 %v719
  %v1317 = vpop.f32.mrb[0].mxu0
  %v1318 = vadd.f32 0.0, %v1317
  %v1319 = vpop.f32.mrb[0].mxu0
  %v1320 = vpop.f32.mrb[0].mxu0
  %v1321 = vadd.f32 0.0, %v1320
  %v1322 = vpop.f32.mrb[0].mxu0
  %1323 = vmatprep.mubr.bf16.mxu0 %v724
  %1324 = vmatmul.mubr.bf16.gmra.mrb[0].mxu0 %v723
  %v1325 = vpop.f32.mrb[0].mxu0
  %v1326 = vadd.f32 0.0, %v1325
  %v1327 = vpop.f32.mrb[0].mxu0
  %v1328 = vpop.f32.mrb[0].mxu0
  %v1329 = vadd.f32 0.0, %v1328
  %v1330 = vpop.f32.mrb[0].mxu0
  %1331 = vmatprep.mubr.bf16.mxu0 %v728
  %1332 = vmatmul.mubr.bf16.gmra.mrb[0].mxu0 %v727
  %v1333 = vpop.f32.mrb[0].mxu0
  %v1334 = vadd.f32 0.0, %v1333
  %v1335 = vpop.f32.mrb[0].mxu0
  %v1336 = vpop.f32.mrb[0].mxu0
  %v1337 = vadd.f32 0.0, %v1336
  %v1338 = vpop.f32.mrb[0].mxu0
  %1339 = vdwg.mxu0
  %1340 = vmatprep.subr.bf16.mxu0 0
  %1341 = vmatpush1.bf16.msra.mxu0 %v1003
  %1342 = vmatprep.subr.bf16.mxu0 0
  %1343 = vmatpush1.bf16.msra.mxu0 %v1004
  %1344 = vmatprep.subr.bf16.mxu0 0
  %1345 = vmatpush1.bf16.msra.mxu0 %v1005
  %1346 = vmatprep.subr.bf16.mxu0 0
  %1347 = vmatpush1.bf16.msra.mxu0 %v1006
  %1348 = vmatprep.subr.bf16.mxu0 0
  %1349 = vmatpush1.bf16.msra.mxu0 %v1007
  %1350 = vmatprep.subr.bf16.mxu0 0
  %1351 = vmatpush1.bf16.msra.mxu0 %v1008
  %1352 = vmatprep.subr.bf16.mxu0 0
  %1353 = vmatpush1.bf16.msra.mxu0 %v1009
  %1354 = vmatprep.subr.bf16.mxu0 0
  %1355 = vmatpush1.bf16.msra.mxu0 %v1010
  %1356 = vmatprep.subr.bf16.mxu0 0
  %1357 = vmatpush1.bf16.msra.mxu0 %v1011
  %1358 = vmatprep.subr.bf16.mxu0 0
  %1359 = vmatpush1.bf16.msra.mxu0 %v1012
  %1360 = vmatprep.subr.bf16.mxu0 0
  %1361 = vmatpush1.bf16.msra.mxu0 %v1013
  %1362 = vmatprep.subr.bf16.mxu0 0
  %1363 = vmatpush1.bf16.msra.mxu0 %v1014
  %1364 = vmatprep.subr.bf16.mxu0 0
  %1365 = vmatpush1.bf16.msra.mxu0 %v1015
  %1366 = vmatprep.subr.bf16.mxu0 0
  %1367 = vmatpush1.bf16.msra.mxu0 %v1016
  %1368 = vmatprep.subr.bf16.mxu0 0
  %1369 = vmatpush1.bf16.msra.mxu0 %v1017
  %1370 = vmatprep.subr.bf16.mxu0 0
  %1371 = vmatpush1.bf16.msra.mxu0 %v1018
  %1372 = vmatprep.mubr.bf16.mxu0 %v606
  %1373 = vmatmul.mubr.bf16.gmra.mrb[0].mxu0 %v605
  %v1374 = vpop.f32.mrb[0].mxu0
  %v1375 = vadd.f32 %v1086, %v1374
  %v1376 = vpop.f32.mrb[0].mxu0
  %v1377 = vpop.f32.mrb[0].mxu0
  %v1378 = vadd.f32 %v1089, %v1377
  %v1379 = vpop.f32.mrb[0].mxu0
  %1380 = vmatprep.mubr.bf16.mxu0 %v610
  %1381 = vmatmul.mubr.bf16.gmra.mrb[0].mxu0 %v609
  %v1382 = vpop.f32.mrb[0].mxu0
  %v1383 = vadd.f32 %v1094, %v1382
  %v1384 = vpop.f32.mrb[0].mxu0
  %v1385 = vpop.f32.mrb[0].mxu0
  %v1386 = vadd.f32 %v1097, %v1385
  %v1387 = vpop.f32.mrb[0].mxu0
  %1388 = vmatprep.mubr.bf16.mxu0 %v614
  %1389 = vmatmul.mubr.bf16.gmra.mrb[0].mxu0 %v613
  %v1390 = vpop.f32.mrb[0].mxu0
  %v1391 = vadd.f32 %v1102, %v1390
  %v1392 = vpop.f32.mrb[0].mxu0
  %v1393 = vpop.f32.mrb[0].mxu0
  %v1394 = vadd.f32 %v1105, %v1393
  %v1395 = vpop.f32.mrb[0].mxu0
  %1396 = vmatprep.mubr.bf16.mxu0 %v618
  %1397 = vmatmul.mubr.bf16.gmra.mrb[0].mxu0 %v617
  %v1398 = vpop.f32.mrb[0].mxu0
  %v1399 = vadd.f32 %v1110, %v1398
  %v1400 = vpop.f32.mrb[0].mxu0
  %v1401 = vpop.f32.mrb[0].mxu0
  %v1402 = vadd.f32 %v1113, %v1401
  %v1403 = vpop.f32.mrb[0].mxu0
  %1404 = vmatprep.mubr.bf16.mxu0 %v622
  %1405 = vmatmul.mubr.bf16.gmra.mrb[0].mxu0 %v621
  %v1406 = vpop.f32.mrb[0].mxu0
  %v1407 = vadd.f32 %v1118, %v1406
  %v1408 = vpop.f32.mrb[0].mxu0
  %v1409 = vpop.f32.mrb[0].mxu0
  %v1410 = vadd.f32 %v1121, %v1409
  %v1411 = vpop.f32.mrb[0].mxu0
  %1412 = vmatprep.mubr.bf16.mxu0 %v626
  %1413 = vmatmul.mubr.bf16.gmra.mrb[0].mxu0 %v625
  %v1414 = vpop.f32.mrb[0].mxu0
  %v1415 = vadd.f32 %v1126, %v1414
  %v1416 = vpop.f32.mrb[0].mxu0
  %v1417 = vpop.f32.mrb[0].mxu0
  %v1418 = vadd.f32 %v1129, %v1417
  %v1419 = vpop.f32.mrb[0].mxu0
  %1420 = vmatprep.mubr.bf16.mxu0 %v630
  %1421 = vmatmul.mubr.bf16.gmra.mrb[0].mxu0 %v629
  %v1422 = vpop.f32.mrb[0].mxu0
  %v1423 = vadd.f32 %v1134, %v1422
  %v1424 = vpop.f32.mrb[0].mxu0
  %v1425 = vpop.f32.mrb[0].mxu0
  %v1426 = vadd.f32 %v1137, %v1425
  %v1427 = vpop.f32.mrb[0].mxu0
  %1428 = vmatprep.mubr.bf16.mxu0 %v634
  %1429 = vmatmul.mubr.bf16.gmra.mrb[0].mxu0 %v633
  %v1430 = vpop.f32.mrb[0].mxu0
  %v1431 = vadd.f32 %v1142, %v1430
  %v1432 = vpop.f32.mrb[0].mxu0
  %v1433 = vpop.f32.mrb[0].mxu0
  %v1434 = vadd.f32 %v1145, %v1433
  %v1435 = vpop.f32.mrb[0].mxu0
  %1436 = vmatprep.mubr.bf16.mxu0 %v638
  %1437 = vmatmul.mubr.bf16.gmra.mrb[0].mxu0 %v637
  %v1438 = vpop.f32.mrb[0].mxu0
  %v1439 = vadd.f32 %v1150, %v1438
  %v1440 = vpop.f32.mrb[0].mxu0
  %v1441 = vpop.f32.mrb[0].mxu0
  %v1442 = vadd.f32 %v1153, %v1441
  %v1443 = vpop.f32.mrb[0].mxu0
  %1444 = vmatprep.mubr.bf16.mxu0 %v642
  %1445 = vmatmul.mubr.bf16.gmra.mrb[0].mxu0 %v641
  %v1446 = vpop.f32.mrb[0].mxu0
  %v1447 = vadd.f32 %v1158, %v1446
  %v1448 = vpop.f32.mrb[0].mxu0
  %v1449 = vpop.f32.mrb[0].mxu0
  %v1450 = vadd.f32 %v1161, %v1449
  %v1451 = vpop.f32.mrb[0].mxu0
  %1452 = vmatprep.mubr.bf16.mxu0 %v646
  %1453 = vmatmul.mubr.bf16.gmra.mrb[0].mxu0 %v645
  %v1454 = vpop.f32.mrb[0].mxu0
  %v1455 = vadd.f32 %v1166, %v1454
  %v1456 = vpop.f32.mrb[0].mxu0
  %v1457 = vpop.f32.mrb[0].mxu0
  %v1458 = vadd.f32 %v1169, %v1457
  %v1459 = vpop.f32.mrb[0].mxu0
  %1460 = vmatprep.mubr.bf16.mxu0 %v650
  %1461 = vmatmul.mubr.bf16.gmra.mrb[0].mxu0 %v649
  %v1462 = vpop.f32.mrb[0].mxu0
  %v1463 = vadd.f32 %v1174, %v1462
  %v1464 = vpop.f32.mrb[0].mxu0
  %v1465 = vpop.f32.mrb[0].mxu0
  %v1466 = vadd.f32 %v1177, %v1465
  %v1467 = vpop.f32.mrb[0].mxu0
  %1468 = vmatprep.mubr.bf16.mxu0 %v654
  %1469 = vmatmul.mubr.bf16.gmra.mrb[0].mxu0 %v653
  %v1470 = vpop.f32.mrb[0].mxu0
  %v1471 = vadd.f32 %v1182, %v1470
  %v1472 = vpop.f32.mrb[0].mxu0
  %v1473 = vpop.f32.mrb[0].mxu0
  %v1474 = vadd.f32 %v1185, %v1473
  %v1475 = vpop.f32.mrb[0].mxu0
  %1476 = vmatprep.mubr.bf16.mxu0 %v658
  %1477 = vmatmul.mubr.bf16.gmra.mrb[0].mxu0 %v657
  %v1478 = vpop.f32.mrb[0].mxu0
  %v1479 = vadd.f32 %v1190, %v1478
  %v1480 = vpop.f32.mrb[0].mxu0
  %v1481 = vpop.f32.mrb[0].mxu0
  %v1482 = vadd.f32 %v1193, %v1481
  %v1483 = vpop.f32.mrb[0].mxu0
  %1484 = vmatprep.mubr.bf16.mxu0 %v662
  %1485 = vmatmul.mubr.bf16.gmra.mrb[0].mxu0 %v661
  %v1486 = vpop.f32.mrb[0].mxu0
  %v1487 = vadd.f32 %v1198, %v1486
  %v1488 = vpop.f32.mrb[0].mxu0
  %v1489 = vpop.f32.mrb[0].mxu0
  %v1490 = vadd.f32 %v1201, %v1489
  %v1491 = vpop.f32.mrb[0].mxu0
  %1492 = vmatprep.mubr.bf16.mxu0 %v666
  %1493 = vmatmul.mubr.bf16.gmra.mrb[0].mxu0 %v665
  %v1494 = vpop.f32.mrb[0].mxu0
  %v1495 = vadd.f32 %v1206, %v1494
  %v1496 = vpop.f32.mrb[0].mxu0
  %v1497 = vpop.f32.mrb[0].mxu0
  %v1498 = vadd.f32 %v1209, %v1497
  %v1499 = vpop.f32.mrb[0].mxu0
  %1500 = vmatprep.mubr.bf16.mxu0 %v670
  %1501 = vmatmul.mubr.bf16.gmra.mrb[0].mxu0 %v669
  %v1502 = vpop.f32.mrb[0].mxu0
  %v1503 = vadd.f32 %v1214, %v1502
  %v1504 = vpop.f32.mrb[0].mxu0
  %v1505 = vpop.f32.mrb[0].mxu0
  %v1506 = vadd.f32 %v1217, %v1505
  %v1507 = vpop.f32.mrb[0].mxu0
  %1508 = vmatprep.mubr.bf16.mxu0 %v674
  %1509 = vmatmul.mubr.bf16.gmra.mrb[0].mxu0 %v673
  %v1510 = vpop.f32.mrb[0].mxu0
  %v1511 = vadd.f32 %v1222, %v1510
  %v1512 = vpop.f32.mrb[0].mxu0
  %v1513 = vpop.f32.mrb[0].mxu0
  %v1514 = vadd.f32 %v1225, %v1513
  %v1515 = vpop.f32.mrb[0].mxu0
  %1516 = vmatprep.mubr.bf16.mxu0 %v678
  %1517 = vmatmul.mubr.bf16.gmra.mrb[0].mxu0 %v677
  %v1518 = vpop.f32.mrb[0].mxu0
  %v1519 = vadd.f32 %v1230, %v1518
  %v1520 = vpop.f32.mrb[0].mxu0
  %v1521 = vpop.f32.mrb[0].mxu0
  %v1522 = vadd.f32 %v1233, %v1521
  %v1523 = vpop.f32.mrb[0].mxu0
  %1524 = vmatprep.mubr.bf16.mxu0 %v682
  %1525 = vmatmul.mubr.bf16.gmra.mrb[0].mxu0 %v681
  %v1526 = vpop.f32.mrb[0].mxu0
  %v1527 = vadd.f32 %v1238, %v1526
  %v1528 = vpop.f32.mrb[0].mxu0
  %v1529 = vpop.f32.mrb[0].mxu0
  %v1530 = vadd.f32 %v1241, %v1529
  %v1531 = vpop.f32.mrb[0].mxu0
  %1532 = vmatprep.mubr.bf16.mxu0 %v686
  %1533 = vmatmul.mubr.bf16.gmra.mrb[0].mxu0 %v685
  %v1534 = vpop.f32.mrb[0].mxu0
  %v1535 = vadd.f32 %v1246, %v1534
  %v1536 = vpop.f32.mrb[0].mxu0
  %v1537 = vpop.f32.mrb[0].mxu0
  %v1538 = vadd.f32 %v1249, %v1537
  %v1539 = vpop.f32.mrb[0].mxu0
  %1540 = vmatprep.mubr.bf16.mxu0 %v690
  %1541 = vmatmul.mubr.bf16.gmra.mrb[0].mxu0 %v689
  %v1542 = vpop.f32.mrb[0].mxu0
  %v1543 = vadd.f32 %v1254, %v1542
  %v1544 = vpop.f32.mrb[0].mxu0
  %v1545 = vpop.f32.mrb[0].mxu0
  %v1546 = vadd.f32 %v1257, %v1545
  %v1547 = vpop.f32.mrb[0].mxu0
  %1548 = vmatprep.mubr.bf16.mxu0 %v694
  %1549 = vmatmul.mubr.bf16.gmra.mrb[0].mxu0 %v693
  %v1550 = vpop.f32.mrb[0].mxu0
  %v1551 = vadd.f32 %v1262, %v1550
  %v1552 = vpop.f32.mrb[0].mxu0
  %v1553 = vpop.f32.mrb[0].mxu0
  %v1554 = vadd.f32 %v1265, %v1553
  %v1555 = vpop.f32.mrb[0].mxu0
  %1556 = vmatprep.mubr.bf16.mxu0 %v698
  %1557 = vmatmul.mubr.bf16.gmra.mrb[0].mxu0 %v697
  %v1558 = vpop.f32.mrb[0].mxu0
  %v1559 = vadd.f32 %v1270, %v1558
  %v1560 = vpop.f32.mrb[0].mxu0
  %v1561 = vpop.f32.mrb[0].mxu0
  %v1562 = vadd.f32 %v1273, %v1561
  %v1563 = vpop.f32.mrb[0].mxu0
  %1564 = vmatprep.mubr.bf16.mxu0 %v702
  %1565 = vmatmul.mubr.bf16.gmra.mrb[0].mxu0 %v701
  %v1566 = vpop.f32.mrb[0].mxu0
  %v1567 = vadd.f32 %v1278, %v1566
  %v1568 = vpop.f32.mrb[0].mxu0
  %v1569 = vpop.f32.mrb[0].mxu0
  %v1570 = vadd.f32 %v1281, %v1569
  %v1571 = vpop.f32.mrb[0].mxu0
  %1572 = vmatprep.mubr.bf16.mxu0 %v706
  %1573 = vmatmul.mubr.bf16.gmra.mrb[0].mxu0 %v705
  %v1574 = vpop.f32.mrb[0].mxu0
  %v1575 = vadd.f32 %v1286, %v1574
  %v1576 = vpop.f32.mrb[0].mxu0
  %v1577 = vpop.f32.mrb[0].mxu0
  %v1578 = vadd.f32 %v1289, %v1577
  %v1579 = vpop.f32.mrb[0].mxu0
  %1580 = vmatprep.mubr.bf16.mxu0 %v710
  %1581 = vmatmul.mubr.bf16.gmra.mrb[0].mxu0 %v709
  %v1582 = vpop.f32.mrb[0].mxu0
  %v1583 = vadd.f32 %v1294, %v1582
  %v1584 = vpop.f32.mrb[0].mxu0
  %v1585 = vpop.f32.mrb[0].mxu0
  %v1586 = vadd.f32 %v1297, %v1585
  %v1587 = vpop.f32.mrb[0].mxu0
  %1588 = vmatprep.mubr.bf16.mxu0 %v714
  %1589 = vmatmul.mubr.bf16.gmra.mrb[0].mxu0 %v713
  %v1590 = vpop.f32.mrb[0].mxu0
  %v1591 = vadd.f32 %v1302, %v1590
  %v1592 = vpop.f32.mrb[0].mxu0
  %v1593 = vpop.f32.mrb[0].mxu0
  %v1594 = vadd.f32 %v1305, %v1593
  %v1595 = vpop.f32.mrb[0].mxu0
  %1596 = vmatprep.mubr.bf16.mxu0 %v718
  %1597 = vmatmul.mubr.bf16.gmra.mrb[0].mxu0 %v717
  %v1598 = vpop.f32.mrb[0].mxu0
  %v1599 = vadd.f32 %v1310, %v1598
  %v1600 = vpop.f32.mrb[0].mxu0
  %v1601 = vpop.f32.mrb[0].mxu0
  %v1602 = vadd.f32 %v1313, %v1601
  %v1603 = vpop.f32.mrb[0].mxu0
  %1604 = vmatprep.mubr.bf16.mxu0 %v722
  %1605 = vmatmul.mubr.bf16.gmra.mrb[0].mxu0 %v721
  %v1606 = vpop.f32.mrb[0].mxu0
  %v1607 = vadd.f32 %v1318, %v1606
  %v1608 = vpop.f32.mrb[0].mxu0
  %v1609 = vpop.f32.mrb[0].mxu0
  %v1610 = vadd.f32 %v1321, %v1609
  %v1611 = vpop.f32.mrb[0].mxu0
  %1612 = vmatprep.mubr.bf16.mxu0 %v726
  %1613 = vmatmul.mubr.bf16.gmra.mrb[0].mxu0 %v725
  %v1614 = vpop.f32.mrb[0].mxu0
  %v1615 = vadd.f32 %v1326, %v1614
  %v1616 = vpop.f32.mrb[0].mxu0
  %v1617 = vpop.f32.mrb[0].mxu0
  %v1618 = vadd.f32 %v1329, %v1617
  %v1619 = vpop.f32.mrb[0].mxu0
  %1620 = vmatprep.mubr.bf16.mxu0 %v730
  %1621 = vmatmul.mubr.bf16.gmra.mrb[0].mxu0 %v729
  %v1622 = vpop.f32.mrb[0].mxu0
  %v1623 = vadd.f32 %v1334, %v1622
  %v1624 = vpop.f32.mrb[0].mxu0
  %v1625 = vpop.f32.mrb[0].mxu0
  %v1626 = vadd.f32 %v1337, %v1625
  %v1627 = vpop.f32.mrb[0].mxu0
  %1628 = vdwg.mxu0
  %v1629 = vpack.c.bf16 %v1378, %v1375
  %v1630 = vpack.c.bf16 %v1386, %v1383
  %v1631 = vpack.c.bf16 %v1394, %v1391
  %v1632 = vpack.c.bf16 %v1402, %v1399
  %v1633 = vpack.c.bf16 %v1410, %v1407
  %v1634 = vpack.c.bf16 %v1418, %v1415
  %v1635 = vpack.c.bf16 %v1426, %v1423
  %v1636 = vpack.c.bf16 %v1434, %v1431
  %v1637 = vpack.c.bf16 %v1442, %v1439
  %v1638 = vpack.c.bf16 %v1450, %v1447
  %v1639 = vpack.c.bf16 %v1458, %v1455
  %v1640 = vpack.c.bf16 %v1466, %v1463
  %v1641 = vpack.c.bf16 %v1474, %v1471
  %v1642 = vpack.c.bf16 %v1482, %v1479
  %v1643 = vpack.c.bf16 %v1490, %v1487
  %v1644 = vpack.c.bf16 %v1498, %v1495
  %v1645 = vpack.c.bf16 %v1506, %v1503
  %v1646 = vpack.c.bf16 %v1514, %v1511
  %v1647 = vpack.c.bf16 %v1522, %v1519
  %v1648 = vpack.c.bf16 %v1530, %v1527
  %v1649 = vpack.c.bf16 %v1538, %v1535
  %v1650 = vpack.c.bf16 %v1546, %v1543
  %v1651 = vpack.c.bf16 %v1554, %v1551
  %v1652 = vpack.c.bf16 %v1562, %v1559
  %v1653 = vpack.c.bf16 %v1570, %v1567
  %v1654 = vpack.c.bf16 %v1578, %v1575
  %v1655 = vpack.c.bf16 %v1586, %v1583
  %v1656 = vpack.c.bf16 %v1594, %v1591
  %v1657 = vpack.c.bf16 %v1602, %v1599
  %v1658 = vpack.c.bf16 %v1610, %v1607
  %v1659 = vpack.c.bf16 %v1618, %v1615
  %v1660 = vpack.c.bf16 %v1626, %v1623
  %v1661 = vld [vmem:[%s2] sm:$0xf]
  %v1662 = vld [vmem:[%s2 + $0x4] sm:$0xf]
  %v1663 = vld [vmem:[%s2 + $0x8] sm:$0xf]
  %v1664 = vld [vmem:[%s2 + $0xc] sm:$0xf]
  %v1665 = vld [vmem:[%s2 + $0x10] sm:$0xf]
  %v1666 = vld [vmem:[%s2 + $0x14] sm:$0xf]
  %v1667 = vld [vmem:[%s2 + $0x18] sm:$0xf]
  %v1668 = vld [vmem:[%s2 + $0x1c] sm:$0xf]
  %v1669 = vld [vmem:[%s2 + $0x20] sm:$0xf]
  %v1670 = vld [vmem:[%s2 + $0x24] sm:$0xf]
  %v1671 = vld [vmem:[%s2 + $0x28] sm:$0xf]
  %v1672 = vld [vmem:[%s2 + $0x2c] sm:$0xf]
  %v1673 = vld [vmem:[%s2 + $0x30] sm:$0xf]
  %v1674 = vld [vmem:[%s2 + $0x34] sm:$0xf]
  %v1675 = vld [vmem:[%s2 + $0x38] sm:$0xf]
  %v1676 = vld [vmem:[%s2 + $0x3c] sm:$0xf]
  %v1677 = vld [vmem:[%s3] sm:$0x1]
  %v1679 = vlaneseq
  %v1680 = vshrl.u32 %v1679, 7
  %v1681 = vsub.s32 0, %v1680
  %v1682 = vrot.slane %v1677, %v1681
  %v1700 = vunpack.c.l.b16 %v1661
  %v1701 = vunpack.c.l.b16 %v1662
  %v1702 = vunpack.c.l.b16 %v1663
  %v1703 = vunpack.c.l.b16 %v1664
  %v1704 = vunpack.c.l.b16 %v1665
  %v1705 = vunpack.c.l.b16 %v1666
  %v1706 = vunpack.c.l.b16 %v1667
  %v1707 = vunpack.c.l.b16 %v1668
  %v1708 = vunpack.c.l.b16 %v1669
  %v1709 = vunpack.c.l.b16 %v1670
  %v1710 = vunpack.c.l.b16 %v1671
  %v1711 = vunpack.c.l.b16 %v1672
  %v1712 = vunpack.c.l.b16 %v1673
  %v1713 = vunpack.c.l.b16 %v1674
  %v1714 = vunpack.c.l.b16 %v1675
  %v1715 = vunpack.c.l.b16 %v1676
  %v1716 = vpack.c.b16 %v1701, %v1700
  %v1717 = vpack.c.b16 %v1703, %v1702
  %v1718 = vpack.c.b16 %v1705, %v1704
  %v1719 = vpack.c.b16 %v1707, %v1706
  %v1720 = vpack.c.b16 %v1709, %v1708
  %v1721 = vpack.c.b16 %v1711, %v1710
  %v1722 = vpack.c.b16 %v1713, %v1712
  %v1723 = vpack.c.b16 %v1715, %v1714
  %1732 = vmatprep.subr.bf16.mxu0 0
  %1733 = vmatpush1.bf16.msra.mxu0 %v1716
  %1734 = vmatprep.subr.bf16.mxu0 0
  %1735 = vmatpush1.bf16.msra.mxu0 %v1717
  %1736 = vmatprep.subr.bf16.mxu0 0
  %1737 = vmatpush1.bf16.msra.mxu0 %v1718
  %1738 = vmatprep.subr.bf16.mxu0 0
  %1739 = vmatpush1.bf16.msra.mxu0 %v1719
  %1740 = vmatprep.subr.bf16.mxu0 0
  %1741 = vmatpush1.bf16.msra.mxu0 %v1720
  %1742 = vmatprep.subr.bf16.mxu0 0
  %1743 = vmatpush1.bf16.msra.mxu0 %v1721
  %1744 = vmatprep.subr.bf16.mxu0 0
  %1745 = vmatpush1.bf16.msra.mxu0 %v1722
  %1746 = vmatprep.subr.bf16.mxu0 0
  %1747 = vmatpush1.bf16.msra.mxu0 %v1723
  %1748 = vmatprep.subr.bf16.mxu0 0
  %1749 = vmatpush1.bf16.msra.mxu0 0
  %1750 = vmatprep.subr.bf16.mxu0 0
  %1751 = vmatpush1.bf16.msra.mxu0 0
  %1752 = vmatprep.subr.bf16.mxu0 0
  %1753 = vmatpush1.bf16.msra.mxu0 0
  %1754 = vmatprep.subr.bf16.mxu0 0
  %1755 = vmatpush1.bf16.msra.mxu0 0
  %1756 = vmatprep.subr.bf16.mxu0 0
  %1757 = vmatpush1.bf16.msra.mxu0 0
  %1758 = vmatprep.subr.bf16.mxu0 0
  %1759 = vmatpush1.bf16.msra.mxu0 0
  %1760 = vmatprep.subr.bf16.mxu0 0
  %1761 = vmatpush1.bf16.msra.mxu0 0
  %1762 = vmatprep.subr.bf16.mxu0 0
  %1763 = vmatpush1.bf16.msra.mxu0 0
  %1764 = vmatprep.mubr.bf16.mxu0 0
  %1765 = vmatmul.mubr.bf16.gmra.mrb[0].mxu0 %v1629
  %v1766 = vpop.f32.mrb[0].mxu0
  %v1767 = vadd.f32 %v1682, %v1766
  %v1768 = vpop.f32.mrb[0].mxu0
  %v1769 = vpop.f32.mrb[0].mxu0
  %v1770 = vadd.f32 %v1682, %v1769
  %v1771 = vpop.f32.mrb[0].mxu0
  %1772 = vmatprep.mubr.bf16.mxu0 0
  %1773 = vmatmul.mubr.bf16.gmra.mrb[0].mxu0 %v1630
  %v1774 = vpop.f32.mrb[0].mxu0
  %v1775 = vadd.f32 %v1682, %v1774
  %v1776 = vpop.f32.mrb[0].mxu0
  %v1777 = vpop.f32.mrb[0].mxu0
  %v1778 = vadd.f32 %v1682, %v1777
  %v1779 = vpop.f32.mrb[0].mxu0
  %1780 = vmatprep.mubr.bf16.mxu0 0
  %1781 = vmatmul.mubr.bf16.gmra.mrb[0].mxu0 %v1631
  %v1782 = vpop.f32.mrb[0].mxu0
  %v1783 = vadd.f32 %v1682, %v1782
  %v1784 = vpop.f32.mrb[0].mxu0
  %v1785 = vpop.f32.mrb[0].mxu0
  %v1786 = vadd.f32 %v1682, %v1785
  %v1787 = vpop.f32.mrb[0].mxu0
  %1788 = vmatprep.mubr.bf16.mxu0 0
  %1789 = vmatmul.mubr.bf16.gmra.mrb[0].mxu0 %v1632
  %v1790 = vpop.f32.mrb[0].mxu0
  %v1791 = vadd.f32 %v1682, %v1790
  %v1792 = vpop.f32.mrb[0].mxu0
  %v1793 = vpop.f32.mrb[0].mxu0
  %v1794 = vadd.f32 %v1682, %v1793
  %v1795 = vpop.f32.mrb[0].mxu0
  %1796 = vmatprep.mubr.bf16.mxu0 0
  %1797 = vmatmul.mubr.bf16.gmra.mrb[0].mxu0 %v1633
  %v1798 = vpop.f32.mrb[0].mxu0
  %v1799 = vadd.f32 %v1682, %v1798
  %v1800 = vpop.f32.mrb[0].mxu0
  %v1801 = vpop.f32.mrb[0].mxu0
  %v1802 = vadd.f32 %v1682, %v1801
  %v1803 = vpop.f32.mrb[0].mxu0
  %1804 = vmatprep.mubr.bf16.mxu0 0
  %1805 = vmatmul.mubr.bf16.gmra.mrb[0].mxu0 %v1634
  %v1806 = vpop.f32.mrb[0].mxu0
  %v1807 = vadd.f32 %v1682, %v1806
  %v1808 = vpop.f32.mrb[0].mxu0
  %v1809 = vpop.f32.mrb[0].mxu0
  %v1810 = vadd.f32 %v1682, %v1809
  %v1811 = vpop.f32.mrb[0].mxu0
  %1812 = vmatprep.mubr.bf16.mxu0 0
  %1813 = vmatmul.mubr.bf16.gmra.mrb[0].mxu0 %v1635
  %v1814 = vpop.f32.mrb[0].mxu0
  %v1815 = vadd.f32 %v1682, %v1814
  %v1816 = vpop.f32.mrb[0].mxu0
  %v1817 = vpop.f32.mrb[0].mxu0
  %v1818 = vadd.f32 %v1682, %v1817
  %v1819 = vpop.f32.mrb[0].mxu0
  %1820 = vmatprep.mubr.bf16.mxu0 0
  %1821 = vmatmul.mubr.bf16.gmra.mrb[0].mxu0 %v1636
  %v1822 = vpop.f32.mrb[0].mxu0
  %v1823 = vadd.f32 %v1682, %v1822
  %v1824 = vpop.f32.mrb[0].mxu0
  %v1825 = vpop.f32.mrb[0].mxu0
  %v1826 = vadd.f32 %v1682, %v1825
  %v1827 = vpop.f32.mrb[0].mxu0
  %1828 = vmatprep.mubr.bf16.mxu0 0
  %1829 = vmatmul.mubr.bf16.gmra.mrb[0].mxu0 %v1637
  %v1830 = vpop.f32.mrb[0].mxu0
  %v1831 = vadd.f32 %v1682, %v1830
  %v1832 = vpop.f32.mrb[0].mxu0
  %v1833 = vpop.f32.mrb[0].mxu0
  %v1834 = vadd.f32 %v1682, %v1833
  %v1835 = vpop.f32.mrb[0].mxu0
  %1836 = vmatprep.mubr.bf16.mxu0 0
  %1837 = vmatmul.mubr.bf16.gmra.mrb[0].mxu0 %v1638
  %v1838 = vpop.f32.mrb[0].mxu0
  %v1839 = vadd.f32 %v1682, %v1838
  %v1840 = vpop.f32.mrb[0].mxu0
  %v1841 = vpop.f32.mrb[0].mxu0
  %v1842 = vadd.f32 %v1682, %v1841
  %v1843 = vpop.f32.mrb[0].mxu0
  %1844 = vmatprep.mubr.bf16.mxu0 0
  %1845 = vmatmul.mubr.bf16.gmra.mrb[0].mxu0 %v1639
  %v1846 = vpop.f32.mrb[0].mxu0
  %v1847 = vadd.f32 %v1682, %v1846
  %v1848 = vpop.f32.mrb[0].mxu0
  %v1849 = vpop.f32.mrb[0].mxu0
  %v1850 = vadd.f32 %v1682, %v1849
  %v1851 = vpop.f32.mrb[0].mxu0
  %1852 = vmatprep.mubr.bf16.mxu0 0
  %1853 = vmatmul.mubr.bf16.gmra.mrb[0].mxu0 %v1640
  %v1854 = vpop.f32.mrb[0].mxu0
  %v1855 = vadd.f32 %v1682, %v1854
  %v1856 = vpop.f32.mrb[0].mxu0
  %v1857 = vpop.f32.mrb[0].mxu0
  %v1858 = vadd.f32 %v1682, %v1857
  %v1859 = vpop.f32.mrb[0].mxu0
  %1860 = vmatprep.mubr.bf16.mxu0 0
  %1861 = vmatmul.mubr.bf16.gmra.mrb[0].mxu0 %v1641
  %v1862 = vpop.f32.mrb[0].mxu0
  %v1863 = vadd.f32 %v1682, %v1862
  %v1864 = vpop.f32.mrb[0].mxu0
  %v1865 = vpop.f32.mrb[0].mxu0
  %v1866 = vadd.f32 %v1682, %v1865
  %v1867 = vpop.f32.mrb[0].mxu0
  %1868 = vmatprep.mubr.bf16.mxu0 0
  %1869 = vmatmul.mubr.bf16.gmra.mrb[0].mxu0 %v1642
  %v1870 = vpop.f32.mrb[0].mxu0
  %v1871 = vadd.f32 %v1682, %v1870
  %v1872 = vpop.f32.mrb[0].mxu0
  %v1873 = vpop.f32.mrb[0].mxu0
  %v1874 = vadd.f32 %v1682, %v1873
  %v1875 = vpop.f32.mrb[0].mxu0
  %1876 = vmatprep.mubr.bf16.mxu0 0
  %1877 = vmatmul.mubr.bf16.gmra.mrb[0].mxu0 %v1643
  %v1878 = vpop.f32.mrb[0].mxu0
  %v1879 = vadd.f32 %v1682, %v1878
  %v1880 = vpop.f32.mrb[0].mxu0
  %v1881 = vpop.f32.mrb[0].mxu0
  %v1882 = vadd.f32 %v1682, %v1881
  %v1883 = vpop.f32.mrb[0].mxu0
  %1884 = vmatprep.mubr.bf16.mxu0 0
  %1885 = vmatmul.mubr.bf16.gmra.mrb[0].mxu0 %v1644
  %v1886 = vpop.f32.mrb[0].mxu0
  %v1887 = vadd.f32 %v1682, %v1886
  %v1888 = vpop.f32.mrb[0].mxu0
  %v1889 = vpop.f32.mrb[0].mxu0
  %v1890 = vadd.f32 %v1682, %v1889
  %v1891 = vpop.f32.mrb[0].mxu0
  %1892 = vmatprep.mubr.bf16.mxu0 0
  %1893 = vmatmul.mubr.bf16.gmra.mrb[0].mxu0 %v1645
  %v1894 = vpop.f32.mrb[0].mxu0
  %v1895 = vadd.f32 %v1682, %v1894
  %v1896 = vpop.f32.mrb[0].mxu0
  %v1897 = vpop.f32.mrb[0].mxu0
  %v1898 = vadd.f32 %v1682, %v1897
  %v1899 = vpop.f32.mrb[0].mxu0
  %1900 = vmatprep.mubr.bf16.mxu0 0
  %1901 = vmatmul.mubr.bf16.gmra.mrb[0].mxu0 %v1646
  %v1902 = vpop.f32.mrb[0].mxu0
  %v1903 = vadd.f32 %v1682, %v1902
  %v1904 = vpop.f32.mrb[0].mxu0
  %v1905 = vpop.f32.mrb[0].mxu0
  %v1906 = vadd.f32 %v1682, %v1905
  %v1907 = vpop.f32.mrb[0].mxu0
  %1908 = vmatprep.mubr.bf16.mxu0 0
  %1909 = vmatmul.mubr.bf16.gmra.mrb[0].mxu0 %v1647
  %v1910 = vpop.f32.mrb[0].mxu0
  %v1911 = vadd.f32 %v1682, %v1910
  %v1912 = vpop.f32.mrb[0].mxu0
  %v1913 = vpop.f32.mrb[0].mxu0
  %v1914 = vadd.f32 %v1682, %v1913
  %v1915 = vpop.f32.mrb[0].mxu0
  %1916 = vmatprep.mubr.bf16.mxu0 0
  %1917 = vmatmul.mubr.bf16.gmra.mrb[0].mxu0 %v1648
  %v1918 = vpop.f32.mrb[0].mxu0
  %v1919 = vadd.f32 %v1682, %v1918
  %v1920 = vpop.f32.mrb[0].mxu0
  %v1921 = vpop.f32.mrb[0].mxu0
  %v1922 = vadd.f32 %v1682, %v1921
  %v1923 = vpop.f32.mrb[0].mxu0
  %1924 = vmatprep.mubr.bf16.mxu0 0
  %1925 = vmatmul.mubr.bf16.gmra.mrb[0].mxu0 %v1649
  %v1926 = vpop.f32.mrb[0].mxu0
  %v1927 = vadd.f32 %v1682, %v1926
  %v1928 = vpop.f32.mrb[0].mxu0
  %v1929 = vpop.f32.mrb[0].mxu0
  %v1930 = vadd.f32 %v1682, %v1929
  %v1931 = vpop.f32.mrb[0].mxu0
  %1932 = vmatprep.mubr.bf16.mxu0 0
  %1933 = vmatmul.mubr.bf16.gmra.mrb[0].mxu0 %v1650
  %v1934 = vpop.f32.mrb[0].mxu0
  %v1935 = vadd.f32 %v1682, %v1934
  %v1936 = vpop.f32.mrb[0].mxu0
  %v1937 = vpop.f32.mrb[0].mxu0
  %v1938 = vadd.f32 %v1682, %v1937
  %v1939 = vpop.f32.mrb[0].mxu0
  %1940 = vmatprep.mubr.bf16.mxu0 0
  %1941 = vmatmul.mubr.bf16.gmra.mrb[0].mxu0 %v1651
  %v1942 = vpop.f32.mrb[0].mxu0
  %v1943 = vadd.f32 %v1682, %v1942
  %v1944 = vpop.f32.mrb[0].mxu0
  %v1945 = vpop.f32.mrb[0].mxu0
  %v1946 = vadd.f32 %v1682, %v1945
  %v1947 = vpop.f32.mrb[0].mxu0
  %1948 = vmatprep.mubr.bf16.mxu0 0
  %1949 = vmatmul.mubr.bf16.gmra.mrb[0].mxu0 %v1652
  %v1950 = vpop.f32.mrb[0].mxu0
  %v1951 = vadd.f32 %v1682, %v1950
  %v1952 = vpop.f32.mrb[0].mxu0
  %v1953 = vpop.f32.mrb[0].mxu0
  %v1954 = vadd.f32 %v1682, %v1953
  %v1955 = vpop.f32.mrb[0].mxu0
  %1956 = vmatprep.mubr.bf16.mxu0 0
  %1957 = vmatmul.mubr.bf16.gmra.mrb[0].mxu0 %v1653
  %v1958 = vpop.f32.mrb[0].mxu0
  %v1959 = vadd.f32 %v1682, %v1958
  %v1960 = vpop.f32.mrb[0].mxu0
  %v1961 = vpop.f32.mrb[0].mxu0
  %v1962 = vadd.f32 %v1682, %v1961
  %v1963 = vpop.f32.mrb[0].mxu0
  %1964 = vmatprep.mubr.bf16.mxu0 0
  %1965 = vmatmul.mubr.bf16.gmra.mrb[0].mxu0 %v1654
  %v1966 = vpop.f32.mrb[0].mxu0
  %v1967 = vadd.f32 %v1682, %v1966
  %v1968 = vpop.f32.mrb[0].mxu0
  %v1969 = vpop.f32.mrb[0].mxu0
  %v1970 = vadd.f32 %v1682, %v1969
  %v1971 = vpop.f32.mrb[0].mxu0
  %1972 = vmatprep.mubr.bf16.mxu0 0
  %1973 = vmatmul.mubr.bf16.gmra.mrb[0].mxu0 %v1655
  %v1974 = vpop.f32.mrb[0].mxu0
  %v1975 = vadd.f32 %v1682, %v1974
  %v1976 = vpop.f32.mrb[0].mxu0
  %v1977 = vpop.f32.mrb[0].mxu0
  %v1978 = vadd.f32 %v1682, %v1977
  %v1979 = vpop.f32.mrb[0].mxu0
  %1980 = vmatprep.mubr.bf16.mxu0 0
  %1981 = vmatmul.mubr.bf16.gmra.mrb[0].mxu0 %v1656
  %v1982 = vpop.f32.mrb[0].mxu0
  %v1983 = vadd.f32 %v1682, %v1982
  %v1984 = vpop.f32.mrb[0].mxu0
  %v1985 = vpop.f32.mrb[0].mxu0
  %v1986 = vadd.f32 %v1682, %v1985
  %v1987 = vpop.f32.mrb[0].mxu0
  %1988 = vmatprep.mubr.bf16.mxu0 0
  %1989 = vmatmul.mubr.bf16.gmra.mrb[0].mxu0 %v1657
  %v1990 = vpop.f32.mrb[0].mxu0
  %v1991 = vadd.f32 %v1682, %v1990
  %v1992 = vpop.f32.mrb[0].mxu0
  %v1993 = vpop.f32.mrb[0].mxu0
  %v1994 = vadd.f32 %v1682, %v1993
  %v1995 = vpop.f32.mrb[0].mxu0
  %1996 = vmatprep.mubr.bf16.mxu0 0
  %1997 = vmatmul.mubr.bf16.gmra.mrb[0].mxu0 %v1658
  %v1998 = vpop.f32.mrb[0].mxu0
  %v1999 = vadd.f32 %v1682, %v1998
  %v2000 = vpop.f32.mrb[0].mxu0
  %v2001 = vpop.f32.mrb[0].mxu0
  %v2002 = vadd.f32 %v1682, %v2001
  %v2003 = vpop.f32.mrb[0].mxu0
  %2004 = vmatprep.mubr.bf16.mxu0 0
  %2005 = vmatmul.mubr.bf16.gmra.mrb[0].mxu0 %v1659
  %v2006 = vpop.f32.mrb[0].mxu0
  %v2007 = vadd.f32 %v1682, %v2006
  %v2008 = vpop.f32.mrb[0].mxu0
  %v2009 = vpop.f32.mrb[0].mxu0
  %v2010 = vadd.f32 %v1682, %v2009
  %v2011 = vpop.f32.mrb[0].mxu0
  %2012 = vmatprep.mubr.bf16.mxu0 0
  %2013 = vmatmul.mubr.bf16.gmra.mrb[0].mxu0 %v1660
  %v2014 = vpop.f32.mrb[0].mxu0
  %v2015 = vadd.f32 %v1682, %v2014
  %v2016 = vpop.f32.mrb[0].mxu0
  %v2017 = vpop.f32.mrb[0].mxu0
  %v2018 = vadd.f32 %v1682, %v2017
  %v2019 = vpop.f32.mrb[0].mxu0
  %2020 = vdwg.mxu0
  %v2021 = vmax.f32 %v1767, 0.0
  %v2022 = vmax.f32 %v1770, 0.0
  %v2023 = vmax.f32 %v1775, 0.0
  %v2024 = vmax.f32 %v1778, 0.0
  %v2025 = vmax.f32 %v1783, 0.0
  %v2026 = vmax.f32 %v1786, 0.0
  %v2027 = vmax.f32 %v1791, 0.0
  %v2028 = vmax.f32 %v1794, 0.0
  %v2029 = vmax.f32 %v1799, 0.0
  %v2030 = vmax.f32 %v1802, 0.0
  %v2031 = vmax.f32 %v1807, 0.0
  %v2032 = vmax.f32 %v1810, 0.0
  %v2033 = vmax.f32 %v1815, 0.0
  %v2034 = vmax.f32 %v1818, 0.0
  %v2035 = vmax.f32 %v1823, 0.0
  %v2036 = vmax.f32 %v1826, 0.0
  %v2037 = vmax.f32 %v1831, 0.0
  %v2038 = vmax.f32 %v1834, 0.0
  %v2039 = vmax.f32 %v1839, 0.0
  %v2040 = vmax.f32 %v1842, 0.0
  %v2041 = vmax.f32 %v1847, 0.0
  %v2042 = vmax.f32 %v1850, 0.0
  %v2043 = vmax.f32 %v1855, 0.0
  %v2044 = vmax.f32 %v1858, 0.0
  %v2045 = vmax.f32 %v1863, 0.0
  %v2046 = vmax.f32 %v1866, 0.0
  %v2047 = vmax.f32 %v1871, 0.0
  %v2048 = vmax.f32 %v1874, 0.0
  %v2049 = vmax.f32 %v1879, 0.0
  %v2050 = vmax.f32 %v1882, 0.0
  %v2051 = vmax.f32 %v1887, 0.0
  %v2052 = vmax.f32 %v1890, 0.0
  %v2053 = vmax.f32 %v1895, 0.0
  %v2054 = vmax.f32 %v1898, 0.0
  %v2055 = vmax.f32 %v1903, 0.0
  %v2056 = vmax.f32 %v1906, 0.0
  %v2057 = vmax.f32 %v1911, 0.0
  %v2058 = vmax.f32 %v1914, 0.0
  %v2059 = vmax.f32 %v1919, 0.0
  %v2060 = vmax.f32 %v1922, 0.0
  %v2061 = vmax.f32 %v1927, 0.0
  %v2062 = vmax.f32 %v1930, 0.0
  %v2063 = vmax.f32 %v1935, 0.0
  %v2064 = vmax.f32 %v1938, 0.0
  %v2065 = vmax.f32 %v1943, 0.0
  %v2066 = vmax.f32 %v1946, 0.0
  %v2067 = vmax.f32 %v1951, 0.0
  %v2068 = vmax.f32 %v1954, 0.0
  %v2069 = vmax.f32 %v1959, 0.0
  %v2070 = vmax.f32 %v1962, 0.0
  %v2071 = vmax.f32 %v1967, 0.0
  %v2072 = vmax.f32 %v1970, 0.0
  %v2073 = vmax.f32 %v1975, 0.0
  %v2074 = vmax.f32 %v1978, 0.0
  %v2075 = vmax.f32 %v1983, 0.0
  %v2076 = vmax.f32 %v1986, 0.0
  %v2077 = vmax.f32 %v1991, 0.0
  %v2078 = vmax.f32 %v1994, 0.0
  %v2079 = vmax.f32 %v1999, 0.0
  %v2080 = vmax.f32 %v2002, 0.0
  %v2081 = vmax.f32 %v2007, 0.0
  %v2082 = vmax.f32 %v2010, 0.0
  %v2083 = vmax.f32 %v2015, 0.0
  %v2084 = vmax.f32 %v2018, 0.0
  %v2085 = vlaneseq
  %v2086 = vshrl.u32 %v2085, 7
  %v2087 = vadd.s32 %v2086, 8
  %v2088 = vadd.s32 %v2086, 16
  %v2089 = vadd.s32 %v2086, 24
  %v2090 = vadd.s32 %v2086, 32
  %v2091 = vadd.s32 %v2086, 40
  %v2092 = vadd.s32 %v2086, 48
  %v2093 = vadd.s32 %v2086, 56
  %v2094 = vadd.s32 %v2086, 64
  %v2095 = vadd.s32 %v2086, 72
  %v2096 = vadd.s32 %v2086, 80
  %v2097 = vadd.s32 %v2086, 88
  %v2098 = vadd.s32 %v2086, 96
  %v2099 = vadd.s32 %v2086, 104
  %v2100 = vadd.s32 %v2086, 112
  %v2101 = vadd.s32 %v2086, 120
  %v2102 = vadd.s32 %v2086, 128
  %v2103 = vadd.s32 %v2086, 136
  %v2104 = vadd.s32 %v2086, 144
  %v2105 = vadd.s32 %v2086, 152
  %v2106 = vadd.s32 %v2086, 160
  %v2107 = vadd.s32 %v2086, 168
  %v2108 = vadd.s32 %v2086, 176
  %v2109 = vadd.s32 %v2086, 184
  %v2110 = vadd.s32 %v2086, 192
  %v2111 = vadd.s32 %v2086, 200
  %v2112 = vadd.s32 %v2086, 208
  %v2113 = vadd.s32 %v2086, 216
  %v2114 = vadd.s32 %v2086, 224
  %v2115 = vadd.s32 %v2086, 232
  %v2116 = vadd.s32 %v2086, 240
  %v2117 = vadd.s32 %v2086, 248
  %v2118 = vadd.s32 %v2086, 256
  %v2119 = vadd.s32 %v2086, 264
  %v2120 = vadd.s32 %v2086, 272
  %v2121 = vadd.s32 %v2086, 280
  %v2122 = vadd.s32 %v2086, 288
  %v2123 = vadd.s32 %v2086, 296
  %v2124 = vadd.s32 %v2086, 304
  %v2125 = vadd.s32 %v2086, 312
  %v2126 = vadd.s32 %v2086, 320
  %v2127 = vadd.s32 %v2086, 328
  %v2128 = vadd.s32 %v2086, 336
  %v2129 = vadd.s32 %v2086, 344
  %v2130 = vadd.s32 %v2086, 352
  %v2131 = vadd.s32 %v2086, 360
  %v2132 = vadd.s32 %v2086, 368
  %v2133 = vadd.s32 %v2086, 376
  %v2134 = vadd.s32 %v2086, 384
  %v2135 = vadd.s32 %v2086, 392
  %v2136 = vadd.s32 %v2086, 400
  %v2137 = vadd.s32 %v2086, 408
  %v2138 = vadd.s32 %v2086, 416
  %v2139 = vadd.s32 %v2086, 424
  %v2140 = vadd.s32 %v2086, 432
  %v2141 = vadd.s32 %v2086, 440
  %v2142 = vadd.s32 %v2086, 448
  %v2143 = vadd.s32 %v2086, 456
  %v2144 = vadd.s32 %v2086, 464
  %v2145 = vadd.s32 %v2086, 472
  %v2146 = vadd.s32 %v2086, 480
  %v2147 = vadd.s32 %v2086, 488
  %v2148 = vadd.s32 %v2086, 496
  %v2149 = vadd.s32 %v2086, 504
  %vm2150 = vcmp.lt.s32.totalorder %v2086, 300
  %vm2151 = vcmp.lt.s32.totalorder %v2087, 300
  %vm2152 = vcmp.lt.s32.totalorder %v2088, 300
  %vm2153 = vcmp.lt.s32.totalorder %v2089, 300
  %vm2154 = vcmp.lt.s32.totalorder %v2090, 300
  %vm2155 = vcmp.lt.s32.totalorder %v2091, 300
  %vm2156 = vcmp.lt.s32.totalorder %v2092, 300
  %vm2157 = vcmp.lt.s32.totalorder %v2093, 300
  %vm2158 = vcmp.lt.s32.totalorder %v2094, 300
  %vm2159 = vcmp.lt.s32.totalorder %v2095, 300
  %vm2160 = vcmp.lt.s32.totalorder %v2096, 300
  %vm2161 = vcmp.lt.s32.totalorder %v2097, 300
  %vm2162 = vcmp.lt.s32.totalorder %v2098, 300
  %vm2163 = vcmp.lt.s32.totalorder %v2099, 300
  %vm2164 = vcmp.lt.s32.totalorder %v2100, 300
  %vm2165 = vcmp.lt.s32.totalorder %v2101, 300
  %vm2166 = vcmp.lt.s32.totalorder %v2102, 300
  %vm2167 = vcmp.lt.s32.totalorder %v2103, 300
  %vm2168 = vcmp.lt.s32.totalorder %v2104, 300
  %vm2169 = vcmp.lt.s32.totalorder %v2105, 300
  %vm2170 = vcmp.lt.s32.totalorder %v2106, 300
  %vm2171 = vcmp.lt.s32.totalorder %v2107, 300
  %vm2172 = vcmp.lt.s32.totalorder %v2108, 300
  %vm2173 = vcmp.lt.s32.totalorder %v2109, 300
  %vm2174 = vcmp.lt.s32.totalorder %v2110, 300
  %vm2175 = vcmp.lt.s32.totalorder %v2111, 300
  %vm2176 = vcmp.lt.s32.totalorder %v2112, 300
  %vm2177 = vcmp.lt.s32.totalorder %v2113, 300
  %vm2178 = vcmp.lt.s32.totalorder %v2114, 300
  %vm2179 = vcmp.lt.s32.totalorder %v2115, 300
  %vm2180 = vcmp.lt.s32.totalorder %v2116, 300
  %vm2181 = vcmp.lt.s32.totalorder %v2117, 300
  %vm2182 = vcmp.lt.s32.totalorder %v2118, 300
  %vm2183 = vcmp.lt.s32.totalorder %v2119, 300
  %vm2184 = vcmp.lt.s32.totalorder %v2120, 300
  %vm2185 = vcmp.lt.s32.totalorder %v2121, 300
  %vm2186 = vcmp.lt.s32.totalorder %v2122, 300
  %vm2187 = vcmp.lt.s32.totalorder %v2123, 300
  %vm2188 = vcmp.lt.s32.totalorder %v2124, 300
  %vm2189 = vcmp.lt.s32.totalorder %v2125, 300
  %vm2190 = vcmp.lt.s32.totalorder %v2126, 300
  %vm2191 = vcmp.lt.s32.totalorder %v2127, 300
  %vm2192 = vcmp.lt.s32.totalorder %v2128, 300
  %vm2193 = vcmp.lt.s32.totalorder %v2129, 300
  %vm2194 = vcmp.lt.s32.totalorder %v2130, 300
  %vm2195 = vcmp.lt.s32.totalorder %v2131, 300
  %vm2196 = vcmp.lt.s32.totalorder %v2132, 300
  %vm2197 = vcmp.lt.s32.totalorder %v2133, 300
  %vm2198 = vcmp.lt.s32.totalorder %v2134, 300
  %vm2199 = vcmp.lt.s32.totalorder %v2135, 300
  %vm2200 = vcmp.lt.s32.totalorder %v2136, 300
  %vm2201 = vcmp.lt.s32.totalorder %v2137, 300
  %vm2202 = vcmp.lt.s32.totalorder %v2138, 300
  %vm2203 = vcmp.lt.s32.totalorder %v2139, 300
  %vm2204 = vcmp.lt.s32.totalorder %v2140, 300
  %vm2205 = vcmp.lt.s32.totalorder %v2141, 300
  %vm2206 = vcmp.lt.s32.totalorder %v2142, 300
  %vm2207 = vcmp.lt.s32.totalorder %v2143, 300
  %vm2208 = vcmp.lt.s32.totalorder %v2144, 300
  %vm2209 = vcmp.lt.s32.totalorder %v2145, 300
  %vm2210 = vcmp.lt.s32.totalorder %v2146, 300
  %vm2211 = vcmp.lt.s32.totalorder %v2147, 300
  %vm2212 = vcmp.lt.s32.totalorder %v2148, 300
  %vm2213 = vcmp.lt.s32.totalorder %v2149, 300
  %v2214 = vsel %vm2150, %v2021, 0.0
  %v2215 = vsel %vm2151, %v2022, 0.0
  %v2216 = vsel %vm2152, %v2023, 0.0
  %v2217 = vsel %vm2153, %v2024, 0.0
  %v2218 = vsel %vm2154, %v2025, 0.0
  %v2219 = vsel %vm2155, %v2026, 0.0
  %v2220 = vsel %vm2156, %v2027, 0.0
  %v2221 = vsel %vm2157, %v2028, 0.0
  %v2222 = vsel %vm2158, %v2029, 0.0
  %v2223 = vsel %vm2159, %v2030, 0.0
  %v2224 = vsel %vm2160, %v2031, 0.0
  %v2225 = vsel %vm2161, %v2032, 0.0
  %v2226 = vsel %vm2162, %v2033, 0.0
  %v2227 = vsel %vm2163, %v2034, 0.0
  %v2228 = vsel %vm2164, %v2035, 0.0
  %v2229 = vsel %vm2165, %v2036, 0.0
  %v2230 = vsel %vm2166, %v2037, 0.0
  %v2231 = vsel %vm2167, %v2038, 0.0
  %v2232 = vsel %vm2168, %v2039, 0.0
  %v2233 = vsel %vm2169, %v2040, 0.0
  %v2234 = vsel %vm2170, %v2041, 0.0
  %v2235 = vsel %vm2171, %v2042, 0.0
  %v2236 = vsel %vm2172, %v2043, 0.0
  %v2237 = vsel %vm2173, %v2044, 0.0
  %v2238 = vsel %vm2174, %v2045, 0.0
  %v2239 = vsel %vm2175, %v2046, 0.0
  %v2240 = vsel %vm2176, %v2047, 0.0
  %v2241 = vsel %vm2177, %v2048, 0.0
  %v2242 = vsel %vm2178, %v2049, 0.0
  %v2243 = vsel %vm2179, %v2050, 0.0
  %v2244 = vsel %vm2180, %v2051, 0.0
  %v2245 = vsel %vm2181, %v2052, 0.0
  %v2246 = vsel %vm2182, %v2053, 0.0
  %v2247 = vsel %vm2183, %v2054, 0.0
  %v2248 = vsel %vm2184, %v2055, 0.0
  %v2249 = vsel %vm2185, %v2056, 0.0
  %v2250 = vsel %vm2186, %v2057, 0.0
  %v2251 = vsel %vm2187, %v2058, 0.0
  %v2252 = vsel %vm2188, %v2059, 0.0
  %v2253 = vsel %vm2189, %v2060, 0.0
  %v2254 = vsel %vm2190, %v2061, 0.0
  %v2255 = vsel %vm2191, %v2062, 0.0
  %v2256 = vsel %vm2192, %v2063, 0.0
  %v2257 = vsel %vm2193, %v2064, 0.0
  %v2258 = vsel %vm2194, %v2065, 0.0
  %v2259 = vsel %vm2195, %v2066, 0.0
  %v2260 = vsel %vm2196, %v2067, 0.0
  %v2261 = vsel %vm2197, %v2068, 0.0
  %v2262 = vsel %vm2198, %v2069, 0.0
  %v2263 = vsel %vm2199, %v2070, 0.0
  %v2264 = vsel %vm2200, %v2071, 0.0
  %v2265 = vsel %vm2201, %v2072, 0.0
  %v2266 = vsel %vm2202, %v2073, 0.0
  %v2267 = vsel %vm2203, %v2074, 0.0
  %v2268 = vsel %vm2204, %v2075, 0.0
  %v2269 = vsel %vm2205, %v2076, 0.0
  %v2270 = vsel %vm2206, %v2077, 0.0
  %v2271 = vsel %vm2207, %v2078, 0.0
  %v2272 = vsel %vm2208, %v2079, 0.0
  %v2273 = vsel %vm2209, %v2080, 0.0
  %v2274 = vsel %vm2210, %v2081, 0.0
  %v2275 = vsel %vm2211, %v2082, 0.0
  %v2276 = vsel %vm2212, %v2083, 0.0
  %v2277 = vsel %vm2213, %v2084, 0.0
  %v2278 = vpack.c.bf16 %v2215, %v2214
  %v2279 = vpack.c.bf16 %v2217, %v2216
  %v2280 = vpack.c.bf16 %v2219, %v2218
  %v2281 = vpack.c.bf16 %v2221, %v2220
  %v2282 = vpack.c.bf16 %v2223, %v2222
  %v2283 = vpack.c.bf16 %v2225, %v2224
  %v2284 = vpack.c.bf16 %v2227, %v2226
  %v2285 = vpack.c.bf16 %v2229, %v2228
  %v2286 = vpack.c.bf16 %v2231, %v2230
  %v2287 = vpack.c.bf16 %v2233, %v2232
  %v2288 = vpack.c.bf16 %v2235, %v2234
  %v2289 = vpack.c.bf16 %v2237, %v2236
  %v2290 = vpack.c.bf16 %v2239, %v2238
  %v2291 = vpack.c.bf16 %v2241, %v2240
  %v2292 = vpack.c.bf16 %v2243, %v2242
  %v2293 = vpack.c.bf16 %v2245, %v2244
  %v2294 = vpack.c.bf16 %v2247, %v2246
  %v2295 = vpack.c.bf16 %v2249, %v2248
  %v2296 = vpack.c.bf16 %v2251, %v2250
  %v2297 = vpack.c.bf16 %v2253, %v2252
  %v2298 = vpack.c.bf16 %v2255, %v2254
  %v2299 = vpack.c.bf16 %v2257, %v2256
  %v2300 = vpack.c.bf16 %v2259, %v2258
  %v2301 = vpack.c.bf16 %v2261, %v2260
  %v2302 = vpack.c.bf16 %v2263, %v2262
  %v2303 = vpack.c.bf16 %v2265, %v2264
  %v2304 = vpack.c.bf16 %v2267, %v2266
  %v2305 = vpack.c.bf16 %v2269, %v2268
  %v2306 = vpack.c.bf16 %v2271, %v2270
  %v2307 = vpack.c.bf16 %v2273, %v2272
  %v2308 = vpack.c.bf16 %v2275, %v2274
  %v2309 = vpack.c.bf16 %v2277, %v2276
  %2310 = vst [vmem:[#allocation2] sm:$0xff] %v2278
  %2311 = vst [vmem:[#allocation2 + $0x8] sm:$0xff] %v2279
  %2312 = vst [vmem:[#allocation2 + $0x10] sm:$0xff] %v2280
  %2313 = vst [vmem:[#allocation2 + $0x18] sm:$0xff] %v2281
  %2314 = vst [vmem:[#allocation2 + $0x20] sm:$0xff] %v2282
  %2315 = vst [vmem:[#allocation2 + $0x28] sm:$0xff] %v2283
  %2316 = vst [vmem:[#allocation2 + $0x30] sm:$0xff] %v2284
  %2317 = vst [vmem:[#allocation2 + $0x38] sm:$0xff] %v2285
  %2318 = vst [vmem:[#allocation2 + $0x40] sm:$0xff] %v2286
  %2319 = vst [vmem:[#allocation2 + $0x48] sm:$0xff] %v2287
  %2320 = vst [vmem:[#allocation2 + $0x50] sm:$0xff] %v2288
  %2321 = vst [vmem:[#allocation2 + $0x58] sm:$0xff] %v2289
  %2322 = vst [vmem:[#allocation2 + $0x60] sm:$0xff] %v2290
  %2323 = vst [vmem:[#allocation2 + $0x68] sm:$0xff] %v2291
  %2324 = vst [vmem:[#allocation2 + $0x70] sm:$0xff] %v2292
  %2325 = vst [vmem:[#allocation2 + $0x78] sm:$0xff] %v2293
  %2326 = vst [vmem:[#allocation2 + $0x80] sm:$0xff] %v2294
  %2327 = vst [vmem:[#allocation2 + $0x88] sm:$0xff] %v2295
  %2328 = vst [vmem:[#allocation2 + $0x90] sm:$0xff] %v2296
  %2329 = vst [vmem:[#allocation2 + $0x98] sm:$0xff] %v2297
  %2330 = vst [vmem:[#allocation2 + $0xa0] sm:$0xff] %v2298
  %2331 = vst [vmem:[#allocation2 + $0xa8] sm:$0xff] %v2299
  %2332 = vst [vmem:[#allocation2 + $0xb0] sm:$0xff] %v2300
  %2333 = vst [vmem:[#allocation2 + $0xb8] sm:$0xff] %v2301
  %2334 = vst [vmem:[#allocation2 + $0xc0] sm:$0xff] %v2302
  %2335 = vst [vmem:[#allocation2 + $0xc8] sm:$0xff] %v2303
  %2336 = vst [vmem:[#allocation2 + $0xd0] sm:$0xff] %v2304
  %2337 = vst [vmem:[#allocation2 + $0xd8] sm:$0xff] %v2305
  %2338 = vst [vmem:[#allocation2 + $0xe0] sm:$0xff] %v2306
  %2339 = vst [vmem:[#allocation2 + $0xe8] sm:$0xff] %v2307
  %2340 = vst [vmem:[#allocation2 + $0xf0] sm:$0xff] %v2308
  %2341 = vst [vmem:[#allocation2 + $0xf8] sm:$0xff] %v2309
  %v2342 = vld [vmem:[%s0] sm:$0xff]
  %v2343 = vld [vmem:[%s0 + $0x8] sm:$0xff]
  %v2344 = vld [vmem:[%s0 + $0x10] sm:$0xff]
  %v2345 = vld [vmem:[%s0 + $0x18] sm:$0xff]
  %v2346 = vld [vmem:[%s0 + $0x20] sm:$0xff]
  %v2347 = vld [vmem:[%s0 + $0x28] sm:$0xff]
  %v2348 = vld [vmem:[%s0 + $0x30] sm:$0xff]
  %v2349 = vld [vmem:[%s0 + $0x38] sm:$0xff]
  %v2350 = vld [vmem:[%s0 + $0x40] sm:$0xff]
  %v2351 = vld [vmem:[%s0 + $0x48] sm:$0xff]
  %v2352 = vld [vmem:[%s0 + $0x50] sm:$0xff]
  %v2353 = vld [vmem:[%s0 + $0x58] sm:$0xff]
  %v2354 = vld [vmem:[%s0 + $0x60] sm:$0xff]
  %v2355 = vld [vmem:[%s0 + $0x68] sm:$0xff]
  %v2356 = vld [vmem:[%s0 + $0x70] sm:$0xff]
  %v2357 = vld [vmem:[%s0 + $0x78] sm:$0xff]
  %v2358 = vld [vmem:[%s0 + $0x80] sm:$0xff]
  %v2359 = vld [vmem:[%s0 + $0x88] sm:$0xff]
  %v2360 = vld [vmem:[%s0 + $0x90] sm:$0xff]
  %v2361 = vld [vmem:[%s0 + $0x98] sm:$0xff]
  %v2362 = vld [vmem:[%s0 + $0xa0] sm:$0xff]
  %v2363 = vld [vmem:[%s0 + $0xa8] sm:$0xff]
  %v2364 = vld [vmem:[%s0 + $0xb0] sm:$0xff]
  %v2365 = vld [vmem:[%s0 + $0xb8] sm:$0xff]
  %v2366 = vld [vmem:[%s0 + $0xc0] sm:$0xff]
  %v2367 = vld [vmem:[%s0 + $0xc8] sm:$0xff]
  %v2368 = vld [vmem:[%s0 + $0xd0] sm:$0xff]
  %v2369 = vld [vmem:[%s0 + $0xd8] sm:$0xff]
  %v2370 = vld [vmem:[%s0 + $0xe0] sm:$0xff]
  %v2371 = vld [vmem:[%s0 + $0xe8] sm:$0xff]
  %v2372 = vld [vmem:[%s0 + $0xf0] sm:$0xff]
  %v2373 = vld [vmem:[%s0 + $0xf8] sm:$0xff]
  %v2374 = vld [vmem:[%s0 + $0x100] sm:$0xff]
  %v2375 = vld [vmem:[%s0 + $0x108] sm:$0xff]
  %v2376 = vld [vmem:[%s0 + $0x110] sm:$0xff]
  %v2377 = vld [vmem:[%s0 + $0x118] sm:$0xff]
  %v2378 = vld [vmem:[%s0 + $0x120] sm:$0xff]
  %v2379 = vld [vmem:[%s0 + $0x128] sm:$0xff]
  %v2380 = vld [vmem:[%s0 + $0x130] sm:$0xff]
  %v2381 = vld [vmem:[%s0 + $0x138] sm:$0xff]
  %v2382 = vld [vmem:[%s0 + $0x140] sm:$0xff]
  %v2383 = vld [vmem:[%s0 + $0x148] sm:$0xff]
  %v2384 = vld [vmem:[%s0 + $0x150] sm:$0xff]
  %v2385 = vld [vmem:[%s0 + $0x158] sm:$0xff]
  %v2386 = vld [vmem:[%s0 + $0x160] sm:$0xff]
  %v2387 = vld [vmem:[%s0 + $0x168] sm:$0xff]
  %v2388 = vld [vmem:[%s0 + $0x170] sm:$0xff]
  %v2389 = vld [vmem:[%s0 + $0x178] sm:$0xff]
  %v2390 = vld [vmem:[%s0 + $0x180] sm:$0xff]
  %v2391 = vld [vmem:[%s0 + $0x188] sm:$0xff]
  %v2392 = vld [vmem:[%s0 + $0x190] sm:$0xff]
  %v2393 = vld [vmem:[%s0 + $0x198] sm:$0xff]
  %v2394 = vld [vmem:[%s0 + $0x1a0] sm:$0xff]
  %v2395 = vld [vmem:[%s0 + $0x1a8] sm:$0xff]
  %v2396 = vld [vmem:[%s0 + $0x1b0] sm:$0xff]
  %v2397 = vld [vmem:[%s0 + $0x1b8] sm:$0xff]
  %v2398 = vld [vmem:[%s0 + $0x1c0] sm:$0xff]
  %v2399 = vld [vmem:[%s0 + $0x1c8] sm:$0xff]
  %v2400 = vld [vmem:[%s0 + $0x1d0] sm:$0xff]
  %v2401 = vld [vmem:[%s0 + $0x1d8] sm:$0xff]
  %v2402 = vld [vmem:[%s0 + $0x1e0] sm:$0xff]
  %v2403 = vld [vmem:[%s0 + $0x1e8] sm:$0xff]
  %v2404 = vld [vmem:[%s0 + $0x1f0] sm:$0xff]
  %v2405 = vld [vmem:[%s0 + $0x1f8] sm:$0xff]
  %v2406 = vld [vmem:[%s0 + $0x200] sm:$0xff]
  %v2407 = vld [vmem:[%s0 + $0x208] sm:$0xff]
  %v2408 = vld [vmem:[%s0 + $0x210] sm:$0xff]
  %v2409 = vld [vmem:[%s0 + $0x218] sm:$0xff]
  %v2410 = vld [vmem:[%s0 + $0x220] sm:$0xff]
  %v2411 = vld [vmem:[%s0 + $0x228] sm:$0xff]
  %v2412 = vld [vmem:[%s0 + $0x230] sm:$0xff]
  %v2413 = vld [vmem:[%s0 + $0x238] sm:$0xff]
  %v2414 = vld [vmem:[%s0 + $0x240] sm:$0xff]
  %v2415 = vld [vmem:[%s0 + $0x248] sm:$0xff]
  %v2416 = vld [vmem:[%s0 + $0x250] sm:$0xff]
  %v2417 = vld [vmem:[%s0 + $0x258] sm:$0xff]
  %v2418 = vld [vmem:[%s0 + $0x260] sm:$0xff]
  %v2419 = vld [vmem:[%s0 + $0x268] sm:$0xff]
  %v2420 = vld [vmem:[%s0 + $0x270] sm:$0xff]
  %v2421 = vld [vmem:[%s0 + $0x278] sm:$0xff]
  %v2422 = vld [vmem:[%s0 + $0x280] sm:$0xff]
  %v2423 = vld [vmem:[%s0 + $0x288] sm:$0xff]
  %v2424 = vld [vmem:[%s0 + $0x290] sm:$0xff]
  %v2425 = vld [vmem:[%s0 + $0x298] sm:$0xff]
  %v2426 = vld [vmem:[%s0 + $0x2a0] sm:$0xff]
  %v2427 = vld [vmem:[%s0 + $0x2a8] sm:$0xff]
  %v2428 = vld [vmem:[%s0 + $0x2b0] sm:$0xff]
  %v2429 = vld [vmem:[%s0 + $0x2b8] sm:$0xff]
  %v2430 = vld [vmem:[%s0 + $0x2c0] sm:$0xff]
  %v2431 = vld [vmem:[%s0 + $0x2c8] sm:$0xff]
  %v2432 = vld [vmem:[%s0 + $0x2d0] sm:$0xff]
  %v2433 = vld [vmem:[%s0 + $0x2d8] sm:$0xff]
  %v2434 = vld [vmem:[%s0 + $0x2e0] sm:$0xff]
  %v2435 = vld [vmem:[%s0 + $0x2e8] sm:$0xff]
  %v2436 = vld [vmem:[%s0 + $0x2f0] sm:$0xff]
  %v2437 = vld [vmem:[%s0 + $0x2f8] sm:$0xff]
  %v2438 = vld [vmem:[%s0 + $0x300] sm:$0xff]
  %v2439 = vld [vmem:[%s0 + $0x308] sm:$0xff]
  %v2440 = vld [vmem:[%s0 + $0x310] sm:$0xff]
  %v2441 = vld [vmem:[%s0 + $0x318] sm:$0xff]
  %v2442 = vld [vmem:[%s0 + $0x320] sm:$0xff]
  %v2443 = vld [vmem:[%s0 + $0x328] sm:$0xff]
  %v2444 = vld [vmem:[%s0 + $0x330] sm:$0xff]
  %v2445 = vld [vmem:[%s0 + $0x338] sm:$0xff]
  %v2446 = vld [vmem:[%s0 + $0x340] sm:$0xff]
  %v2447 = vld [vmem:[%s0 + $0x348] sm:$0xff]
  %v2448 = vld [vmem:[%s0 + $0x350] sm:$0xff]
  %v2449 = vld [vmem:[%s0 + $0x358] sm:$0xff]
  %v2450 = vld [vmem:[%s0 + $0x360] sm:$0xff]
  %v2451 = vld [vmem:[%s0 + $0x368] sm:$0xff]
  %v2452 = vld [vmem:[%s0 + $0x370] sm:$0xff]
  %v2453 = vld [vmem:[%s0 + $0x378] sm:$0xff]
  %v2454 = vld [vmem:[%s0 + $0x380] sm:$0xff]
  %v2455 = vld [vmem:[%s0 + $0x388] sm:$0xff]
  %v2456 = vld [vmem:[%s0 + $0x390] sm:$0xff]
  %v2457 = vld [vmem:[%s0 + $0x398] sm:$0xff]
  %v2458 = vld [vmem:[%s0 + $0x3a0] sm:$0xff]
  %v2459 = vld [vmem:[%s0 + $0x3a8] sm:$0xff]
  %v2460 = vld [vmem:[%s0 + $0x3b0] sm:$0xff]
  %v2461 = vld [vmem:[%s0 + $0x3b8] sm:$0xff]
  %v2462 = vld [vmem:[%s0 + $0x3c0] sm:$0xff]
  %v2463 = vld [vmem:[%s0 + $0x3c8] sm:$0xff]
  %v2464 = vld [vmem:[%s0 + $0x3d0] sm:$0xff]
  %v2465 = vld [vmem:[%s0 + $0x3d8] sm:$0xff]
  %v2466 = vld [vmem:[%s0 + $0x3e0] sm:$0xff]
  %v2467 = vld [vmem:[%s0 + $0x3e8] sm:$0xff]
  %v2468 = vld [vmem:[%s0 + $0x3f0] sm:$0xff]
  %v2469 = vld [vmem:[%s0 + $0x3f8] sm:$0xff]
  %v2470 = vld [vmem:[#allocation2] sm:$0xff]
  %v2471 = vld [vmem:[#allocation2 + $0x8] sm:$0xff]
  %v2472 = vld [vmem:[#allocation2 + $0x10] sm:$0xff]
  %v2473 = vld [vmem:[#allocation2 + $0x18] sm:$0xff]
  %v2474 = vld [vmem:[#allocation2 + $0x20] sm:$0xff]
  %v2475 = vld [vmem:[#allocation2 + $0x28] sm:$0xff]
  %v2476 = vld [vmem:[#allocation2 + $0x30] sm:$0xff]
  %v2477 = vld [vmem:[#allocation2 + $0x38] sm:$0xff]
  %v2478 = vld [vmem:[#allocation2 + $0x40] sm:$0xff]
  %v2479 = vld [vmem:[#allocation2 + $0x48] sm:$0xff]
  %v2480 = vld [vmem:[#allocation2 + $0x50] sm:$0xff]
  %v2481 = vld [vmem:[#allocation2 + $0x58] sm:$0xff]
  %v2482 = vld [vmem:[#allocation2 + $0x60] sm:$0xff]
  %v2483 = vld [vmem:[#allocation2 + $0x68] sm:$0xff]
  %v2484 = vld [vmem:[#allocation2 + $0x70] sm:$0xff]
  %v2485 = vld [vmem:[#allocation2 + $0x78] sm:$0xff]
  %v2486 = vld [vmem:[#allocation2 + $0x80] sm:$0xff]
  %v2487 = vld [vmem:[#allocation2 + $0x88] sm:$0xff]
  %v2488 = vld [vmem:[#allocation2 + $0x90] sm:$0xff]
  %v2489 = vld [vmem:[#allocation2 + $0x98] sm:$0xff]
  %v2490 = vld [vmem:[#allocation2 + $0xa0] sm:$0xff]
  %v2491 = vld [vmem:[#allocation2 + $0xa8] sm:$0xff]
  %v2492 = vld [vmem:[#allocation2 + $0xb0] sm:$0xff]
  %v2493 = vld [vmem:[#allocation2 + $0xb8] sm:$0xff]
  %v2494 = vld [vmem:[#allocation2 + $0xc0] sm:$0xff]
  %v2495 = vld [vmem:[#allocation2 + $0xc8] sm:$0xff]
  %v2496 = vld [vmem:[#allocation2 + $0xd0] sm:$0xff]
  %v2497 = vld [vmem:[#allocation2 + $0xd8] sm:$0xff]
  %v2498 = vld [vmem:[#allocation2 + $0xe0] sm:$0xff]
  %v2499 = vld [vmem:[#allocation2 + $0xe8] sm:$0xff]
  %v2500 = vld [vmem:[#allocation2 + $0xf0] sm:$0xff]
  %v2501 = vld [vmem:[#allocation2 + $0xf8] sm:$0xff]
  %v2630 = vunpack.c.l.b16 %v2342
  %v2631 = vunpack.c.h.b16 %v2342
  %v2632 = vunpack.c.l.b16 %v2343
  %v2633 = vunpack.c.h.b16 %v2343
  %v2634 = vunpack.c.l.b16 %v2344
  %v2635 = vunpack.c.h.b16 %v2344
  %v2636 = vunpack.c.l.b16 %v2345
  %v2637 = vunpack.c.h.b16 %v2345
  %v2638 = vunpack.c.l.b16 %v2346
  %v2639 = vunpack.c.h.b16 %v2346
  %v2640 = vunpack.c.l.b16 %v2347
  %v2641 = vunpack.c.h.b16 %v2347
  %v2642 = vunpack.c.l.b16 %v2348
  %v2643 = vunpack.c.h.b16 %v2348
  %v2644 = vunpack.c.l.b16 %v2349
  %v2645 = vunpack.c.h.b16 %v2349
  %v2646 = vunpack.c.l.b16 %v2350
  %v2647 = vunpack.c.h.b16 %v2350
  %v2648 = vunpack.c.l.b16 %v2351
  %v2649 = vunpack.c.h.b16 %v2351
  %v2650 = vunpack.c.l.b16 %v2352
  %v2651 = vunpack.c.h.b16 %v2352
  %v2652 = vunpack.c.l.b16 %v2353
  %v2653 = vunpack.c.h.b16 %v2353
  %v2654 = vunpack.c.l.b16 %v2354
  %v2655 = vunpack.c.h.b16 %v2354
  %v2656 = vunpack.c.l.b16 %v2355
  %v2657 = vunpack.c.h.b16 %v2355
  %v2658 = vunpack.c.l.b16 %v2356
  %v2659 = vunpack.c.h.b16 %v2356
  %v2660 = vunpack.c.l.b16 %v2357
  %v2661 = vunpack.c.h.b16 %v2357
  %v2662 = vunpack.c.l.b16 %v2358
  %v2663 = vunpack.c.h.b16 %v2358
  %v2664 = vunpack.c.l.b16 %v2359
  %v2665 = vunpack.c.h.b16 %v2359
  %v2666 = vunpack.c.l.b16 %v2360
  %v2667 = vunpack.c.h.b16 %v2360
  %v2668 = vunpack.c.l.b16 %v2361
  %v2669 = vunpack.c.h.b16 %v2361
  %v2670 = vunpack.c.l.b16 %v2362
  %v2671 = vunpack.c.h.b16 %v2362
  %v2672 = vunpack.c.l.b16 %v2363
  %v2673 = vunpack.c.h.b16 %v2363
  %v2674 = vunpack.c.l.b16 %v2364
  %v2675 = vunpack.c.h.b16 %v2364
  %v2676 = vunpack.c.l.b16 %v2365
  %v2677 = vunpack.c.h.b16 %v2365
  %v2678 = vunpack.c.l.b16 %v2366
  %v2679 = vunpack.c.h.b16 %v2366
  %v2680 = vunpack.c.l.b16 %v2367
  %v2681 = vunpack.c.h.b16 %v2367
  %v2682 = vunpack.c.l.b16 %v2368
  %v2683 = vunpack.c.h.b16 %v2368
  %v2684 = vunpack.c.l.b16 %v2369
  %v2685 = vunpack.c.h.b16 %v2369
  %v2686 = vunpack.c.l.b16 %v2370
  %v2687 = vunpack.c.h.b16 %v2370
  %v2688 = vunpack.c.l.b16 %v2371
  %v2689 = vunpack.c.h.b16 %v2371
  %v2690 = vunpack.c.l.b16 %v2372
  %v2691 = vunpack.c.h.b16 %v2372
  %v2692 = vunpack.c.l.b16 %v2373
  %v2693 = vunpack.c.h.b16 %v2373
  %v2694 = vunpack.c.l.b16 %v2374
  %v2695 = vunpack.c.h.b16 %v2374
  %v2696 = vunpack.c.l.b16 %v2375
  %v2697 = vunpack.c.h.b16 %v2375
  %v2698 = vunpack.c.l.b16 %v2376
  %v2699 = vunpack.c.h.b16 %v2376
  %v2700 = vunpack.c.l.b16 %v2377
  %v2701 = vunpack.c.h.b16 %v2377
  %v2702 = vunpack.c.l.b16 %v2378
  %v2703 = vunpack.c.h.b16 %v2378
  %v2704 = vunpack.c.l.b16 %v2379
  %v2705 = vunpack.c.h.b16 %v2379
  %v2706 = vunpack.c.l.b16 %v2380
  %v2707 = vunpack.c.h.b16 %v2380
  %v2708 = vunpack.c.l.b16 %v2381
  %v2709 = vunpack.c.h.b16 %v2381
  %v2710 = vunpack.c.l.b16 %v2382
  %v2711 = vunpack.c.h.b16 %v2382
  %v2712 = vunpack.c.l.b16 %v2383
  %v2713 = vunpack.c.h.b16 %v2383
  %v2714 = vunpack.c.l.b16 %v2384
  %v2715 = vunpack.c.h.b16 %v2384
  %v2716 = vunpack.c.l.b16 %v2385
  %v2717 = vunpack.c.h.b16 %v2385
  %v2718 = vunpack.c.l.b16 %v2386
  %v2719 = vunpack.c.h.b16 %v2386
  %v2720 = vunpack.c.l.b16 %v2387
  %v2721 = vunpack.c.h.b16 %v2387
  %v2722 = vunpack.c.l.b16 %v2388
  %v2723 = vunpack.c.h.b16 %v2388
  %v2724 = vunpack.c.l.b16 %v2389
  %v2725 = vunpack.c.h.b16 %v2389
  %v2726 = vunpack.c.l.b16 %v2390
  %v2727 = vunpack.c.h.b16 %v2390
  %v2728 = vunpack.c.l.b16 %v2391
  %v2729 = vunpack.c.h.b16 %v2391
  %v2730 = vunpack.c.l.b16 %v2392
  %v2731 = vunpack.c.h.b16 %v2392
  %v2732 = vunpack.c.l.b16 %v2393
  %v2733 = vunpack.c.h.b16 %v2393
  %v2734 = vunpack.c.l.b16 %v2394
  %v2735 = vunpack.c.h.b16 %v2394
  %v2736 = vunpack.c.l.b16 %v2395
  %v2737 = vunpack.c.h.b16 %v2395
  %v2738 = vunpack.c.l.b16 %v2396
  %v2739 = vunpack.c.h.b16 %v2396
  %v2740 = vunpack.c.l.b16 %v2397
  %v2741 = vunpack.c.h.b16 %v2397
  %v2742 = vunpack.c.l.b16 %v2398
  %v2743 = vunpack.c.h.b16 %v2398
  %v2744 = vunpack.c.l.b16 %v2399
  %v2745 = vunpack.c.h.b16 %v2399
  %v2746 = vunpack.c.l.b16 %v2400
  %v2747 = vunpack.c.h.b16 %v2400
  %v2748 = vunpack.c.l.b16 %v2401
  %v2749 = vunpack.c.h.b16 %v2401
  %v2750 = vunpack.c.l.b16 %v2402
  %v2751 = vunpack.c.h.b16 %v2402
  %v2752 = vunpack.c.l.b16 %v2403
  %v2753 = vunpack.c.h.b16 %v2403
  %v2754 = vunpack.c.l.b16 %v2404
  %v2755 = vunpack.c.h.b16 %v2404
  %v2756 = vunpack.c.l.b16 %v2405
  %v2757 = vunpack.c.h.b16 %v2405
  %v2758 = vunpack.c.l.b16 %v2406
  %v2759 = vunpack.c.h.b16 %v2406
  %v2760 = vunpack.c.l.b16 %v2407
  %v2761 = vunpack.c.h.b16 %v2407
  %v2762 = vunpack.c.l.b16 %v2408
  %v2763 = vunpack.c.h.b16 %v2408
  %v2764 = vunpack.c.l.b16 %v2409
  %v2765 = vunpack.c.h.b16 %v2409
  %v2766 = vunpack.c.l.b16 %v2410
  %v2767 = vunpack.c.h.b16 %v2410
  %v2768 = vunpack.c.l.b16 %v2411
  %v2769 = vunpack.c.h.b16 %v2411
  %v2770 = vunpack.c.l.b16 %v2412
  %v2771 = vunpack.c.h.b16 %v2412
  %v2772 = vunpack.c.l.b16 %v2413
  %v2773 = vunpack.c.h.b16 %v2413
  %v2774 = vunpack.c.l.b16 %v2414
  %v2775 = vunpack.c.h.b16 %v2414
  %v2776 = vunpack.c.l.b16 %v2415
  %v2777 = vunpack.c.h.b16 %v2415
  %v2778 = vunpack.c.l.b16 %v2416
  %v2779 = vunpack.c.h.b16 %v2416
  %v2780 = vunpack.c.l.b16 %v2417
  %v2781 = vunpack.c.h.b16 %v2417
  %v2782 = vunpack.c.l.b16 %v2418
  %v2783 = vunpack.c.h.b16 %v2418
  %v2784 = vunpack.c.l.b16 %v2419
  %v2785 = vunpack.c.h.b16 %v2419
  %v2786 = vunpack.c.l.b16 %v2420
  %v2787 = vunpack.c.h.b16 %v2420
  %v2788 = vunpack.c.l.b16 %v2421
  %v2789 = vunpack.c.h.b16 %v2421
  %v2790 = vunpack.c.l.b16 %v2422
  %v2791 = vunpack.c.h.b16 %v2422
  %v2792 = vunpack.c.l.b16 %v2423
  %v2793 = vunpack.c.h.b16 %v2423
  %v2794 = vunpack.c.l.b16 %v2424
  %v2795 = vunpack.c.h.b16 %v2424
  %v2796 = vunpack.c.l.b16 %v2425
  %v2797 = vunpack.c.h.b16 %v2425
  %v2798 = vunpack.c.l.b16 %v2426
  %v2799 = vunpack.c.h.b16 %v2426
  %v2800 = vunpack.c.l.b16 %v2427
  %v2801 = vunpack.c.h.b16 %v2427
  %v2802 = vunpack.c.l.b16 %v2428
  %v2803 = vunpack.c.h.b16 %v2428
  %v2804 = vunpack.c.l.b16 %v2429
  %v2805 = vunpack.c.h.b16 %v2429
  %v2806 = vunpack.c.l.b16 %v2430
  %v2807 = vunpack.c.h.b16 %v2430
  %v2808 = vunpack.c.l.b16 %v2431
  %v2809 = vunpack.c.h.b16 %v2431
  %v2810 = vunpack.c.l.b16 %v2432
  %v2811 = vunpack.c.h.b16 %v2432
  %v2812 = vunpack.c.l.b16 %v2433
  %v2813 = vunpack.c.h.b16 %v2433
  %v2814 = vunpack.c.l.b16 %v2434
  %v2815 = vunpack.c.h.b16 %v2434
  %v2816 = vunpack.c.l.b16 %v2435
  %v2817 = vunpack.c.h.b16 %v2435
  %v2818 = vunpack.c.l.b16 %v2436
  %v2819 = vunpack.c.h.b16 %v2436
  %v2820 = vunpack.c.l.b16 %v2437
  %v2821 = vunpack.c.h.b16 %v2437
  %v2822 = vunpack.c.l.b16 %v2438
  %v2823 = vunpack.c.h.b16 %v2438
  %v2824 = vunpack.c.l.b16 %v2439
  %v2825 = vunpack.c.h.b16 %v2439
  %v2826 = vunpack.c.l.b16 %v2440
  %v2827 = vunpack.c.h.b16 %v2440
  %v2828 = vunpack.c.l.b16 %v2441
  %v2829 = vunpack.c.h.b16 %v2441
  %v2830 = vunpack.c.l.b16 %v2442
  %v2831 = vunpack.c.h.b16 %v2442
  %v2832 = vunpack.c.l.b16 %v2443
  %v2833 = vunpack.c.h.b16 %v2443
  %v2834 = vunpack.c.l.b16 %v2444
  %v2835 = vunpack.c.h.b16 %v2444
  %v2836 = vunpack.c.l.b16 %v2445
  %v2837 = vunpack.c.h.b16 %v2445
  %v2838 = vunpack.c.l.b16 %v2446
  %v2839 = vunpack.c.h.b16 %v2446
  %v2840 = vunpack.c.l.b16 %v2447
  %v2841 = vunpack.c.h.b16 %v2447
  %v2842 = vunpack.c.l.b16 %v2448
  %v2843 = vunpack.c.h.b16 %v2448
  %v2844 = vunpack.c.l.b16 %v2449
  %v2845 = vunpack.c.h.b16 %v2449
  %v2846 = vunpack.c.l.b16 %v2450
  %v2847 = vunpack.c.h.b16 %v2450
  %v2848 = vunpack.c.l.b16 %v2451
  %v2849 = vunpack.c.h.b16 %v2451
  %v2850 = vunpack.c.l.b16 %v2452
  %v2851 = vunpack.c.h.b16 %v2452
  %v2852 = vunpack.c.l.b16 %v2453
  %v2853 = vunpack.c.h.b16 %v2453
  %v2854 = vunpack.c.l.b16 %v2454
  %v2855 = vunpack.c.h.b16 %v2454
  %v2856 = vunpack.c.l.b16 %v2455
  %v2857 = vunpack.c.h.b16 %v2455
  %v2858 = vunpack.c.l.b16 %v2456
  %v2859 = vunpack.c.h.b16 %v2456
  %v2860 = vunpack.c.l.b16 %v2457
  %v2861 = vunpack.c.h.b16 %v2457
  %v2862 = vunpack.c.l.b16 %v2458
  %v2863 = vunpack.c.h.b16 %v2458
  %v2864 = vunpack.c.l.b16 %v2459
  %v2865 = vunpack.c.h.b16 %v2459
  %v2866 = vunpack.c.l.b16 %v2460
  %v2867 = vunpack.c.h.b16 %v2460
  %v2868 = vunpack.c.l.b16 %v2461
  %v2869 = vunpack.c.h.b16 %v2461
  %v2870 = vunpack.c.l.b16 %v2462
  %v2871 = vunpack.c.h.b16 %v2462
  %v2872 = vunpack.c.l.b16 %v2463
  %v2873 = vunpack.c.h.b16 %v2463
  %v2874 = vunpack.c.l.b16 %v2464
  %v2875 = vunpack.c.h.b16 %v2464
  %v2876 = vunpack.c.l.b16 %v2465
  %v2877 = vunpack.c.h.b16 %v2465
  %v2878 = vunpack.c.l.b16 %v2466
  %v2879 = vunpack.c.h.b16 %v2466
  %v2880 = vunpack.c.l.b16 %v2467
  %v2881 = vunpack.c.h.b16 %v2467
  %v2882 = vunpack.c.l.b16 %v2468
  %v2883 = vunpack.c.h.b16 %v2468
  %v2884 = vunpack.c.l.b16 %v2469
  %v2885 = vunpack.c.h.b16 %v2469
  %v2886 = vpack.c.b16 %v2634, %v2630
  %v2887 = vpack.c.b16 %v2635, %v2631
  %v2888 = vpack.c.b16 %v2636, %v2632
  %v2889 = vpack.c.b16 %v2637, %v2633
  %v2890 = vpack.c.b16 %v2642, %v2638
  %v2891 = vpack.c.b16 %v2643, %v2639
  %v2892 = vpack.c.b16 %v2644, %v2640
  %v2893 = vpack.c.b16 %v2645, %v2641
  %v2894 = vpack.c.b16 %v2650, %v2646
  %v2895 = vpack.c.b16 %v2651, %v2647
  %v2896 = vpack.c.b16 %v2652, %v2648
  %v2897 = vpack.c.b16 %v2653, %v2649
  %v2898 = vpack.c.b16 %v2658, %v2654
  %v2899 = vpack.c.b16 %v2659, %v2655
  %v2900 = vpack.c.b16 %v2660, %v2656
  %v2901 = vpack.c.b16 %v2661, %v2657
  %v2902 = vpack.c.b16 %v2666, %v2662
  %v2903 = vpack.c.b16 %v2667, %v2663
  %v2904 = vpack.c.b16 %v2668, %v2664
  %v2905 = vpack.c.b16 %v2669, %v2665
  %v2906 = vpack.c.b16 %v2674, %v2670
  %v2907 = vpack.c.b16 %v2675, %v2671
  %v2908 = vpack.c.b16 %v2676, %v2672
  %v2909 = vpack.c.b16 %v2677, %v2673
  %v2910 = vpack.c.b16 %v2682, %v2678
  %v2911 = vpack.c.b16 %v2683, %v2679
  %v2912 = vpack.c.b16 %v2684, %v2680
  %v2913 = vpack.c.b16 %v2685, %v2681
  %v2914 = vpack.c.b16 %v2690, %v2686
  %v2915 = vpack.c.b16 %v2691, %v2687
  %v2916 = vpack.c.b16 %v2692, %v2688
  %v2917 = vpack.c.b16 %v2693, %v2689
  %v2918 = vpack.c.b16 %v2698, %v2694
  %v2919 = vpack.c.b16 %v2699, %v2695
  %v2920 = vpack.c.b16 %v2700, %v2696
  %v2921 = vpack.c.b16 %v2701, %v2697
  %v2922 = vpack.c.b16 %v2706, %v2702
  %v2923 = vpack.c.b16 %v2707, %v2703
  %v2924 = vpack.c.b16 %v2708, %v2704
  %v2925 = vpack.c.b16 %v2709, %v2705
  %v2926 = vpack.c.b16 %v2714, %v2710
  %v2927 = vpack.c.b16 %v2715, %v2711
  %v2928 = vpack.c.b16 %v2716, %v2712
  %v2929 = vpack.c.b16 %v2717, %v2713
  %v2930 = vpack.c.b16 %v2722, %v2718
  %v2931 = vpack.c.b16 %v2723, %v2719
  %v2932 = vpack.c.b16 %v2724, %v2720
  %v2933 = vpack.c.b16 %v2725, %v2721
  %v2934 = vpack.c.b16 %v2730, %v2726
  %v2935 = vpack.c.b16 %v2731, %v2727
  %v2936 = vpack.c.b16 %v2732, %v2728
  %v2937 = vpack.c.b16 %v2733, %v2729
  %v2938 = vpack.c.b16 %v2738, %v2734
  %v2939 = vpack.c.b16 %v2739, %v2735
  %v2940 = vpack.c.b16 %v2740, %v2736
  %v2941 = vpack.c.b16 %v2741, %v2737
  %v2942 = vpack.c.b16 %v2746, %v2742
  %v2943 = vpack.c.b16 %v2747, %v2743
  %v2944 = vpack.c.b16 %v2748, %v2744
  %v2945 = vpack.c.b16 %v2749, %v2745
  %v2946 = vpack.c.b16 %v2754, %v2750
  %v2947 = vpack.c.b16 %v2755, %v2751
  %v2948 = vpack.c.b16 %v2756, %v2752
  %v2949 = vpack.c.b16 %v2757, %v2753
  %v2950 = vpack.c.b16 %v2762, %v2758
  %v2951 = vpack.c.b16 %v2763, %v2759
  %v2952 = vpack.c.b16 %v2764, %v2760
  %v2953 = vpack.c.b16 %v2765, %v2761
  %v2954 = vpack.c.b16 %v2770, %v2766
  %v2955 = vpack.c.b16 %v2771, %v2767
  %v2956 = vpack.c.b16 %v2772, %v2768
  %v2957 = vpack.c.b16 %v2773, %v2769
  %v2958 = vpack.c.b16 %v2778, %v2774
  %v2959 = vpack.c.b16 %v2779, %v2775
  %v2960 = vpack.c.b16 %v2780, %v2776
  %v2961 = vpack.c.b16 %v2781, %v2777
  %v2962 = vpack.c.b16 %v2786, %v2782
  %v2963 = vpack.c.b16 %v2787, %v2783
  %v2964 = vpack.c.b16 %v2788, %v2784
  %v2965 = vpack.c.b16 %v2789, %v2785
  %v2966 = vpack.c.b16 %v2794, %v2790
  %v2967 = vpack.c.b16 %v2795, %v2791
  %v2968 = vpack.c.b16 %v2796, %v2792
  %v2969 = vpack.c.b16 %v2797, %v2793
  %v2970 = vpack.c.b16 %v2802, %v2798
  %v2971 = vpack.c.b16 %v2803, %v2799
  %v2972 = vpack.c.b16 %v2804, %v2800
  %v2973 = vpack.c.b16 %v2805, %v2801
  %v2974 = vpack.c.b16 %v2810, %v2806
  %v2975 = vpack.c.b16 %v2811, %v2807
  %v2976 = vpack.c.b16 %v2812, %v2808
  %v2977 = vpack.c.b16 %v2813, %v2809
  %v2978 = vpack.c.b16 %v2818, %v2814
  %v2979 = vpack.c.b16 %v2819, %v2815
  %v2980 = vpack.c.b16 %v2820, %v2816
  %v2981 = vpack.c.b16 %v2821, %v2817
  %v2982 = vpack.c.b16 %v2826, %v2822
  %v2983 = vpack.c.b16 %v2827, %v2823
  %v2984 = vpack.c.b16 %v2828, %v2824
  %v2985 = vpack.c.b16 %v2829, %v2825
  %v2986 = vpack.c.b16 %v2834, %v2830
  %v2987 = vpack.c.b16 %v2835, %v2831
  %v2988 = vpack.c.b16 %v2836, %v2832
  %v2989 = vpack.c.b16 %v2837, %v2833
  %v2990 = vpack.c.b16 %v2842, %v2838
  %v2991 = vpack.c.b16 %v2843, %v2839
  %v2992 = vpack.c.b16 %v2844, %v2840
  %v2993 = vpack.c.b16 %v2845, %v2841
  %v2994 = vpack.c.b16 %v2850, %v2846
  %v2995 = vpack.c.b16 %v2851, %v2847
  %v2996 = vpack.c.b16 %v2852, %v2848
  %v2997 = vpack.c.b16 %v2853, %v2849
  %v2998 = vpack.c.b16 %v2858, %v2854
  %v2999 = vpack.c.b16 %v2859, %v2855
  %v3000 = vpack.c.b16 %v2860, %v2856
  %v3001 = vpack.c.b16 %v2861, %v2857
  %v3002 = vpack.c.b16 %v2866, %v2862
  %v3003 = vpack.c.b16 %v2867, %v2863
  %v3004 = vpack.c.b16 %v2868, %v2864
  %v3005 = vpack.c.b16 %v2869, %v2865
  %v3006 = vpack.c.b16 %v2874, %v2870
  %v3007 = vpack.c.b16 %v2875, %v2871
  %v3008 = vpack.c.b16 %v2876, %v2872
  %v3009 = vpack.c.b16 %v2877, %v2873
  %v3010 = vpack.c.b16 %v2882, %v2878
  %v3011 = vpack.c.b16 %v2883, %v2879
  %v3012 = vpack.c.b16 %v2884, %v2880
  %v3013 = vpack.c.b16 %v2885, %v2881
  %3142 = vmatprep.subr.bf16.mxu0 0
  %3143 = vmatpush1.bf16.msra.mxu0 %v2470
  %3144 = vmatprep.subr.bf16.mxu0 0
  %3145 = vmatpush1.bf16.msra.mxu0 %v2471
  %3146 = vmatprep.subr.bf16.mxu0 0
  %3147 = vmatpush1.bf16.msra.mxu0 %v2472
  %3148 = vmatprep.subr.bf16.mxu0 0
  %3149 = vmatpush1.bf16.msra.mxu0 %v2473
  %3150 = vmatprep.subr.bf16.mxu0 0
  %3151 = vmatpush1.bf16.msra.mxu0 %v2474
  %3152 = vmatprep.subr.bf16.mxu0 0
  %3153 = vmatpush1.bf16.msra.mxu0 %v2475
  %3154 = vmatprep.subr.bf16.mxu0 0
  %3155 = vmatpush1.bf16.msra.mxu0 %v2476
  %3156 = vmatprep.subr.bf16.mxu0 0
  %3157 = vmatpush1.bf16.msra.mxu0 %v2477
  %3158 = vmatprep.subr.bf16.mxu0 0
  %3159 = vmatpush1.bf16.msra.mxu0 %v2478
  %3160 = vmatprep.subr.bf16.mxu0 0
  %3161 = vmatpush1.bf16.msra.mxu0 %v2479
  %3162 = vmatprep.subr.bf16.mxu0 0
  %3163 = vmatpush1.bf16.msra.mxu0 %v2480
  %3164 = vmatprep.subr.bf16.mxu0 0
  %3165 = vmatpush1.bf16.msra.mxu0 %v2481
  %3166 = vmatprep.subr.bf16.mxu0 0
  %3167 = vmatpush1.bf16.msra.mxu0 %v2482
  %3168 = vmatprep.subr.bf16.mxu0 0
  %3169 = vmatpush1.bf16.msra.mxu0 %v2483
  %3170 = vmatprep.subr.bf16.mxu0 0
  %3171 = vmatpush1.bf16.msra.mxu0 %v2484
  %3172 = vmatprep.subr.bf16.mxu0 0
  %3173 = vmatpush1.bf16.msra.mxu0 %v2485
  %3174 = vmatprep.mubr.bf16.mxu0 %v2887
  %3175 = vmatmul.mubr.bf16.gmra.mrb[0].mxu0 %v2886
  %v3176 = vpop.f32.mrb[0].mxu0
  %v3177 = vadd.f32 0.0, %v3176
  %v3178 = vpop.f32.mrb[0].mxu0
  %v3179 = vpop.f32.mrb[0].mxu0
  %v3180 = vadd.f32 0.0, %v3179
  %v3181 = vpop.f32.mrb[0].mxu0
  %3182 = vmatprep.mubr.bf16.mxu0 %v2891
  %3183 = vmatmul.mubr.bf16.gmra.mrb[0].mxu0 %v2890
  %v3184 = vpop.f32.mrb[0].mxu0
  %v3185 = vadd.f32 0.0, %v3184
  %v3186 = vpop.f32.mrb[0].mxu0
  %v3187 = vpop.f32.mrb[0].mxu0
  %v3188 = vadd.f32 0.0, %v3187
  %v3189 = vpop.f32.mrb[0].mxu0
  %3190 = vmatprep.mubr.bf16.mxu0 %v2895
  %3191 = vmatmul.mubr.bf16.gmra.mrb[0].mxu0 %v2894
  %v3192 = vpop.f32.mrb[0].mxu0
  %v3193 = vadd.f32 0.0, %v3192
  %v3194 = vpop.f32.mrb[0].mxu0
  %v3195 = vpop.f32.mrb[0].mxu0
  %v3196 = vadd.f32 0.0, %v3195
  %v3197 = vpop.f32.mrb[0].mxu0
  %3198 = vmatprep.mubr.bf16.mxu0 %v2899
  %3199 = vmatmul.mubr.bf16.gmra.mrb[0].mxu0 %v2898
  %v3200 = vpop.f32.mrb[0].mxu0
  %v3201 = vadd.f32 0.0, %v3200
  %v3202 = vpop.f32.mrb[0].mxu0
  %v3203 = vpop.f32.mrb[0].mxu0
  %v3204 = vadd.f32 0.0, %v3203
  %v3205 = vpop.f32.mrb[0].mxu0
  %3206 = vmatprep.mubr.bf16.mxu0 %v2903
  %3207 = vmatmul.mubr.bf16.gmra.mrb[0].mxu0 %v2902
  %v3208 = vpop.f32.mrb[0].mxu0
  %v3209 = vadd.f32 0.0, %v3208
  %v3210 = vpop.f32.mrb[0].mxu0
  %v3211 = vpop.f32.mrb[0].mxu0
  %v3212 = vadd.f32 0.0, %v3211
  %v3213 = vpop.f32.mrb[0].mxu0
  %3214 = vmatprep.mubr.bf16.mxu0 %v2907
  %3215 = vmatmul.mubr.bf16.gmra.mrb[0].mxu0 %v2906
  %v3216 = vpop.f32.mrb[0].mxu0
  %v3217 = vadd.f32 0.0, %v3216
  %v3218 = vpop.f32.mrb[0].mxu0
  %v3219 = vpop.f32.mrb[0].mxu0
  %v3220 = vadd.f32 0.0, %v3219
  %v3221 = vpop.f32.mrb[0].mxu0
  %3222 = vmatprep.mubr.bf16.mxu0 %v2911
  %3223 = vmatmul.mubr.bf16.gmra.mrb[0].mxu0 %v2910
  %v3224 = vpop.f32.mrb[0].mxu0
  %v3225 = vadd.f32 0.0, %v3224
  %v3226 = vpop.f32.mrb[0].mxu0
  %v3227 = vpop.f32.mrb[0].mxu0
  %v3228 = vadd.f32 0.0, %v3227
  %v3229 = vpop.f32.mrb[0].mxu0
  %3230 = vmatprep.mubr.bf16.mxu0 %v2915
  %3231 = vmatmul.mubr.bf16.gmra.mrb[0].mxu0 %v2914
  %v3232 = vpop.f32.mrb[0].mxu0
  %v3233 = vadd.f32 0.0, %v3232
  %v3234 = vpop.f32.mrb[0].mxu0
  %v3235 = vpop.f32.mrb[0].mxu0
  %v3236 = vadd.f32 0.0, %v3235
  %v3237 = vpop.f32.mrb[0].mxu0
  %3238 = vmatprep.mubr.bf16.mxu0 %v2919
  %3239 = vmatmul.mubr.bf16.gmra.mrb[0].mxu0 %v2918
  %v3240 = vpop.f32.mrb[0].mxu0
  %v3241 = vadd.f32 0.0, %v3240
  %v3242 = vpop.f32.mrb[0].mxu0
  %v3243 = vpop.f32.mrb[0].mxu0
  %v3244 = vadd.f32 0.0, %v3243
  %v3245 = vpop.f32.mrb[0].mxu0
  %3246 = vmatprep.mubr.bf16.mxu0 %v2923
  %3247 = vmatmul.mubr.bf16.gmra.mrb[0].mxu0 %v2922
  %v3248 = vpop.f32.mrb[0].mxu0
  %v3249 = vadd.f32 0.0, %v3248
  %v3250 = vpop.f32.mrb[0].mxu0
  %v3251 = vpop.f32.mrb[0].mxu0
  %v3252 = vadd.f32 0.0, %v3251
  %v3253 = vpop.f32.mrb[0].mxu0
  %3254 = vmatprep.mubr.bf16.mxu0 %v2927
  %3255 = vmatmul.mubr.bf16.gmra.mrb[0].mxu0 %v2926
  %v3256 = vpop.f32.mrb[0].mxu0
  %v3257 = vadd.f32 0.0, %v3256
  %v3258 = vpop.f32.mrb[0].mxu0
  %v3259 = vpop.f32.mrb[0].mxu0
  %v3260 = vadd.f32 0.0, %v3259
  %v3261 = vpop.f32.mrb[0].mxu0
  %3262 = vmatprep.mubr.bf16.mxu0 %v2931
  %3263 = vmatmul.mubr.bf16.gmra.mrb[0].mxu0 %v2930
  %v3264 = vpop.f32.mrb[0].mxu0
  %v3265 = vadd.f32 0.0, %v3264
  %v3266 = vpop.f32.mrb[0].mxu0
  %v3267 = vpop.f32.mrb[0].mxu0
  %v3268 = vadd.f32 0.0, %v3267
  %v3269 = vpop.f32.mrb[0].mxu0
  %3270 = vmatprep.mubr.bf16.mxu0 %v2935
  %3271 = vmatmul.mubr.bf16.gmra.mrb[0].mxu0 %v2934
  %v3272 = vpop.f32.mrb[0].mxu0
  %v3273 = vadd.f32 0.0, %v3272
  %v3274 = vpop.f32.mrb[0].mxu0
  %v3275 = vpop.f32.mrb[0].mxu0
  %v3276 = vadd.f32 0.0, %v3275
  %v3277 = vpop.f32.mrb[0].mxu0
  %3278 = vmatprep.mubr.bf16.mxu0 %v2939
  %3279 = vmatmul.mubr.bf16.gmra.mrb[0].mxu0 %v2938
  %v3280 = vpop.f32.mrb[0].mxu0
  %v3281 = vadd.f32 0.0, %v3280
  %v3282 = vpop.f32.mrb[0].mxu0
  %v3283 = vpop.f32.mrb[0].mxu0
  %v3284 = vadd.f32 0.0, %v3283
  %v3285 = vpop.f32.mrb[0].mxu0
  %3286 = vmatprep.mubr.bf16.mxu0 %v2943
  %3287 = vmatmul.mubr.bf16.gmra.mrb[0].mxu0 %v2942
  %v3288 = vpop.f32.mrb[0].mxu0
  %v3289 = vadd.f32 0.0, %v3288
  %v3290 = vpop.f32.mrb[0].mxu0
  %v3291 = vpop.f32.mrb[0].mxu0
  %v3292 = vadd.f32 0.0, %v3291
  %v3293 = vpop.f32.mrb[0].mxu0
  %3294 = vmatprep.mubr.bf16.mxu0 %v2947
  %3295 = vmatmul.mubr.bf16.gmra.mrb[0].mxu0 %v2946
  %v3296 = vpop.f32.mrb[0].mxu0
  %v3297 = vadd.f32 0.0, %v3296
  %v3298 = vpop.f32.mrb[0].mxu0
  %v3299 = vpop.f32.mrb[0].mxu0
  %v3300 = vadd.f32 0.0, %v3299
  %v3301 = vpop.f32.mrb[0].mxu0
  %3302 = vmatprep.mubr.bf16.mxu0 %v2951
  %3303 = vmatmul.mubr.bf16.gmra.mrb[0].mxu0 %v2950
  %v3304 = vpop.f32.mrb[0].mxu0
  %v3305 = vadd.f32 0.0, %v3304
  %v3306 = vpop.f32.mrb[0].mxu0
  %v3307 = vpop.f32.mrb[0].mxu0
  %v3308 = vadd.f32 0.0, %v3307
  %v3309 = vpop.f32.mrb[0].mxu0
  %3310 = vmatprep.mubr.bf16.mxu0 %v2955
  %3311 = vmatmul.mubr.bf16.gmra.mrb[0].mxu0 %v2954
  %v3312 = vpop.f32.mrb[0].mxu0
  %v3313 = vadd.f32 0.0, %v3312
  %v3314 = vpop.f32.mrb[0].mxu0
  %v3315 = vpop.f32.mrb[0].mxu0
  %v3316 = vadd.f32 0.0, %v3315
  %v3317 = vpop.f32.mrb[0].mxu0
  %3318 = vmatprep.mubr.bf16.mxu0 %v2959
  %3319 = vmatmul.mubr.bf16.gmra.mrb[0].mxu0 %v2958
  %v3320 = vpop.f32.mrb[0].mxu0
  %v3321 = vadd.f32 0.0, %v3320
  %v3322 = vpop.f32.mrb[0].mxu0
  %v3323 = vpop.f32.mrb[0].mxu0
  %v3324 = vadd.f32 0.0, %v3323
  %v3325 = vpop.f32.mrb[0].mxu0
  %3326 = vmatprep.mubr.bf16.mxu0 %v2963
  %3327 = vmatmul.mubr.bf16.gmra.mrb[0].mxu0 %v2962
  %v3328 = vpop.f32.mrb[0].mxu0
  %v3329 = vadd.f32 0.0, %v3328
  %v3330 = vpop.f32.mrb[0].mxu0
  %v3331 = vpop.f32.mrb[0].mxu0
  %v3332 = vadd.f32 0.0, %v3331
  %v3333 = vpop.f32.mrb[0].mxu0
  %3334 = vmatprep.mubr.bf16.mxu0 %v2967
  %3335 = vmatmul.mubr.bf16.gmra.mrb[0].mxu0 %v2966
  %v3336 = vpop.f32.mrb[0].mxu0
  %v3337 = vadd.f32 0.0, %v3336
  %v3338 = vpop.f32.mrb[0].mxu0
  %v3339 = vpop.f32.mrb[0].mxu0
  %v3340 = vadd.f32 0.0, %v3339
  %v3341 = vpop.f32.mrb[0].mxu0
  %3342 = vmatprep.mubr.bf16.mxu0 %v2971
  %3343 = vmatmul.mubr.bf16.gmra.mrb[0].mxu0 %v2970
  %v3344 = vpop.f32.mrb[0].mxu0
  %v3345 = vadd.f32 0.0, %v3344
  %v3346 = vpop.f32.mrb[0].mxu0
  %v3347 = vpop.f32.mrb[0].mxu0
  %v3348 = vadd.f32 0.0, %v3347
  %v3349 = vpop.f32.mrb[0].mxu0
  %3350 = vmatprep.mubr.bf16.mxu0 %v2975
  %3351 = vmatmul.mubr.bf16.gmra.mrb[0].mxu0 %v2974
  %v3352 = vpop.f32.mrb[0].mxu0
  %v3353 = vadd.f32 0.0, %v3352
  %v3354 = vpop.f32.mrb[0].mxu0
  %v3355 = vpop.f32.mrb[0].mxu0
  %v3356 = vadd.f32 0.0, %v3355
  %v3357 = vpop.f32.mrb[0].mxu0
  %3358 = vmatprep.mubr.bf16.mxu0 %v2979
  %3359 = vmatmul.mubr.bf16.gmra.mrb[0].mxu0 %v2978
  %v3360 = vpop.f32.mrb[0].mxu0
  %v3361 = vadd.f32 0.0, %v3360
  %v3362 = vpop.f32.mrb[0].mxu0
  %v3363 = vpop.f32.mrb[0].mxu0
  %v3364 = vadd.f32 0.0, %v3363
  %v3365 = vpop.f32.mrb[0].mxu0
  %3366 = vmatprep.mubr.bf16.mxu0 %v2983
  %3367 = vmatmul.mubr.bf16.gmra.mrb[0].mxu0 %v2982
  %v3368 = vpop.f32.mrb[0].mxu0
  %v3369 = vadd.f32 0.0, %v3368
  %v3370 = vpop.f32.mrb[0].mxu0
  %v3371 = vpop.f32.mrb[0].mxu0
  %v3372 = vadd.f32 0.0, %v3371
  %v3373 = vpop.f32.mrb[0].mxu0
  %3374 = vmatprep.mubr.bf16.mxu0 %v2987
  %3375 = vmatmul.mubr.bf16.gmra.mrb[0].mxu0 %v2986
  %v3376 = vpop.f32.mrb[0].mxu0
  %v3377 = vadd.f32 0.0, %v3376
  %v3378 = vpop.f32.mrb[0].mxu0
  %v3379 = vpop.f32.mrb[0].mxu0
  %v3380 = vadd.f32 0.0, %v3379
  %v3381 = vpop.f32.mrb[0].mxu0
  %3382 = vmatprep.mubr.bf16.mxu0 %v2991
  %3383 = vmatmul.mubr.bf16.gmra.mrb[0].mxu0 %v2990
  %v3384 = vpop.f32.mrb[0].mxu0
  %v3385 = vadd.f32 0.0, %v3384
  %v3386 = vpop.f32.mrb[0].mxu0
  %v3387 = vpop.f32.mrb[0].mxu0
  %v3388 = vadd.f32 0.0, %v3387
  %v3389 = vpop.f32.mrb[0].mxu0
  %3390 = vmatprep.mubr.bf16.mxu0 %v2995
  %3391 = vmatmul.mubr.bf16.gmra.mrb[0].mxu0 %v2994
  %v3392 = vpop.f32.mrb[0].mxu0
  %v3393 = vadd.f32 0.0, %v3392
  %v3394 = vpop.f32.mrb[0].mxu0
  %v3395 = vpop.f32.mrb[0].mxu0
  %v3396 = vadd.f32 0.0, %v3395
  %v3397 = vpop.f32.mrb[0].mxu0
  %3398 = vmatprep.mubr.bf16.mxu0 %v2999
  %3399 = vmatmul.mubr.bf16.gmra.mrb[0].mxu0 %v2998
  %v3400 = vpop.f32.mrb[0].mxu0
  %v3401 = vadd.f32 0.0, %v3400
  %v3402 = vpop.f32.mrb[0].mxu0
  %v3403 = vpop.f32.mrb[0].mxu0
  %v3404 = vadd.f32 0.0, %v3403
  %v3405 = vpop.f32.mrb[0].mxu0
  %3406 = vmatprep.mubr.bf16.mxu0 %v3003
  %3407 = vmatmul.mubr.bf16.gmra.mrb[0].mxu0 %v3002
  %v3408 = vpop.f32.mrb[0].mxu0
  %v3409 = vadd.f32 0.0, %v3408
  %v3410 = vpop.f32.mrb[0].mxu0
  %v3411 = vpop.f32.mrb[0].mxu0
  %v3412 = vadd.f32 0.0, %v3411
  %v3413 = vpop.f32.mrb[0].mxu0
  %3414 = vmatprep.mubr.bf16.mxu0 %v3007
  %3415 = vmatmul.mubr.bf16.gmra.mrb[0].mxu0 %v3006
  %v3416 = vpop.f32.mrb[0].mxu0
  %v3417 = vadd.f32 0.0, %v3416
  %v3418 = vpop.f32.mrb[0].mxu0
  %v3419 = vpop.f32.mrb[0].mxu0
  %v3420 = vadd.f32 0.0, %v3419
  %v3421 = vpop.f32.mrb[0].mxu0
  %3422 = vmatprep.mubr.bf16.mxu0 %v3011
  %3423 = vmatmul.mubr.bf16.gmra.mrb[0].mxu0 %v3010
  %v3424 = vpop.f32.mrb[0].mxu0
  %v3425 = vadd.f32 0.0, %v3424
  %v3426 = vpop.f32.mrb[0].mxu0
  %v3427 = vpop.f32.mrb[0].mxu0
  %v3428 = vadd.f32 0.0, %v3427
  %v3429 = vpop.f32.mrb[0].mxu0
  %3430 = vdwg.mxu0
  %3431 = vmatprep.subr.bf16.mxu0 0
  %3432 = vmatpush1.bf16.msra.mxu0 %v2486
  %3433 = vmatprep.subr.bf16.mxu0 0
  %3434 = vmatpush1.bf16.msra.mxu0 %v2487
  %3435 = vmatprep.subr.bf16.mxu0 0
  %3436 = vmatpush1.bf16.msra.mxu0 %v2488
  %3437 = vmatprep.subr.bf16.mxu0 0
  %3438 = vmatpush1.bf16.msra.mxu0 %v2489
  %3439 = vmatprep.subr.bf16.mxu0 0
  %3440 = vmatpush1.bf16.msra.mxu0 %v2490
  %3441 = vmatprep.subr.bf16.mxu0 0
  %3442 = vmatpush1.bf16.msra.mxu0 %v2491
  %3443 = vmatprep.subr.bf16.mxu0 0
  %3444 = vmatpush1.bf16.msra.mxu0 %v2492
  %3445 = vmatprep.subr.bf16.mxu0 0
  %3446 = vmatpush1.bf16.msra.mxu0 %v2493
  %3447 = vmatprep.subr.bf16.mxu0 0
  %3448 = vmatpush1.bf16.msra.mxu0 %v2494
  %3449 = vmatprep.subr.bf16.mxu0 0
  %3450 = vmatpush1.bf16.msra.mxu0 %v2495
  %3451 = vmatprep.subr.bf16.mxu0 0
  %3452 = vmatpush1.bf16.msra.mxu0 %v2496
  %3453 = vmatprep.subr.bf16.mxu0 0
  %3454 = vmatpush1.bf16.msra.mxu0 %v2497
  %3455 = vmatprep.subr.bf16.mxu0 0
  %3456 = vmatpush1.bf16.msra.mxu0 %v2498
  %3457 = vmatprep.subr.bf16.mxu0 0
  %3458 = vmatpush1.bf16.msra.mxu0 %v2499
  %3459 = vmatprep.subr.bf16.mxu0 0
  %3460 = vmatpush1.bf16.msra.mxu0 %v2500
  %3461 = vmatprep.subr.bf16.mxu0 0
  %3462 = vmatpush1.bf16.msra.mxu0 %v2501
  %3463 = vmatprep.mubr.bf16.mxu0 %v2889
  %3464 = vmatmul.mubr.bf16.gmra.mrb[0].mxu0 %v2888
  %v3465 = vpop.f32.mrb[0].mxu0
  %v3466 = vadd.f32 %v3177, %v3465
  %v3467 = vpop.f32.mrb[0].mxu0
  %v3468 = vpop.f32.mrb[0].mxu0
  %v3469 = vadd.f32 %v3180, %v3468
  %v3470 = vpop.f32.mrb[0].mxu0
  %3471 = vmatprep.mubr.bf16.mxu0 %v2893
  %3472 = vmatmul.mubr.bf16.gmra.mrb[0].mxu0 %v2892
  %v3473 = vpop.f32.mrb[0].mxu0
  %v3474 = vadd.f32 %v3185, %v3473
  %v3475 = vpop.f32.mrb[0].mxu0
  %v3476 = vpop.f32.mrb[0].mxu0
  %v3477 = vadd.f32 %v3188, %v3476
  %v3478 = vpop.f32.mrb[0].mxu0
  %3479 = vmatprep.mubr.bf16.mxu0 %v2897
  %3480 = vmatmul.mubr.bf16.gmra.mrb[0].mxu0 %v2896
  %v3481 = vpop.f32.mrb[0].mxu0
  %v3482 = vadd.f32 %v3193, %v3481
  %v3483 = vpop.f32.mrb[0].mxu0
  %v3484 = vpop.f32.mrb[0].mxu0
  %v3485 = vadd.f32 %v3196, %v3484
  %v3486 = vpop.f32.mrb[0].mxu0
  %3487 = vmatprep.mubr.bf16.mxu0 %v2901
  %3488 = vmatmul.mubr.bf16.gmra.mrb[0].mxu0 %v2900
  %v3489 = vpop.f32.mrb[0].mxu0
  %v3490 = vadd.f32 %v3201, %v3489
  %v3491 = vpop.f32.mrb[0].mxu0
  %v3492 = vpop.f32.mrb[0].mxu0
  %v3493 = vadd.f32 %v3204, %v3492
  %v3494 = vpop.f32.mrb[0].mxu0
  %3495 = vmatprep.mubr.bf16.mxu0 %v2905
  %3496 = vmatmul.mubr.bf16.gmra.mrb[0].mxu0 %v2904
  %v3497 = vpop.f32.mrb[0].mxu0
  %v3498 = vadd.f32 %v3209, %v3497
  %v3499 = vpop.f32.mrb[0].mxu0
  %v3500 = vpop.f32.mrb[0].mxu0
  %v3501 = vadd.f32 %v3212, %v3500
  %v3502 = vpop.f32.mrb[0].mxu0
  %3503 = vmatprep.mubr.bf16.mxu0 %v2909
  %3504 = vmatmul.mubr.bf16.gmra.mrb[0].mxu0 %v2908
  %v3505 = vpop.f32.mrb[0].mxu0
  %v3506 = vadd.f32 %v3217, %v3505
  %v3507 = vpop.f32.mrb[0].mxu0
  %v3508 = vpop.f32.mrb[0].mxu0
  %v3509 = vadd.f32 %v3220, %v3508
  %v3510 = vpop.f32.mrb[0].mxu0
  %3511 = vmatprep.mubr.bf16.mxu0 %v2913
  %3512 = vmatmul.mubr.bf16.gmra.mrb[0].mxu0 %v2912
  %v3513 = vpop.f32.mrb[0].mxu0
  %v3514 = vadd.f32 %v3225, %v3513
  %v3515 = vpop.f32.mrb[0].mxu0
  %v3516 = vpop.f32.mrb[0].mxu0
  %v3517 = vadd.f32 %v3228, %v3516
  %v3518 = vpop.f32.mrb[0].mxu0
  %3519 = vmatprep.mubr.bf16.mxu0 %v2917
  %3520 = vmatmul.mubr.bf16.gmra.mrb[0].mxu0 %v2916
  %v3521 = vpop.f32.mrb[0].mxu0
  %v3522 = vadd.f32 %v3233, %v3521
  %v3523 = vpop.f32.mrb[0].mxu0
  %v3524 = vpop.f32.mrb[0].mxu0
  %v3525 = vadd.f32 %v3236, %v3524
  %v3526 = vpop.f32.mrb[0].mxu0
  %3527 = vmatprep.mubr.bf16.mxu0 %v2921
  %3528 = vmatmul.mubr.bf16.gmra.mrb[0].mxu0 %v2920
  %v3529 = vpop.f32.mrb[0].mxu0
  %v3530 = vadd.f32 %v3241, %v3529
  %v3531 = vpop.f32.mrb[0].mxu0
  %v3532 = vpop.f32.mrb[0].mxu0
  %v3533 = vadd.f32 %v3244, %v3532
  %v3534 = vpop.f32.mrb[0].mxu0
  %3535 = vmatprep.mubr.bf16.mxu0 %v2925
  %3536 = vmatmul.mubr.bf16.gmra.mrb[0].mxu0 %v2924
  %v3537 = vpop.f32.mrb[0].mxu0
  %v3538 = vadd.f32 %v3249, %v3537
  %v3539 = vpop.f32.mrb[0].mxu0
  %v3540 = vpop.f32.mrb[0].mxu0
  %v3541 = vadd.f32 %v3252, %v3540
  %v3542 = vpop.f32.mrb[0].mxu0
  %3543 = vmatprep.mubr.bf16.mxu0 %v2929
  %3544 = vmatmul.mubr.bf16.gmra.mrb[0].mxu0 %v2928
  %v3545 = vpop.f32.mrb[0].mxu0
  %v3546 = vadd.f32 %v3257, %v3545
  %v3547 = vpop.f32.mrb[0].mxu0
  %v3548 = vpop.f32.mrb[0].mxu0
  %v3549 = vadd.f32 %v3260, %v3548
  %v3550 = vpop.f32.mrb[0].mxu0
  %3551 = vmatprep.mubr.bf16.mxu0 %v2933
  %3552 = vmatmul.mubr.bf16.gmra.mrb[0].mxu0 %v2932
  %v3553 = vpop.f32.mrb[0].mxu0
  %v3554 = vadd.f32 %v3265, %v3553
  %v3555 = vpop.f32.mrb[0].mxu0
  %v3556 = vpop.f32.mrb[0].mxu0
  %v3557 = vadd.f32 %v3268, %v3556
  %v3558 = vpop.f32.mrb[0].mxu0
  %3559 = vmatprep.mubr.bf16.mxu0 %v2937
  %3560 = vmatmul.mubr.bf16.gmra.mrb[0].mxu0 %v2936
  %v3561 = vpop.f32.mrb[0].mxu0
  %v3562 = vadd.f32 %v3273, %v3561
  %v3563 = vpop.f32.mrb[0].mxu0
  %v3564 = vpop.f32.mrb[0].mxu0
  %v3565 = vadd.f32 %v3276, %v3564
  %v3566 = vpop.f32.mrb[0].mxu0
  %3567 = vmatprep.mubr.bf16.mxu0 %v2941
  %3568 = vmatmul.mubr.bf16.gmra.mrb[0].mxu0 %v2940
  %v3569 = vpop.f32.mrb[0].mxu0
  %v3570 = vadd.f32 %v3281, %v3569
  %v3571 = vpop.f32.mrb[0].mxu0
  %v3572 = vpop.f32.mrb[0].mxu0
  %v3573 = vadd.f32 %v3284, %v3572
  %v3574 = vpop.f32.mrb[0].mxu0
  %3575 = vmatprep.mubr.bf16.mxu0 %v2945
  %3576 = vmatmul.mubr.bf16.gmra.mrb[0].mxu0 %v2944
  %v3577 = vpop.f32.mrb[0].mxu0
  %v3578 = vadd.f32 %v3289, %v3577
  %v3579 = vpop.f32.mrb[0].mxu0
  %v3580 = vpop.f32.mrb[0].mxu0
  %v3581 = vadd.f32 %v3292, %v3580
  %v3582 = vpop.f32.mrb[0].mxu0
  %3583 = vmatprep.mubr.bf16.mxu0 %v2949
  %3584 = vmatmul.mubr.bf16.gmra.mrb[0].mxu0 %v2948
  %v3585 = vpop.f32.mrb[0].mxu0
  %v3586 = vadd.f32 %v3297, %v3585
  %v3587 = vpop.f32.mrb[0].mxu0
  %v3588 = vpop.f32.mrb[0].mxu0
  %v3589 = vadd.f32 %v3300, %v3588
  %v3590 = vpop.f32.mrb[0].mxu0
  %3591 = vmatprep.mubr.bf16.mxu0 %v2953
  %3592 = vmatmul.mubr.bf16.gmra.mrb[0].mxu0 %v2952
  %v3593 = vpop.f32.mrb[0].mxu0
  %v3594 = vadd.f32 %v3305, %v3593
  %v3595 = vpop.f32.mrb[0].mxu0
  %v3596 = vpop.f32.mrb[0].mxu0
  %v3597 = vadd.f32 %v3308, %v3596
  %v3598 = vpop.f32.mrb[0].mxu0
  %3599 = vmatprep.mubr.bf16.mxu0 %v2957
  %3600 = vmatmul.mubr.bf16.gmra.mrb[0].mxu0 %v2956
  %v3601 = vpop.f32.mrb[0].mxu0
  %v3602 = vadd.f32 %v3313, %v3601
  %v3603 = vpop.f32.mrb[0].mxu0
  %v3604 = vpop.f32.mrb[0].mxu0
  %v3605 = vadd.f32 %v3316, %v3604
  %v3606 = vpop.f32.mrb[0].mxu0
  %3607 = vmatprep.mubr.bf16.mxu0 %v2961
  %3608 = vmatmul.mubr.bf16.gmra.mrb[0].mxu0 %v2960
  %v3609 = vpop.f32.mrb[0].mxu0
  %v3610 = vadd.f32 %v3321, %v3609
  %v3611 = vpop.f32.mrb[0].mxu0
  %v3612 = vpop.f32.mrb[0].mxu0
  %v3613 = vadd.f32 %v3324, %v3612
  %v3614 = vpop.f32.mrb[0].mxu0
  %3615 = vmatprep.mubr.bf16.mxu0 %v2965
  %3616 = vmatmul.mubr.bf16.gmra.mrb[0].mxu0 %v2964
  %v3617 = vpop.f32.mrb[0].mxu0
  %v3618 = vadd.f32 %v3329, %v3617
  %v3619 = vpop.f32.mrb[0].mxu0
  %v3620 = vpop.f32.mrb[0].mxu0
  %v3621 = vadd.f32 %v3332, %v3620
  %v3622 = vpop.f32.mrb[0].mxu0
  %3623 = vmatprep.mubr.bf16.mxu0 %v2969
  %3624 = vmatmul.mubr.bf16.gmra.mrb[0].mxu0 %v2968
  %v3625 = vpop.f32.mrb[0].mxu0
  %v3626 = vadd.f32 %v3337, %v3625
  %v3627 = vpop.f32.mrb[0].mxu0
  %v3628 = vpop.f32.mrb[0].mxu0
  %v3629 = vadd.f32 %v3340, %v3628
  %v3630 = vpop.f32.mrb[0].mxu0
  %3631 = vmatprep.mubr.bf16.mxu0 %v2973
  %3632 = vmatmul.mubr.bf16.gmra.mrb[0].mxu0 %v2972
  %v3633 = vpop.f32.mrb[0].mxu0
  %v3634 = vadd.f32 %v3345, %v3633
  %v3635 = vpop.f32.mrb[0].mxu0
  %v3636 = vpop.f32.mrb[0].mxu0
  %v3637 = vadd.f32 %v3348, %v3636
  %v3638 = vpop.f32.mrb[0].mxu0
  %3639 = vmatprep.mubr.bf16.mxu0 %v2977
  %3640 = vmatmul.mubr.bf16.gmra.mrb[0].mxu0 %v2976
  %v3641 = vpop.f32.mrb[0].mxu0
  %v3642 = vadd.f32 %v3353, %v3641
  %v3643 = vpop.f32.mrb[0].mxu0
  %v3644 = vpop.f32.mrb[0].mxu0
  %v3645 = vadd.f32 %v3356, %v3644
  %v3646 = vpop.f32.mrb[0].mxu0
  %3647 = vmatprep.mubr.bf16.mxu0 %v2981
  %3648 = vmatmul.mubr.bf16.gmra.mrb[0].mxu0 %v2980
  %v3649 = vpop.f32.mrb[0].mxu0
  %v3650 = vadd.f32 %v3361, %v3649
  %v3651 = vpop.f32.mrb[0].mxu0
  %v3652 = vpop.f32.mrb[0].mxu0
  %v3653 = vadd.f32 %v3364, %v3652
  %v3654 = vpop.f32.mrb[0].mxu0
  %3655 = vmatprep.mubr.bf16.mxu0 %v2985
  %3656 = vmatmul.mubr.bf16.gmra.mrb[0].mxu0 %v2984
  %v3657 = vpop.f32.mrb[0].mxu0
  %v3658 = vadd.f32 %v3369, %v3657
  %v3659 = vpop.f32.mrb[0].mxu0
  %v3660 = vpop.f32.mrb[0].mxu0
  %v3661 = vadd.f32 %v3372, %v3660
  %v3662 = vpop.f32.mrb[0].mxu0
  %3663 = vmatprep.mubr.bf16.mxu0 %v2989
  %3664 = vmatmul.mubr.bf16.gmra.mrb[0].mxu0 %v2988
  %v3665 = vpop.f32.mrb[0].mxu0
  %v3666 = vadd.f32 %v3377, %v3665
  %v3667 = vpop.f32.mrb[0].mxu0
  %v3668 = vpop.f32.mrb[0].mxu0
  %v3669 = vadd.f32 %v3380, %v3668
  %v3670 = vpop.f32.mrb[0].mxu0
  %3671 = vmatprep.mubr.bf16.mxu0 %v2993
  %3672 = vmatmul.mubr.bf16.gmra.mrb[0].mxu0 %v2992
  %v3673 = vpop.f32.mrb[0].mxu0
  %v3674 = vadd.f32 %v3385, %v3673
  %v3675 = vpop.f32.mrb[0].mxu0
  %v3676 = vpop.f32.mrb[0].mxu0
  %v3677 = vadd.f32 %v3388, %v3676
  %v3678 = vpop.f32.mrb[0].mxu0
  %3679 = vmatprep.mubr.bf16.mxu0 %v2997
  %3680 = vmatmul.mubr.bf16.gmra.mrb[0].mxu0 %v2996
  %v3681 = vpop.f32.mrb[0].mxu0
  %v3682 = vadd.f32 %v3393, %v3681
  %v3683 = vpop.f32.mrb[0].mxu0
  %v3684 = vpop.f32.mrb[0].mxu0
  %v3685 = vadd.f32 %v3396, %v3684
  %v3686 = vpop.f32.mrb[0].mxu0
  %3687 = vmatprep.mubr.bf16.mxu0 %v3001
  %3688 = vmatmul.mubr.bf16.gmra.mrb[0].mxu0 %v3000
  %v3689 = vpop.f32.mrb[0].mxu0
  %v3690 = vadd.f32 %v3401, %v3689
  %v3691 = vpop.f32.mrb[0].mxu0
  %v3692 = vpop.f32.mrb[0].mxu0
  %v3693 = vadd.f32 %v3404, %v3692
  %v3694 = vpop.f32.mrb[0].mxu0
  %3695 = vmatprep.mubr.bf16.mxu0 %v3005
  %3696 = vmatmul.mubr.bf16.gmra.mrb[0].mxu0 %v3004
  %v3697 = vpop.f32.mrb[0].mxu0
  %v3698 = vadd.f32 %v3409, %v3697
  %v3699 = vpop.f32.mrb[0].mxu0
  %v3700 = vpop.f32.mrb[0].mxu0
  %v3701 = vadd.f32 %v3412, %v3700
  %v3702 = vpop.f32.mrb[0].mxu0
  %3703 = vmatprep.mubr.bf16.mxu0 %v3009
  %3704 = vmatmul.mubr.bf16.gmra.mrb[0].mxu0 %v3008
  %v3705 = vpop.f32.mrb[0].mxu0
  %v3706 = vadd.f32 %v3417, %v3705
  %v3707 = vpop.f32.mrb[0].mxu0
  %v3708 = vpop.f32.mrb[0].mxu0
  %v3709 = vadd.f32 %v3420, %v3708
  %v3710 = vpop.f32.mrb[0].mxu0
  %3711 = vmatprep.mubr.bf16.mxu0 %v3013
  %3712 = vmatmul.mubr.bf16.gmra.mrb[0].mxu0 %v3012
  %v3713 = vpop.f32.mrb[0].mxu0
  %v3714 = vadd.f32 %v3425, %v3713
  %v3715 = vpop.f32.mrb[0].mxu0
  %v3716 = vpop.f32.mrb[0].mxu0
  %v3717 = vadd.f32 %v3428, %v3716
  %v3718 = vpop.f32.mrb[0].mxu0
  %3719 = vdwg.mxu0
  %v3720 = vpack.c.bf16 %v3469, %v3466
  %v3721 = vpack.c.bf16 %v3477, %v3474
  %v3722 = vpack.c.bf16 %v3485, %v3482
  %v3723 = vpack.c.bf16 %v3493, %v3490
  %v3724 = vpack.c.bf16 %v3501, %v3498
  %v3725 = vpack.c.bf16 %v3509, %v3506
  %v3726 = vpack.c.bf16 %v3517, %v3514
  %v3727 = vpack.c.bf16 %v3525, %v3522
  %v3728 = vpack.c.bf16 %v3533, %v3530
  %v3729 = vpack.c.bf16 %v3541, %v3538
  %v3730 = vpack.c.bf16 %v3549, %v3546
  %v3731 = vpack.c.bf16 %v3557, %v3554
  %v3732 = vpack.c.bf16 %v3565, %v3562
  %v3733 = vpack.c.bf16 %v3573, %v3570
  %v3734 = vpack.c.bf16 %v3581, %v3578
  %v3735 = vpack.c.bf16 %v3589, %v3586
  %v3736 = vpack.c.bf16 %v3597, %v3594
  %v3737 = vpack.c.bf16 %v3605, %v3602
  %v3738 = vpack.c.bf16 %v3613, %v3610
  %v3739 = vpack.c.bf16 %v3621, %v3618
  %v3740 = vpack.c.bf16 %v3629, %v3626
  %v3741 = vpack.c.bf16 %v3637, %v3634
  %v3742 = vpack.c.bf16 %v3645, %v3642
  %v3743 = vpack.c.bf16 %v3653, %v3650
  %v3744 = vpack.c.bf16 %v3661, %v3658
  %v3745 = vpack.c.bf16 %v3669, %v3666
  %v3746 = vpack.c.bf16 %v3677, %v3674
  %v3747 = vpack.c.bf16 %v3685, %v3682
  %v3748 = vpack.c.bf16 %v3693, %v3690
  %v3749 = vpack.c.bf16 %v3701, %v3698
  %v3750 = vpack.c.bf16 %v3709, %v3706
  %v3751 = vpack.c.bf16 %v3717, %v3714
  %v3752 = vld [vmem:[%s4] sm:$0xf]
  %v3753 = vld [vmem:[%s4 + $0x4] sm:$0xf]
  %v3754 = vld [vmem:[%s4 + $0x8] sm:$0xf]
  %v3755 = vld [vmem:[%s4 + $0xc] sm:$0xf]
  %v3756 = vld [vmem:[%s4 + $0x10] sm:$0xf]
  %v3757 = vld [vmem:[%s4 + $0x14] sm:$0xf]
  %v3758 = vld [vmem:[%s4 + $0x18] sm:$0xf]
  %v3759 = vld [vmem:[%s4 + $0x1c] sm:$0xf]
  %v3760 = vld [vmem:[%s4 + $0x20] sm:$0xf]
  %v3761 = vld [vmem:[%s4 + $0x24] sm:$0xf]
  %v3762 = vld [vmem:[%s4 + $0x28] sm:$0xf]
  %v3763 = vld [vmem:[%s4 + $0x2c] sm:$0xf]
  %v3764 = vld [vmem:[%s4 + $0x30] sm:$0xf]
  %v3765 = vld [vmem:[%s4 + $0x34] sm:$0xf]
  %v3766 = vld [vmem:[%s4 + $0x38] sm:$0xf]
  %v3767 = vld [vmem:[%s4 + $0x3c] sm:$0xf]
  %v3768 = vld [vmem:[%s5] sm:$0x1]
  %v3770 = vlaneseq
  %v3771 = vshrl.u32 %v3770, 7
  %v3772 = vsub.s32 0, %v3771
  %v3773 = vrot.slane %v3768, %v3772
  %v3791 = vunpack.c.l.b16 %v3752
  %v3792 = vunpack.c.l.b16 %v3753
  %v3793 = vunpack.c.l.b16 %v3754
  %v3794 = vunpack.c.l.b16 %v3755
  %v3795 = vunpack.c.l.b16 %v3756
  %v3796 = vunpack.c.l.b16 %v3757
  %v3797 = vunpack.c.l.b16 %v3758
  %v3798 = vunpack.c.l.b16 %v3759
  %v3799 = vunpack.c.l.b16 %v3760
  %v3800 = vunpack.c.l.b16 %v3761
  %v3801 = vunpack.c.l.b16 %v3762
  %v3802 = vunpack.c.l.b16 %v3763
  %v3803 = vunpack.c.l.b16 %v3764
  %v3804 = vunpack.c.l.b16 %v3765
  %v3805 = vunpack.c.l.b16 %v3766
  %v3806 = vunpack.c.l.b16 %v3767
  %v3807 = vpack.c.b16 %v3792, %v3791
  %v3808 = vpack.c.b16 %v3794, %v3793
  %v3809 = vpack.c.b16 %v3796, %v3795
  %v3810 = vpack.c.b16 %v3798, %v3797
  %v3811 = vpack.c.b16 %v3800, %v3799
  %v3812 = vpack.c.b16 %v3802, %v3801
  %v3813 = vpack.c.b16 %v3804, %v3803
  %v3814 = vpack.c.b16 %v3806, %v3805
  %3823 = vmatprep.subr.bf16.mxu0 0
  %3824 = vmatpush1.bf16.msra.mxu0 %v3807
  %3825 = vmatprep.subr.bf16.mxu0 0
  %3826 = vmatpush1.bf16.msra.mxu0 %v3808
  %3827 = vmatprep.subr.bf16.mxu0 0
  %3828 = vmatpush1.bf16.msra.mxu0 %v3809
  %3829 = vmatprep.subr.bf16.mxu0 0
  %3830 = vmatpush1.bf16.msra.mxu0 %v3810
  %3831 = vmatprep.subr.bf16.mxu0 0
  %3832 = vmatpush1.bf16.msra.mxu0 %v3811
  %3833 = vmatprep.subr.bf16.mxu0 0
  %3834 = vmatpush1.bf16.msra.mxu0 %v3812
  %3835 = vmatprep.subr.bf16.mxu0 0
  %3836 = vmatpush1.bf16.msra.mxu0 %v3813
  %3837 = vmatprep.subr.bf16.mxu0 0
  %3838 = vmatpush1.bf16.msra.mxu0 %v3814
  %3839 = vmatprep.subr.bf16.mxu0 0
  %3840 = vmatpush1.bf16.msra.mxu0 0
  %3841 = vmatprep.subr.bf16.mxu0 0
  %3842 = vmatpush1.bf16.msra.mxu0 0
  %3843 = vmatprep.subr.bf16.mxu0 0
  %3844 = vmatpush1.bf16.msra.mxu0 0
  %3845 = vmatprep.subr.bf16.mxu0 0
  %3846 = vmatpush1.bf16.msra.mxu0 0
  %3847 = vmatprep.subr.bf16.mxu0 0
  %3848 = vmatpush1.bf16.msra.mxu0 0
  %3849 = vmatprep.subr.bf16.mxu0 0
  %3850 = vmatpush1.bf16.msra.mxu0 0
  %3851 = vmatprep.subr.bf16.mxu0 0
  %3852 = vmatpush1.bf16.msra.mxu0 0
  %3853 = vmatprep.subr.bf16.mxu0 0
  %3854 = vmatpush1.bf16.msra.mxu0 0
  %3855 = vmatprep.mubr.bf16.mxu0 0
  %3856 = vmatmul.mubr.bf16.gmra.mrb[0].mxu0 %v3720
  %v3857 = vpop.f32.mrb[0].mxu0
  %v3858 = vadd.f32 %v3773, %v3857
  %v3859 = vpop.f32.mrb[0].mxu0
  %v3860 = vpop.f32.mrb[0].mxu0
  %v3861 = vadd.f32 %v3773, %v3860
  %v3862 = vpop.f32.mrb[0].mxu0
  %3863 = vmatprep.mubr.bf16.mxu0 0
  %3864 = vmatmul.mubr.bf16.gmra.mrb[0].mxu0 %v3721
  %v3865 = vpop.f32.mrb[0].mxu0
  %v3866 = vadd.f32 %v3773, %v3865
  %v3867 = vpop.f32.mrb[0].mxu0
  %v3868 = vpop.f32.mrb[0].mxu0
  %v3869 = vadd.f32 %v3773, %v3868
  %v3870 = vpop.f32.mrb[0].mxu0
  %3871 = vmatprep.mubr.bf16.mxu0 0
  %3872 = vmatmul.mubr.bf16.gmra.mrb[0].mxu0 %v3722
  %v3873 = vpop.f32.mrb[0].mxu0
  %v3874 = vadd.f32 %v3773, %v3873
  %v3875 = vpop.f32.mrb[0].mxu0
  %v3876 = vpop.f32.mrb[0].mxu0
  %v3877 = vadd.f32 %v3773, %v3876
  %v3878 = vpop.f32.mrb[0].mxu0
  %3879 = vmatprep.mubr.bf16.mxu0 0
  %3880 = vmatmul.mubr.bf16.gmra.mrb[0].mxu0 %v3723
  %v3881 = vpop.f32.mrb[0].mxu0
  %v3882 = vadd.f32 %v3773, %v3881
  %v3883 = vpop.f32.mrb[0].mxu0
  %v3884 = vpop.f32.mrb[0].mxu0
  %v3885 = vadd.f32 %v3773, %v3884
  %v3886 = vpop.f32.mrb[0].mxu0
  %3887 = vmatprep.mubr.bf16.mxu0 0
  %3888 = vmatmul.mubr.bf16.gmra.mrb[0].mxu0 %v3724
  %v3889 = vpop.f32.mrb[0].mxu0
  %v3890 = vadd.f32 %v3773, %v3889
  %v3891 = vpop.f32.mrb[0].mxu0
  %v3892 = vpop.f32.mrb[0].mxu0
  %v3893 = vadd.f32 %v3773, %v3892
  %v3894 = vpop.f32.mrb[0].mxu0
  %3895 = vmatprep.mubr.bf16.mxu0 0
  %3896 = vmatmul.mubr.bf16.gmra.mrb[0].mxu0 %v3725
  %v3897 = vpop.f32.mrb[0].mxu0
  %v3898 = vadd.f32 %v3773, %v3897
  %v3899 = vpop.f32.mrb[0].mxu0
  %v3900 = vpop.f32.mrb[0].mxu0
  %v3901 = vadd.f32 %v3773, %v3900
  %v3902 = vpop.f32.mrb[0].mxu0
  %3903 = vmatprep.mubr.bf16.mxu0 0
  %3904 = vmatmul.mubr.bf16.gmra.mrb[0].mxu0 %v3726
  %v3905 = vpop.f32.mrb[0].mxu0
  %v3906 = vadd.f32 %v3773, %v3905
  %v3907 = vpop.f32.mrb[0].mxu0
  %v3908 = vpop.f32.mrb[0].mxu0
  %v3909 = vadd.f32 %v3773, %v3908
  %v3910 = vpop.f32.mrb[0].mxu0
  %3911 = vmatprep.mubr.bf16.mxu0 0
  %3912 = vmatmul.mubr.bf16.gmra.mrb[0].mxu0 %v3727
  %v3913 = vpop.f32.mrb[0].mxu0
  %v3914 = vadd.f32 %v3773, %v3913
  %v3915 = vpop.f32.mrb[0].mxu0
  %v3916 = vpop.f32.mrb[0].mxu0
  %v3917 = vadd.f32 %v3773, %v3916
  %v3918 = vpop.f32.mrb[0].mxu0
  %3919 = vmatprep.mubr.bf16.mxu0 0
  %3920 = vmatmul.mubr.bf16.gmra.mrb[0].mxu0 %v3728
  %v3921 = vpop.f32.mrb[0].mxu0
  %v3922 = vadd.f32 %v3773, %v3921
  %v3923 = vpop.f32.mrb[0].mxu0
  %v3924 = vpop.f32.mrb[0].mxu0
  %v3925 = vadd.f32 %v3773, %v3924
  %v3926 = vpop.f32.mrb[0].mxu0
  %3927 = vmatprep.mubr.bf16.mxu0 0
  %3928 = vmatmul.mubr.bf16.gmra.mrb[0].mxu0 %v3729
  %v3929 = vpop.f32.mrb[0].mxu0
  %v3930 = vadd.f32 %v3773, %v3929
  %v3931 = vpop.f32.mrb[0].mxu0
  %v3932 = vpop.f32.mrb[0].mxu0
  %v3933 = vadd.f32 %v3773, %v3932
  %v3934 = vpop.f32.mrb[0].mxu0
  %3935 = vmatprep.mubr.bf16.mxu0 0
  %3936 = vmatmul.mubr.bf16.gmra.mrb[0].mxu0 %v3730
  %v3937 = vpop.f32.mrb[0].mxu0
  %v3938 = vadd.f32 %v3773, %v3937
  %v3939 = vpop.f32.mrb[0].mxu0
  %v3940 = vpop.f32.mrb[0].mxu0
  %v3941 = vadd.f32 %v3773, %v3940
  %v3942 = vpop.f32.mrb[0].mxu0
  %3943 = vmatprep.mubr.bf16.mxu0 0
  %3944 = vmatmul.mubr.bf16.gmra.mrb[0].mxu0 %v3731
  %v3945 = vpop.f32.mrb[0].mxu0
  %v3946 = vadd.f32 %v3773, %v3945
  %v3947 = vpop.f32.mrb[0].mxu0
  %v3948 = vpop.f32.mrb[0].mxu0
  %v3949 = vadd.f32 %v3773, %v3948
  %v3950 = vpop.f32.mrb[0].mxu0
  %3951 = vmatprep.mubr.bf16.mxu0 0
  %3952 = vmatmul.mubr.bf16.gmra.mrb[0].mxu0 %v3732
  %v3953 = vpop.f32.mrb[0].mxu0
  %v3954 = vadd.f32 %v3773, %v3953
  %v3955 = vpop.f32.mrb[0].mxu0
  %v3956 = vpop.f32.mrb[0].mxu0
  %v3957 = vadd.f32 %v3773, %v3956
  %v3958 = vpop.f32.mrb[0].mxu0
  %3959 = vmatprep.mubr.bf16.mxu0 0
  %3960 = vmatmul.mubr.bf16.gmra.mrb[0].mxu0 %v3733
  %v3961 = vpop.f32.mrb[0].mxu0
  %v3962 = vadd.f32 %v3773, %v3961
  %v3963 = vpop.f32.mrb[0].mxu0
  %v3964 = vpop.f32.mrb[0].mxu0
  %v3965 = vadd.f32 %v3773, %v3964
  %v3966 = vpop.f32.mrb[0].mxu0
  %3967 = vmatprep.mubr.bf16.mxu0 0
  %3968 = vmatmul.mubr.bf16.gmra.mrb[0].mxu0 %v3734
  %v3969 = vpop.f32.mrb[0].mxu0
  %v3970 = vadd.f32 %v3773, %v3969
  %v3971 = vpop.f32.mrb[0].mxu0
  %v3972 = vpop.f32.mrb[0].mxu0
  %v3973 = vadd.f32 %v3773, %v3972
  %v3974 = vpop.f32.mrb[0].mxu0
  %3975 = vmatprep.mubr.bf16.mxu0 0
  %3976 = vmatmul.mubr.bf16.gmra.mrb[0].mxu0 %v3735
  %v3977 = vpop.f32.mrb[0].mxu0
  %v3978 = vadd.f32 %v3773, %v3977
  %v3979 = vpop.f32.mrb[0].mxu0
  %v3980 = vpop.f32.mrb[0].mxu0
  %v3981 = vadd.f32 %v3773, %v3980
  %v3982 = vpop.f32.mrb[0].mxu0
  %3983 = vmatprep.mubr.bf16.mxu0 0
  %3984 = vmatmul.mubr.bf16.gmra.mrb[0].mxu0 %v3736
  %v3985 = vpop.f32.mrb[0].mxu0
  %v3986 = vadd.f32 %v3773, %v3985
  %v3987 = vpop.f32.mrb[0].mxu0
  %v3988 = vpop.f32.mrb[0].mxu0
  %v3989 = vadd.f32 %v3773, %v3988
  %v3990 = vpop.f32.mrb[0].mxu0
  %3991 = vmatprep.mubr.bf16.mxu0 0
  %3992 = vmatmul.mubr.bf16.gmra.mrb[0].mxu0 %v3737
  %v3993 = vpop.f32.mrb[0].mxu0
  %v3994 = vadd.f32 %v3773, %v3993
  %v3995 = vpop.f32.mrb[0].mxu0
  %v3996 = vpop.f32.mrb[0].mxu0
  %v3997 = vadd.f32 %v3773, %v3996
  %v3998 = vpop.f32.mrb[0].mxu0
  %3999 = vmatprep.mubr.bf16.mxu0 0
  %4000 = vmatmul.mubr.bf16.gmra.mrb[0].mxu0 %v3738
  %v4001 = vpop.f32.mrb[0].mxu0
  %v4002 = vadd.f32 %v3773, %v4001
  %v4003 = vpop.f32.mrb[0].mxu0
  %v4004 = vpop.f32.mrb[0].mxu0
  %v4005 = vadd.f32 %v3773, %v4004
  %v4006 = vpop.f32.mrb[0].mxu0
  %4007 = vmatprep.mubr.bf16.mxu0 0
  %4008 = vmatmul.mubr.bf16.gmra.mrb[0].mxu0 %v3739
  %v4009 = vpop.f32.mrb[0].mxu0
  %v4010 = vadd.f32 %v3773, %v4009
  %v4011 = vpop.f32.mrb[0].mxu0
  %v4012 = vpop.f32.mrb[0].mxu0
  %v4013 = vadd.f32 %v3773, %v4012
  %v4014 = vpop.f32.mrb[0].mxu0
  %4015 = vmatprep.mubr.bf16.mxu0 0
  %4016 = vmatmul.mubr.bf16.gmra.mrb[0].mxu0 %v3740
  %v4017 = vpop.f32.mrb[0].mxu0
  %v4018 = vadd.f32 %v3773, %v4017
  %v4019 = vpop.f32.mrb[0].mxu0
  %v4020 = vpop.f32.mrb[0].mxu0
  %v4021 = vadd.f32 %v3773, %v4020
  %v4022 = vpop.f32.mrb[0].mxu0
  %4023 = vmatprep.mubr.bf16.mxu0 0
  %4024 = vmatmul.mubr.bf16.gmra.mrb[0].mxu0 %v3741
  %v4025 = vpop.f32.mrb[0].mxu0
  %v4026 = vadd.f32 %v3773, %v4025
  %v4027 = vpop.f32.mrb[0].mxu0
  %v4028 = vpop.f32.mrb[0].mxu0
  %v4029 = vadd.f32 %v3773, %v4028
  %v4030 = vpop.f32.mrb[0].mxu0
  %4031 = vmatprep.mubr.bf16.mxu0 0
  %4032 = vmatmul.mubr.bf16.gmra.mrb[0].mxu0 %v3742
  %v4033 = vpop.f32.mrb[0].mxu0
  %v4034 = vadd.f32 %v3773, %v4033
  %v4035 = vpop.f32.mrb[0].mxu0
  %v4036 = vpop.f32.mrb[0].mxu0
  %v4037 = vadd.f32 %v3773, %v4036
  %v4038 = vpop.f32.mrb[0].mxu0
  %4039 = vmatprep.mubr.bf16.mxu0 0
  %4040 = vmatmul.mubr.bf16.gmra.mrb[0].mxu0 %v3743
  %v4041 = vpop.f32.mrb[0].mxu0
  %v4042 = vadd.f32 %v3773, %v4041
  %v4043 = vpop.f32.mrb[0].mxu0
  %v4044 = vpop.f32.mrb[0].mxu0
  %v4045 = vadd.f32 %v3773, %v4044
  %v4046 = vpop.f32.mrb[0].mxu0
  %4047 = vmatprep.mubr.bf16.mxu0 0
  %4048 = vmatmul.mubr.bf16.gmra.mrb[0].mxu0 %v3744
  %v4049 = vpop.f32.mrb[0].mxu0
  %v4050 = vadd.f32 %v3773, %v4049
  %v4051 = vpop.f32.mrb[0].mxu0
  %v4052 = vpop.f32.mrb[0].mxu0
  %v4053 = vadd.f32 %v3773, %v4052
  %v4054 = vpop.f32.mrb[0].mxu0
  %4055 = vmatprep.mubr.bf16.mxu0 0
  %4056 = vmatmul.mubr.bf16.gmra.mrb[0].mxu0 %v3745
  %v4057 = vpop.f32.mrb[0].mxu0
  %v4058 = vadd.f32 %v3773, %v4057
  %v4059 = vpop.f32.mrb[0].mxu0
  %v4060 = vpop.f32.mrb[0].mxu0
  %v4061 = vadd.f32 %v3773, %v4060
  %v4062 = vpop.f32.mrb[0].mxu0
  %4063 = vmatprep.mubr.bf16.mxu0 0
  %4064 = vmatmul.mubr.bf16.gmra.mrb[0].mxu0 %v3746
  %v4065 = vpop.f32.mrb[0].mxu0
  %v4066 = vadd.f32 %v3773, %v4065
  %v4067 = vpop.f32.mrb[0].mxu0
  %v4068 = vpop.f32.mrb[0].mxu0
  %v4069 = vadd.f32 %v3773, %v4068
  %v4070 = vpop.f32.mrb[0].mxu0
  %4071 = vmatprep.mubr.bf16.mxu0 0
  %4072 = vmatmul.mubr.bf16.gmra.mrb[0].mxu0 %v3747
  %v4073 = vpop.f32.mrb[0].mxu0
  %v4074 = vadd.f32 %v3773, %v4073
  %v4075 = vpop.f32.mrb[0].mxu0
  %v4076 = vpop.f32.mrb[0].mxu0
  %v4077 = vadd.f32 %v3773, %v4076
  %v4078 = vpop.f32.mrb[0].mxu0
  %4079 = vmatprep.mubr.bf16.mxu0 0
  %4080 = vmatmul.mubr.bf16.gmra.mrb[0].mxu0 %v3748
  %v4081 = vpop.f32.mrb[0].mxu0
  %v4082 = vadd.f32 %v3773, %v4081
  %v4083 = vpop.f32.mrb[0].mxu0
  %v4084 = vpop.f32.mrb[0].mxu0
  %v4085 = vadd.f32 %v3773, %v4084
  %v4086 = vpop.f32.mrb[0].mxu0
  %4087 = vmatprep.mubr.bf16.mxu0 0
  %4088 = vmatmul.mubr.bf16.gmra.mrb[0].mxu0 %v3749
  %v4089 = vpop.f32.mrb[0].mxu0
  %v4090 = vadd.f32 %v3773, %v4089
  %v4091 = vpop.f32.mrb[0].mxu0
  %v4092 = vpop.f32.mrb[0].mxu0
  %v4093 = vadd.f32 %v3773, %v4092
  %v4094 = vpop.f32.mrb[0].mxu0
  %4095 = vmatprep.mubr.bf16.mxu0 0
  %4096 = vmatmul.mubr.bf16.gmra.mrb[0].mxu0 %v3750
  %v4097 = vpop.f32.mrb[0].mxu0
  %v4098 = vadd.f32 %v3773, %v4097
  %v4099 = vpop.f32.mrb[0].mxu0
  %v4100 = vpop.f32.mrb[0].mxu0
  %v4101 = vadd.f32 %v3773, %v4100
  %v4102 = vpop.f32.mrb[0].mxu0
  %4103 = vmatprep.mubr.bf16.mxu0 0
  %4104 = vmatmul.mubr.bf16.gmra.mrb[0].mxu0 %v3751
  %v4105 = vpop.f32.mrb[0].mxu0
  %v4106 = vadd.f32 %v3773, %v4105
  %v4107 = vpop.f32.mrb[0].mxu0
  %v4108 = vpop.f32.mrb[0].mxu0
  %v4109 = vadd.f32 %v3773, %v4108
  %v4110 = vpop.f32.mrb[0].mxu0
  %4111 = vdwg.mxu0
  %v4112 = vld [vmem:[%s6] sm:$0x1]
  %v4114 = vlaneseq
  %v4115 = vshrl.u32 %v4114, 7
  %v4116 = vsub.s32 0, %v4115
  %v4117 = vrot.slane %v4112, %v4116
  %v4119 = vadd.f32 %v3858, %v4117
  %v4120 = vadd.f32 %v3861, %v4117
  %v4121 = vadd.f32 %v3866, %v4117
  %v4122 = vadd.f32 %v3869, %v4117
  %v4123 = vadd.f32 %v3874, %v4117
  %v4124 = vadd.f32 %v3877, %v4117
  %v4125 = vadd.f32 %v3882, %v4117
  %v4126 = vadd.f32 %v3885, %v4117
  %v4127 = vadd.f32 %v3890, %v4117
  %v4128 = vadd.f32 %v3893, %v4117
  %v4129 = vadd.f32 %v3898, %v4117
  %v4130 = vadd.f32 %v3901, %v4117
  %v4131 = vadd.f32 %v3906, %v4117
  %v4132 = vadd.f32 %v3909, %v4117
  %v4133 = vadd.f32 %v3914, %v4117
  %v4134 = vadd.f32 %v3917, %v4117
  %v4135 = vadd.f32 %v3922, %v4117
  %v4136 = vadd.f32 %v3925, %v4117
  %v4137 = vadd.f32 %v3930, %v4117
  %v4138 = vadd.f32 %v3933, %v4117
  %v4139 = vadd.f32 %v3938, %v4117
  %v4140 = vadd.f32 %v3941, %v4117
  %v4141 = vadd.f32 %v3946, %v4117
  %v4142 = vadd.f32 %v3949, %v4117
  %v4143 = vadd.f32 %v3954, %v4117
  %v4144 = vadd.f32 %v3957, %v4117
  %v4145 = vadd.f32 %v3962, %v4117
  %v4146 = vadd.f32 %v3965, %v4117
  %v4147 = vadd.f32 %v3970, %v4117
  %v4148 = vadd.f32 %v3973, %v4117
  %v4149 = vadd.f32 %v3978, %v4117
  %v4150 = vadd.f32 %v3981, %v4117
  %v4151 = vadd.f32 %v3986, %v4117
  %v4152 = vadd.f32 %v3989, %v4117
  %v4153 = vadd.f32 %v3994, %v4117
  %v4154 = vadd.f32 %v3997, %v4117
  %v4155 = vadd.f32 %v4002, %v4117
  %v4156 = vadd.f32 %v4005, %v4117
  %v4157 = vadd.f32 %v4010, %v4117
  %v4158 = vadd.f32 %v4013, %v4117
  %v4159 = vadd.f32 %v4018, %v4117
  %v4160 = vadd.f32 %v4021, %v4117
  %v4161 = vadd.f32 %v4026, %v4117
  %v4162 = vadd.f32 %v4029, %v4117
  %v4163 = vadd.f32 %v4034, %v4117
  %v4164 = vadd.f32 %v4037, %v4117
  %v4165 = vadd.f32 %v4042, %v4117
  %v4166 = vadd.f32 %v4045, %v4117
  %v4167 = vadd.f32 %v4050, %v4117
  %v4168 = vadd.f32 %v4053, %v4117
  %v4169 = vadd.f32 %v4058, %v4117
  %v4170 = vadd.f32 %v4061, %v4117
  %v4171 = vadd.f32 %v4066, %v4117
  %v4172 = vadd.f32 %v4069, %v4117
  %v4173 = vadd.f32 %v4074, %v4117
  %v4174 = vadd.f32 %v4077, %v4117
  %v4175 = vadd.f32 %v4082, %v4117
  %v4176 = vadd.f32 %v4085, %v4117
  %v4177 = vadd.f32 %v4090, %v4117
  %v4178 = vadd.f32 %v4093, %v4117
  %v4179 = vadd.f32 %v4098, %v4117
  %v4180 = vadd.f32 %v4101, %v4117
  %v4181 = vadd.f32 %v4106, %v4117
  %v4182 = vadd.f32 %v4109, %v4117
  %4183 = vmax.xlane.f32.xlu0 %v4119
  %v4184 = vpop.xlane.xlu0 %4183
  %4185 = vmax.xlane.f32.xlu0 %v4120
  %v4186 = vpop.xlane.xlu0 %4185
  %4187 = vmax.xlane.f32.xlu0 %v4121
  %v4188 = vpop.xlane.xlu0 %4187
  %4189 = vmax.xlane.f32.xlu0 %v4122
  %v4190 = vpop.xlane.xlu0 %4189
  %4191 = vmax.xlane.f32.xlu0 %v4123
  %v4192 = vpop.xlane.xlu0 %4191
  %4193 = vmax.xlane.f32.xlu0 %v4124
  %v4194 = vpop.xlane.xlu0 %4193
  %4195 = vmax.xlane.f32.xlu0 %v4125
  %v4196 = vpop.xlane.xlu0 %4195
  %4197 = vmax.xlane.f32.xlu0 %v4126
  %v4198 = vpop.xlane.xlu0 %4197
  %4199 = vmax.xlane.f32.xlu0 %v4127
  %v4200 = vpop.xlane.xlu0 %4199
  %4201 = vmax.xlane.f32.xlu0 %v4128
  %v4202 = vpop.xlane.xlu0 %4201
  %4203 = vmax.xlane.f32.xlu0 %v4129
  %v4204 = vpop.xlane.xlu0 %4203
  %4205 = vmax.xlane.f32.xlu0 %v4130
  %v4206 = vpop.xlane.xlu0 %4205
  %4207 = vmax.xlane.f32.xlu0 %v4131
  %v4208 = vpop.xlane.xlu0 %4207
  %4209 = vmax.xlane.f32.xlu0 %v4132
  %v4210 = vpop.xlane.xlu0 %4209
  %4211 = vmax.xlane.f32.xlu0 %v4133
  %v4212 = vpop.xlane.xlu0 %4211
  %4213 = vmax.xlane.f32.xlu0 %v4134
  %v4214 = vpop.xlane.xlu0 %4213
  %4215 = vmax.xlane.f32.xlu0 %v4135
  %v4216 = vpop.xlane.xlu0 %4215
  %4217 = vmax.xlane.f32.xlu0 %v4136
  %v4218 = vpop.xlane.xlu0 %4217
  %4219 = vmax.xlane.f32.xlu0 %v4137
  %v4220 = vpop.xlane.xlu0 %4219
  %4221 = vmax.xlane.f32.xlu0 %v4138
  %v4222 = vpop.xlane.xlu0 %4221
  %4223 = vmax.xlane.f32.xlu0 %v4139
  %v4224 = vpop.xlane.xlu0 %4223
  %4225 = vmax.xlane.f32.xlu0 %v4140
  %v4226 = vpop.xlane.xlu0 %4225
  %4227 = vmax.xlane.f32.xlu0 %v4141
  %v4228 = vpop.xlane.xlu0 %4227
  %4229 = vmax.xlane.f32.xlu0 %v4142
  %v4230 = vpop.xlane.xlu0 %4229
  %4231 = vmax.xlane.f32.xlu0 %v4143
  %v4232 = vpop.xlane.xlu0 %4231
  %4233 = vmax.xlane.f32.xlu0 %v4144
  %v4234 = vpop.xlane.xlu0 %4233
  %4235 = vmax.xlane.f32.xlu0 %v4145
  %v4236 = vpop.xlane.xlu0 %4235
  %4237 = vmax.xlane.f32.xlu0 %v4146
  %v4238 = vpop.xlane.xlu0 %4237
  %4239 = vmax.xlane.f32.xlu0 %v4147
  %v4240 = vpop.xlane.xlu0 %4239
  %4241 = vmax.xlane.f32.xlu0 %v4148
  %v4242 = vpop.xlane.xlu0 %4241
  %4243 = vmax.xlane.f32.xlu0 %v4149
  %v4244 = vpop.xlane.xlu0 %4243
  %4245 = vmax.xlane.f32.xlu0 %v4150
  %v4246 = vpop.xlane.xlu0 %4245
  %4247 = vmax.xlane.f32.xlu0 %v4151
  %v4248 = vpop.xlane.xlu0 %4247
  %4249 = vmax.xlane.f32.xlu0 %v4152
  %v4250 = vpop.xlane.xlu0 %4249
  %4251 = vmax.xlane.f32.xlu0 %v4153
  %v4252 = vpop.xlane.xlu0 %4251
  %4253 = vmax.xlane.f32.xlu0 %v4154
  %v4254 = vpop.xlane.xlu0 %4253
  %4255 = vmax.xlane.f32.xlu0 %v4155
  %v4256 = vpop.xlane.xlu0 %4255
  %4257 = vmax.xlane.f32.xlu0 %v4156
  %v4258 = vpop.xlane.xlu0 %4257
  %4259 = vmax.xlane.f32.xlu0 %v4157
  %v4260 = vpop.xlane.xlu0 %4259
  %4261 = vmax.xlane.f32.xlu0 %v4158
  %v4262 = vpop.xlane.xlu0 %4261
  %4263 = vmax.xlane.f32.xlu0 %v4159
  %v4264 = vpop.xlane.xlu0 %4263
  %4265 = vmax.xlane.f32.xlu0 %v4160
  %v4266 = vpop.xlane.xlu0 %4265
  %4267 = vmax.xlane.f32.xlu0 %v4161
  %v4268 = vpop.xlane.xlu0 %4267
  %4269 = vmax.xlane.f32.xlu0 %v4162
  %v4270 = vpop.xlane.xlu0 %4269
  %4271 = vmax.xlane.f32.xlu0 %v4163
  %v4272 = vpop.xlane.xlu0 %4271
  %4273 = vmax.xlane.f32.xlu0 %v4164
  %v4274 = vpop.xlane.xlu0 %4273
  %4275 = vmax.xlane.f32.xlu0 %v4165
  %v4276 = vpop.xlane.xlu0 %4275
  %4277 = vmax.xlane.f32.xlu0 %v4166
  %v4278 = vpop.xlane.xlu0 %4277
  %4279 = vmax.xlane.f32.xlu0 %v4167
  %v4280 = vpop.xlane.xlu0 %4279
  %4281 = vmax.xlane.f32.xlu0 %v4168
  %v4282 = vpop.xlane.xlu0 %4281
  %4283 = vmax.xlane.f32.xlu0 %v4169
  %v4284 = vpop.xlane.xlu0 %4283
  %4285 = vmax.xlane.f32.xlu0 %v4170
  %v4286 = vpop.xlane.xlu0 %4285
  %4287 = vmax.xlane.f32.xlu0 %v4171
  %v4288 = vpop.xlane.xlu0 %4287
  %4289 = vmax.xlane.f32.xlu0 %v4172
  %v4290 = vpop.xlane.xlu0 %4289
  %4291 = vmax.xlane.f32.xlu0 %v4173
  %v4292 = vpop.xlane.xlu0 %4291
  %4293 = vmax.xlane.f32.xlu0 %v4174
  %v4294 = vpop.xlane.xlu0 %4293
  %4295 = vmax.xlane.f32.xlu0 %v4175
  %v4296 = vpop.xlane.xlu0 %4295
  %4297 = vmax.xlane.f32.xlu0 %v4176
  %v4298 = vpop.xlane.xlu0 %4297
  %4299 = vmax.xlane.f32.xlu0 %v4177
  %v4300 = vpop.xlane.xlu0 %4299
  %4301 = vmax.xlane.f32.xlu0 %v4178
  %v4302 = vpop.xlane.xlu0 %4301
  %4303 = vmax.xlane.f32.xlu0 %v4179
  %v4304 = vpop.xlane.xlu0 %4303
  %4305 = vmax.xlane.f32.xlu0 %v4180
  %v4306 = vpop.xlane.xlu0 %4305
  %4307 = vmax.xlane.f32.xlu0 %v4181
  %v4308 = vpop.xlane.xlu0 %4307
  %4309 = vmax.xlane.f32.xlu0 %v4182
  %v4310 = vpop.xlane.xlu0 %4309
  %v4311 = vsub.f32 %v4119, %v4184
  %v4312 = vsub.f32 %v4120, %v4186
  %v4313 = vsub.f32 %v4121, %v4188
  %v4314 = vsub.f32 %v4122, %v4190
  %v4315 = vsub.f32 %v4123, %v4192
  %v4316 = vsub.f32 %v4124, %v4194
  %v4317 = vsub.f32 %v4125, %v4196
  %v4318 = vsub.f32 %v4126, %v4198
  %v4319 = vsub.f32 %v4127, %v4200
  %v4320 = vsub.f32 %v4128, %v4202
  %v4321 = vsub.f32 %v4129, %v4204
  %v4322 = vsub.f32 %v4130, %v4206
  %v4323 = vsub.f32 %v4131, %v4208
  %v4324 = vsub.f32 %v4132, %v4210
  %v4325 = vsub.f32 %v4133, %v4212
  %v4326 = vsub.f32 %v4134, %v4214
  %v4327 = vsub.f32 %v4135, %v4216
  %v4328 = vsub.f32 %v4136, %v4218
  %v4329 = vsub.f32 %v4137, %v4220
  %v4330 = vsub.f32 %v4138, %v4222
  %v4331 = vsub.f32 %v4139, %v4224
  %v4332 = vsub.f32 %v4140, %v4226
  %v4333 = vsub.f32 %v4141, %v4228
  %v4334 = vsub.f32 %v4142, %v4230
  %v4335 = vsub.f32 %v4143, %v4232
  %v4336 = vsub.f32 %v4144, %v4234
  %v4337 = vsub.f32 %v4145, %v4236
  %v4338 = vsub.f32 %v4146, %v4238
  %v4339 = vsub.f32 %v4147, %v4240
  %v4340 = vsub.f32 %v4148, %v4242
  %v4341 = vsub.f32 %v4149, %v4244
  %v4342 = vsub.f32 %v4150, %v4246
  %v4343 = vsub.f32 %v4151, %v4248
  %v4344 = vsub.f32 %v4152, %v4250
  %v4345 = vsub.f32 %v4153, %v4252
  %v4346 = vsub.f32 %v4154, %v4254
  %v4347 = vsub.f32 %v4155, %v4256
  %v4348 = vsub.f32 %v4156, %v4258
  %v4349 = vsub.f32 %v4157, %v4260
  %v4350 = vsub.f32 %v4158, %v4262
  %v4351 = vsub.f32 %v4159, %v4264
  %v4352 = vsub.f32 %v4160, %v4266
  %v4353 = vsub.f32 %v4161, %v4268
  %v4354 = vsub.f32 %v4162, %v4270
  %v4355 = vsub.f32 %v4163, %v4272
  %v4356 = vsub.f32 %v4164, %v4274
  %v4357 = vsub.f32 %v4165, %v4276
  %v4358 = vsub.f32 %v4166, %v4278
  %v4359 = vsub.f32 %v4167, %v4280
  %v4360 = vsub.f32 %v4168, %v4282
  %v4361 = vsub.f32 %v4169, %v4284
  %v4362 = vsub.f32 %v4170, %v4286
  %v4363 = vsub.f32 %v4171, %v4288
  %v4364 = vsub.f32 %v4172, %v4290
  %v4365 = vsub.f32 %v4173, %v4292
  %v4366 = vsub.f32 %v4174, %v4294
  %v4367 = vsub.f32 %v4175, %v4296
  %v4368 = vsub.f32 %v4176, %v4298
  %v4369 = vsub.f32 %v4177, %v4300
  %v4370 = vsub.f32 %v4178, %v4302
  %v4371 = vsub.f32 %v4179, %v4304
  %v4372 = vsub.f32 %v4180, %v4306
  %v4373 = vsub.f32 %v4181, %v4308
  %v4374 = vsub.f32 %v4182, %v4310
  %v4375 = vmul.f32 %v4311, 1.442695
  %v4376 = vpow.pop %v4375
  %v4377 = vmul.f32 %v4312, 1.442695
  %v4378 = vpow.pop %v4377
  %v4379 = vmul.f32 %v4313, 1.442695
  %v4380 = vpow.pop %v4379
  %v4381 = vmul.f32 %v4314, 1.442695
  %v4382 = vpow.pop %v4381
  %v4383 = vmul.f32 %v4315, 1.442695
  %v4384 = vpow.pop %v4383
  %v4385 = vmul.f32 %v4316, 1.442695
  %v4386 = vpow.pop %v4385
  %v4387 = vmul.f32 %v4317, 1.442695
  %v4388 = vpow.pop %v4387
  %v4389 = vmul.f32 %v4318, 1.442695
  %v4390 = vpow.pop %v4389
  %v4391 = vmul.f32 %v4319, 1.442695
  %v4392 = vpow.pop %v4391
  %v4393 = vmul.f32 %v4320, 1.442695
  %v4394 = vpow.pop %v4393
  %v4395 = vmul.f32 %v4321, 1.442695
  %v4396 = vpow.pop %v4395
  %v4397 = vmul.f32 %v4322, 1.442695
  %v4398 = vpow.pop %v4397
  %v4399 = vmul.f32 %v4323, 1.442695
  %v4400 = vpow.pop %v4399
  %v4401 = vmul.f32 %v4324, 1.442695
  %v4402 = vpow.pop %v4401
  %v4403 = vmul.f32 %v4325, 1.442695
  %v4404 = vpow.pop %v4403
  %v4405 = vmul.f32 %v4326, 1.442695
  %v4406 = vpow.pop %v4405
  %v4407 = vmul.f32 %v4327, 1.442695
  %v4408 = vpow.pop %v4407
  %v4409 = vmul.f32 %v4328, 1.442695
  %v4410 = vpow.pop %v4409
  %v4411 = vmul.f32 %v4329, 1.442695
  %v4412 = vpow.pop %v4411
  %v4413 = vmul.f32 %v4330, 1.442695
  %v4414 = vpow.pop %v4413
  %v4415 = vmul.f32 %v4331, 1.442695
  %v4416 = vpow.pop %v4415
  %v4417 = vmul.f32 %v4332, 1.442695
  %v4418 = vpow.pop %v4417
  %v4419 = vmul.f32 %v4333, 1.442695
  %v4420 = vpow.pop %v4419
  %v4421 = vmul.f32 %v4334, 1.442695
  %v4422 = vpow.pop %v4421
  %v4423 = vmul.f32 %v4335, 1.442695
  %v4424 = vpow.pop %v4423
  %v4425 = vmul.f32 %v4336, 1.442695
  %v4426 = vpow.pop %v4425
  %v4427 = vmul.f32 %v4337, 1.442695
  %v4428 = vpow.pop %v4427
  %v4429 = vmul.f32 %v4338, 1.442695
  %v4430 = vpow.pop %v4429
  %v4431 = vmul.f32 %v4339, 1.442695
  %v4432 = vpow.pop %v4431
  %v4433 = vmul.f32 %v4340, 1.442695
  %v4434 = vpow.pop %v4433
  %v4435 = vmul.f32 %v4341, 1.442695
  %v4436 = vpow.pop %v4435
  %v4437 = vmul.f32 %v4342, 1.442695
  %v4438 = vpow.pop %v4437
  %v4439 = vmul.f32 %v4343, 1.442695
  %v4440 = vpow.pop %v4439
  %v4441 = vmul.f32 %v4344, 1.442695
  %v4442 = vpow.pop %v4441
  %v4443 = vmul.f32 %v4345, 1.442695
  %v4444 = vpow.pop %v4443
  %v4445 = vmul.f32 %v4346, 1.442695
  %v4446 = vpow.pop %v4445
  %v4447 = vmul.f32 %v4347, 1.442695
  %v4448 = vpow.pop %v4447
  %v4449 = vmul.f32 %v4348, 1.442695
  %v4450 = vpow.pop %v4449
  %v4451 = vmul.f32 %v4349, 1.442695
  %v4452 = vpow.pop %v4451
  %v4453 = vmul.f32 %v4350, 1.442695
  %v4454 = vpow.pop %v4453
  %v4455 = vmul.f32 %v4351, 1.442695
  %v4456 = vpow.pop %v4455
  %v4457 = vmul.f32 %v4352, 1.442695
  %v4458 = vpow.pop %v4457
  %v4459 = vmul.f32 %v4353, 1.442695
  %v4460 = vpow.pop %v4459
  %v4461 = vmul.f32 %v4354, 1.442695
  %v4462 = vpow.pop %v4461
  %v4463 = vmul.f32 %v4355, 1.442695
  %v4464 = vpow.pop %v4463
  %v4465 = vmul.f32 %v4356, 1.442695
  %v4466 = vpow.pop %v4465
  %v4467 = vmul.f32 %v4357, 1.442695
  %v4468 = vpow.pop %v4467
  %v4469 = vmul.f32 %v4358, 1.442695
  %v4470 = vpow.pop %v4469
  %v4471 = vmul.f32 %v4359, 1.442695
  %v4472 = vpow.pop %v4471
  %v4473 = vmul.f32 %v4360, 1.442695
  %v4474 = vpow.pop %v4473
  %v4475 = vmul.f32 %v4361, 1.442695
  %v4476 = vpow.pop %v4475
  %v4477 = vmul.f32 %v4362, 1.442695
  %v4478 = vpow.pop %v4477
  %v4479 = vmul.f32 %v4363, 1.442695
  %v4480 = vpow.pop %v4479
  %v4481 = vmul.f32 %v4364, 1.442695
  %v4482 = vpow.pop %v4481
  %v4483 = vmul.f32 %v4365, 1.442695
  %v4484 = vpow.pop %v4483
  %v4485 = vmul.f32 %v4366, 1.442695
  %v4486 = vpow.pop %v4485
  %v4487 = vmul.f32 %v4367, 1.442695
  %v4488 = vpow.pop %v4487
  %v4489 = vmul.f32 %v4368, 1.442695
  %v4490 = vpow.pop %v4489
  %v4491 = vmul.f32 %v4369, 1.442695
  %v4492 = vpow.pop %v4491
  %v4493 = vmul.f32 %v4370, 1.442695
  %v4494 = vpow.pop %v4493
  %v4495 = vmul.f32 %v4371, 1.442695
  %v4496 = vpow.pop %v4495
  %v4497 = vmul.f32 %v4372, 1.442695
  %v4498 = vpow.pop %v4497
  %v4499 = vmul.f32 %v4373, 1.442695
  %v4500 = vpow.pop %v4499
  %v4501 = vmul.f32 %v4374, 1.442695
  %v4502 = vpow.pop %v4501
  %4503 = vadd.xlane.f32.xlu0 %v4376
  %v4504 = vpop.xlane.xlu0 %4503
  %4505 = vadd.xlane.f32.xlu0 %v4378
  %v4506 = vpop.xlane.xlu0 %4505
  %4507 = vadd.xlane.f32.xlu0 %v4380
  %v4508 = vpop.xlane.xlu0 %4507
  %4509 = vadd.xlane.f32.xlu0 %v4382
  %v4510 = vpop.xlane.xlu0 %4509
  %4511 = vadd.xlane.f32.xlu0 %v4384
  %v4512 = vpop.xlane.xlu0 %4511
  %4513 = vadd.xlane.f32.xlu0 %v4386
  %v4514 = vpop.xlane.xlu0 %4513
  %4515 = vadd.xlane.f32.xlu0 %v4388
  %v4516 = vpop.xlane.xlu0 %4515
  %4517 = vadd.xlane.f32.xlu0 %v4390
  %v4518 = vpop.xlane.xlu0 %4517
  %4519 = vadd.xlane.f32.xlu0 %v4392
  %v4520 = vpop.xlane.xlu0 %4519
  %4521 = vadd.xlane.f32.xlu0 %v4394
  %v4522 = vpop.xlane.xlu0 %4521
  %4523 = vadd.xlane.f32.xlu0 %v4396
  %v4524 = vpop.xlane.xlu0 %4523
  %4525 = vadd.xlane.f32.xlu0 %v4398
  %v4526 = vpop.xlane.xlu0 %4525
  %4527 = vadd.xlane.f32.xlu0 %v4400
  %v4528 = vpop.xlane.xlu0 %4527
  %4529 = vadd.xlane.f32.xlu0 %v4402
  %v4530 = vpop.xlane.xlu0 %4529
  %4531 = vadd.xlane.f32.xlu0 %v4404
  %v4532 = vpop.xlane.xlu0 %4531
  %4533 = vadd.xlane.f32.xlu0 %v4406
  %v4534 = vpop.xlane.xlu0 %4533
  %4535 = vadd.xlane.f32.xlu0 %v4408
  %v4536 = vpop.xlane.xlu0 %4535
  %4537 = vadd.xlane.f32.xlu0 %v4410
  %v4538 = vpop.xlane.xlu0 %4537
  %4539 = vadd.xlane.f32.xlu0 %v4412
  %v4540 = vpop.xlane.xlu0 %4539
  %4541 = vadd.xlane.f32.xlu0 %v4414
  %v4542 = vpop.xlane.xlu0 %4541
  %4543 = vadd.xlane.f32.xlu0 %v4416
  %v4544 = vpop.xlane.xlu0 %4543
  %4545 = vadd.xlane.f32.xlu0 %v4418
  %v4546 = vpop.xlane.xlu0 %4545
  %4547 = vadd.xlane.f32.xlu0 %v4420
  %v4548 = vpop.xlane.xlu0 %4547
  %4549 = vadd.xlane.f32.xlu0 %v4422
  %v4550 = vpop.xlane.xlu0 %4549
  %4551 = vadd.xlane.f32.xlu0 %v4424
  %v4552 = vpop.xlane.xlu0 %4551
  %4553 = vadd.xlane.f32.xlu0 %v4426
  %v4554 = vpop.xlane.xlu0 %4553
  %4555 = vadd.xlane.f32.xlu0 %v4428
  %v4556 = vpop.xlane.xlu0 %4555
  %4557 = vadd.xlane.f32.xlu0 %v4430
  %v4558 = vpop.xlane.xlu0 %4557
  %4559 = vadd.xlane.f32.xlu0 %v4432
  %v4560 = vpop.xlane.xlu0 %4559
  %4561 = vadd.xlane.f32.xlu0 %v4434
  %v4562 = vpop.xlane.xlu0 %4561
  %4563 = vadd.xlane.f32.xlu0 %v4436
  %v4564 = vpop.xlane.xlu0 %4563
  %4565 = vadd.xlane.f32.xlu0 %v4438
  %v4566 = vpop.xlane.xlu0 %4565
  %4567 = vadd.xlane.f32.xlu0 %v4440
  %v4568 = vpop.xlane.xlu0 %4567
  %4569 = vadd.xlane.f32.xlu0 %v4442
  %v4570 = vpop.xlane.xlu0 %4569
  %4571 = vadd.xlane.f32.xlu0 %v4444
  %v4572 = vpop.xlane.xlu0 %4571
  %4573 = vadd.xlane.f32.xlu0 %v4446
  %v4574 = vpop.xlane.xlu0 %4573
  %4575 = vadd.xlane.f32.xlu0 %v4448
  %v4576 = vpop.xlane.xlu0 %4575
  %4577 = vadd.xlane.f32.xlu0 %v4450
  %v4578 = vpop.xlane.xlu0 %4577
  %4579 = vadd.xlane.f32.xlu0 %v4452
  %v4580 = vpop.xlane.xlu0 %4579
  %4581 = vadd.xlane.f32.xlu0 %v4454
  %v4582 = vpop.xlane.xlu0 %4581
  %4583 = vadd.xlane.f32.xlu0 %v4456
  %v4584 = vpop.xlane.xlu0 %4583
  %4585 = vadd.xlane.f32.xlu0 %v4458
  %v4586 = vpop.xlane.xlu0 %4585
  %4587 = vadd.xlane.f32.xlu0 %v4460
  %v4588 = vpop.xlane.xlu0 %4587
  %4589 = vadd.xlane.f32.xlu0 %v4462
  %v4590 = vpop.xlane.xlu0 %4589
  %4591 = vadd.xlane.f32.xlu0 %v4464
  %v4592 = vpop.xlane.xlu0 %4591
  %4593 = vadd.xlane.f32.xlu0 %v4466
  %v4594 = vpop.xlane.xlu0 %4593
  %4595 = vadd.xlane.f32.xlu0 %v4468
  %v4596 = vpop.xlane.xlu0 %4595
  %4597 = vadd.xlane.f32.xlu0 %v4470
  %v4598 = vpop.xlane.xlu0 %4597
  %4599 = vadd.xlane.f32.xlu0 %v4472
  %v4600 = vpop.xlane.xlu0 %4599
  %4601 = vadd.xlane.f32.xlu0 %v4474
  %v4602 = vpop.xlane.xlu0 %4601
  %4603 = vadd.xlane.f32.xlu0 %v4476
  %v4604 = vpop.xlane.xlu0 %4603
  %4605 = vadd.xlane.f32.xlu0 %v4478
  %v4606 = vpop.xlane.xlu0 %4605
  %4607 = vadd.xlane.f32.xlu0 %v4480
  %v4608 = vpop.xlane.xlu0 %4607
  %4609 = vadd.xlane.f32.xlu0 %v4482
  %v4610 = vpop.xlane.xlu0 %4609
  %4611 = vadd.xlane.f32.xlu0 %v4484
  %v4612 = vpop.xlane.xlu0 %4611
  %4613 = vadd.xlane.f32.xlu0 %v4486
  %v4614 = vpop.xlane.xlu0 %4613
  %4615 = vadd.xlane.f32.xlu0 %v4488
  %v4616 = vpop.xlane.xlu0 %4615
  %4617 = vadd.xlane.f32.xlu0 %v4490
  %v4618 = vpop.xlane.xlu0 %4617
  %4619 = vadd.xlane.f32.xlu0 %v4492
  %v4620 = vpop.xlane.xlu0 %4619
  %4621 = vadd.xlane.f32.xlu0 %v4494
  %v4622 = vpop.xlane.xlu0 %4621
  %4623 = vadd.xlane.f32.xlu0 %v4496
  %v4624 = vpop.xlane.xlu0 %4623
  %4625 = vadd.xlane.f32.xlu0 %v4498
  %v4626 = vpop.xlane.xlu0 %4625
  %4627 = vadd.xlane.f32.xlu0 %v4500
  %v4628 = vpop.xlane.xlu0 %4627
  %4629 = vadd.xlane.f32.xlu0 %v4502
  %v4630 = vpop.xlane.xlu0 %4629
  %v4631 = vlog2.pop %v4504
  %v4632 = vmul.f32 %v4631, 0.6931472
  %v4633 = vlog2.pop %v4506
  %v4634 = vmul.f32 %v4633, 0.6931472
  %v4635 = vlog2.pop %v4508
  %v4636 = vmul.f32 %v4635, 0.6931472
  %v4637 = vlog2.pop %v4510
  %v4638 = vmul.f32 %v4637, 0.6931472
  %v4639 = vlog2.pop %v4512
  %v4640 = vmul.f32 %v4639, 0.6931472
  %v4641 = vlog2.pop %v4514
  %v4642 = vmul.f32 %v4641, 0.6931472
  %v4643 = vlog2.pop %v4516
  %v4644 = vmul.f32 %v4643, 0.6931472
  %v4645 = vlog2.pop %v4518
  %v4646 = vmul.f32 %v4645, 0.6931472
  %v4647 = vlog2.pop %v4520
  %v4648 = vmul.f32 %v4647, 0.6931472
  %v4649 = vlog2.pop %v4522
  %v4650 = vmul.f32 %v4649, 0.6931472
  %v4651 = vlog2.pop %v4524
  %v4652 = vmul.f32 %v4651, 0.6931472
  %v4653 = vlog2.pop %v4526
  %v4654 = vmul.f32 %v4653, 0.6931472
  %v4655 = vlog2.pop %v4528
  %v4656 = vmul.f32 %v4655, 0.6931472
  %v4657 = vlog2.pop %v4530
  %v4658 = vmul.f32 %v4657, 0.6931472
  %v4659 = vlog2.pop %v4532
  %v4660 = vmul.f32 %v4659, 0.6931472
  %v4661 = vlog2.pop %v4534
  %v4662 = vmul.f32 %v4661, 0.6931472
  %v4663 = vlog2.pop %v4536
  %v4664 = vmul.f32 %v4663, 0.6931472
  %v4665 = vlog2.pop %v4538
  %v4666 = vmul.f32 %v4665, 0.6931472
  %v4667 = vlog2.pop %v4540
  %v4668 = vmul.f32 %v4667, 0.6931472
  %v4669 = vlog2.pop %v4542
  %v4670 = vmul.f32 %v4669, 0.6931472
  %v4671 = vlog2.pop %v4544
  %v4672 = vmul.f32 %v4671, 0.6931472
  %v4673 = vlog2.pop %v4546
  %v4674 = vmul.f32 %v4673, 0.6931472
  %v4675 = vlog2.pop %v4548
  %v4676 = vmul.f32 %v4675, 0.6931472
  %v4677 = vlog2.pop %v4550
  %v4678 = vmul.f32 %v4677, 0.6931472
  %v4679 = vlog2.pop %v4552
  %v4680 = vmul.f32 %v4679, 0.6931472
  %v4681 = vlog2.pop %v4554
  %v4682 = vmul.f32 %v4681, 0.6931472
  %v4683 = vlog2.pop %v4556
  %v4684 = vmul.f32 %v4683, 0.6931472
  %v4685 = vlog2.pop %v4558
  %v4686 = vmul.f32 %v4685, 0.6931472
  %v4687 = vlog2.pop %v4560
  %v4688 = vmul.f32 %v4687, 0.6931472
  %v4689 = vlog2.pop %v4562
  %v4690 = vmul.f32 %v4689, 0.6931472
  %v4691 = vlog2.pop %v4564
  %v4692 = vmul.f32 %v4691, 0.6931472
  %v4693 = vlog2.pop %v4566
  %v4694 = vmul.f32 %v4693, 0.6931472
  %v4695 = vlog2.pop %v4568
  %v4696 = vmul.f32 %v4695, 0.6931472
  %v4697 = vlog2.pop %v4570
  %v4698 = vmul.f32 %v4697, 0.6931472
  %v4699 = vlog2.pop %v4572
  %v4700 = vmul.f32 %v4699, 0.6931472
  %v4701 = vlog2.pop %v4574
  %v4702 = vmul.f32 %v4701, 0.6931472
  %v4703 = vlog2.pop %v4576
  %v4704 = vmul.f32 %v4703, 0.6931472
  %v4705 = vlog2.pop %v4578
  %v4706 = vmul.f32 %v4705, 0.6931472
  %v4707 = vlog2.pop %v4580
  %v4708 = vmul.f32 %v4707, 0.6931472
  %v4709 = vlog2.pop %v4582
  %v4710 = vmul.f32 %v4709, 0.6931472
  %v4711 = vlog2.pop %v4584
  %v4712 = vmul.f32 %v4711, 0.6931472
  %v4713 = vlog2.pop %v4586
  %v4714 = vmul.f32 %v4713, 0.6931472
  %v4715 = vlog2.pop %v4588
  %v4716 = vmul.f32 %v4715, 0.6931472
  %v4717 = vlog2.pop %v4590
  %v4718 = vmul.f32 %v4717, 0.6931472
  %v4719 = vlog2.pop %v4592
  %v4720 = vmul.f32 %v4719, 0.6931472
  %v4721 = vlog2.pop %v4594
  %v4722 = vmul.f32 %v4721, 0.6931472
  %v4723 = vlog2.pop %v4596
  %v4724 = vmul.f32 %v4723, 0.6931472
  %v4725 = vlog2.pop %v4598
  %v4726 = vmul.f32 %v4725, 0.6931472
  %v4727 = vlog2.pop %v4600
  %v4728 = vmul.f32 %v4727, 0.6931472
  %v4729 = vlog2.pop %v4602
  %v4730 = vmul.f32 %v4729, 0.6931472
  %v4731 = vlog2.pop %v4604
  %v4732 = vmul.f32 %v4731, 0.6931472
  %v4733 = vlog2.pop %v4606
  %v4734 = vmul.f32 %v4733, 0.6931472
  %v4735 = vlog2.pop %v4608
  %v4736 = vmul.f32 %v4735, 0.6931472
  %v4737 = vlog2.pop %v4610
  %v4738 = vmul.f32 %v4737, 0.6931472
  %v4739 = vlog2.pop %v4612
  %v4740 = vmul.f32 %v4739, 0.6931472
  %v4741 = vlog2.pop %v4614
  %v4742 = vmul.f32 %v4741, 0.6931472
  %v4743 = vlog2.pop %v4616
  %v4744 = vmul.f32 %v4743, 0.6931472
  %v4745 = vlog2.pop %v4618
  %v4746 = vmul.f32 %v4745, 0.6931472
  %v4747 = vlog2.pop %v4620
  %v4748 = vmul.f32 %v4747, 0.6931472
  %v4749 = vlog2.pop %v4622
  %v4750 = vmul.f32 %v4749, 0.6931472
  %v4751 = vlog2.pop %v4624
  %v4752 = vmul.f32 %v4751, 0.6931472
  %v4753 = vlog2.pop %v4626
  %v4754 = vmul.f32 %v4753, 0.6931472
  %v4755 = vlog2.pop %v4628
  %v4756 = vmul.f32 %v4755, 0.6931472
  %v4757 = vlog2.pop %v4630
  %v4758 = vmul.f32 %v4757, 0.6931472
  %v4759 = vadd.f32 %v4184, %v4632
  %v4760 = vadd.f32 %v4186, %v4634
  %v4761 = vadd.f32 %v4188, %v4636
  %v4762 = vadd.f32 %v4190, %v4638
  %v4763 = vadd.f32 %v4192, %v4640
  %v4764 = vadd.f32 %v4194, %v4642
  %v4765 = vadd.f32 %v4196, %v4644
  %v4766 = vadd.f32 %v4198, %v4646
  %v4767 = vadd.f32 %v4200, %v4648
  %v4768 = vadd.f32 %v4202, %v4650
  %v4769 = vadd.f32 %v4204, %v4652
  %v4770 = vadd.f32 %v4206, %v4654
  %v4771 = vadd.f32 %v4208, %v4656
  %v4772 = vadd.f32 %v4210, %v4658
  %v4773 = vadd.f32 %v4212, %v4660
  %v4774 = vadd.f32 %v4214, %v4662
  %v4775 = vadd.f32 %v4216, %v4664
  %v4776 = vadd.f32 %v4218, %v4666
  %v4777 = vadd.f32 %v4220, %v4668
  %v4778 = vadd.f32 %v4222, %v4670
  %v4779 = vadd.f32 %v4224, %v4672
  %v4780 = vadd.f32 %v4226, %v4674
  %v4781 = vadd.f32 %v4228, %v4676
  %v4782 = vadd.f32 %v4230, %v4678
  %v4783 = vadd.f32 %v4232, %v4680
  %v4784 = vadd.f32 %v4234, %v4682
  %v4785 = vadd.f32 %v4236, %v4684
  %v4786 = vadd.f32 %v4238, %v4686
  %v4787 = vadd.f32 %v4240, %v4688
  %v4788 = vadd.f32 %v4242, %v4690
  %v4789 = vadd.f32 %v4244, %v4692
  %v4790 = vadd.f32 %v4246, %v4694
  %v4791 = vadd.f32 %v4248, %v4696
  %v4792 = vadd.f32 %v4250, %v4698
  %v4793 = vadd.f32 %v4252, %v4700
  %v4794 = vadd.f32 %v4254, %v4702
  %v4795 = vadd.f32 %v4256, %v4704
  %v4796 = vadd.f32 %v4258, %v4706
  %v4797 = vadd.f32 %v4260, %v4708
  %v4798 = vadd.f32 %v4262, %v4710
  %v4799 = vadd.f32 %v4264, %v4712
  %v4800 = vadd.f32 %v4266, %v4714
  %v4801 = vadd.f32 %v4268, %v4716
  %v4802 = vadd.f32 %v4270, %v4718
  %v4803 = vadd.f32 %v4272, %v4720
  %v4804 = vadd.f32 %v4274, %v4722
  %v4805 = vadd.f32 %v4276, %v4724
  %v4806 = vadd.f32 %v4278, %v4726
  %v4807 = vadd.f32 %v4280, %v4728
  %v4808 = vadd.f32 %v4282, %v4730
  %v4809 = vadd.f32 %v4284, %v4732
  %v4810 = vadd.f32 %v4286, %v4734
  %v4811 = vadd.f32 %v4288, %v4736
  %v4812 = vadd.f32 %v4290, %v4738
  %v4813 = vadd.f32 %v4292, %v4740
  %v4814 = vadd.f32 %v4294, %v4742
  %v4815 = vadd.f32 %v4296, %v4744
  %v4816 = vadd.f32 %v4298, %v4746
  %v4817 = vadd.f32 %v4300, %v4748
  %v4818 = vadd.f32 %v4302, %v4750
  %v4819 = vadd.f32 %v4304, %v4752
  %v4820 = vadd.f32 %v4306, %v4754
  %v4821 = vadd.f32 %v4308, %v4756
  %v4822 = vadd.f32 %v4310, %v4758
  %v4823 = vsub.f32 %v4119, %v4759
  %v4824 = vsub.f32 %v4120, %v4760
  %v4825 = vsub.f32 %v4121, %v4761
  %v4826 = vsub.f32 %v4122, %v4762
  %v4827 = vsub.f32 %v4123, %v4763
  %v4828 = vsub.f32 %v4124, %v4764
  %v4829 = vsub.f32 %v4125, %v4765
  %v4830 = vsub.f32 %v4126, %v4766
  %v4831 = vsub.f32 %v4127, %v4767
  %v4832 = vsub.f32 %v4128, %v4768
  %v4833 = vsub.f32 %v4129, %v4769
  %v4834 = vsub.f32 %v4130, %v4770
  %v4835 = vsub.f32 %v4131, %v4771
  %v4836 = vsub.f32 %v4132, %v4772
  %v4837 = vsub.f32 %v4133, %v4773
  %v4838 = vsub.f32 %v4134, %v4774
  %v4839 = vsub.f32 %v4135, %v4775
  %v4840 = vsub.f32 %v4136, %v4776
  %v4841 = vsub.f32 %v4137, %v4777
  %v4842 = vsub.f32 %v4138, %v4778
  %v4843 = vsub.f32 %v4139, %v4779
  %v4844 = vsub.f32 %v4140, %v4780
  %v4845 = vsub.f32 %v4141, %v4781
  %v4846 = vsub.f32 %v4142, %v4782
  %v4847 = vsub.f32 %v4143, %v4783
  %v4848 = vsub.f32 %v4144, %v4784
  %v4849 = vsub.f32 %v4145, %v4785
  %v4850 = vsub.f32 %v4146, %v4786
  %v4851 = vsub.f32 %v4147, %v4787
  %v4852 = vsub.f32 %v4148, %v4788
  %v4853 = vsub.f32 %v4149, %v4789
  %v4854 = vsub.f32 %v4150, %v4790
  %v4855 = vsub.f32 %v4151, %v4791
  %v4856 = vsub.f32 %v4152, %v4792
  %v4857 = vsub.f32 %v4153, %v4793
  %v4858 = vsub.f32 %v4154, %v4794
  %v4859 = vsub.f32 %v4155, %v4795
  %v4860 = vsub.f32 %v4156, %v4796
  %v4861 = vsub.f32 %v4157, %v4797
  %v4862 = vsub.f32 %v4158, %v4798
  %v4863 = vsub.f32 %v4159, %v4799
  %v4864 = vsub.f32 %v4160, %v4800
  %v4865 = vsub.f32 %v4161, %v4801
  %v4866 = vsub.f32 %v4162, %v4802
  %v4867 = vsub.f32 %v4163, %v4803
  %v4868 = vsub.f32 %v4164, %v4804
  %v4869 = vsub.f32 %v4165, %v4805
  %v4870 = vsub.f32 %v4166, %v4806
  %v4871 = vsub.f32 %v4167, %v4807
  %v4872 = vsub.f32 %v4168, %v4808
  %v4873 = vsub.f32 %v4169, %v4809
  %v4874 = vsub.f32 %v4170, %v4810
  %v4875 = vsub.f32 %v4171, %v4811
  %v4876 = vsub.f32 %v4172, %v4812
  %v4877 = vsub.f32 %v4173, %v4813
  %v4878 = vsub.f32 %v4174, %v4814
  %v4879 = vsub.f32 %v4175, %v4815
  %v4880 = vsub.f32 %v4176, %v4816
  %v4881 = vsub.f32 %v4177, %v4817
  %v4882 = vsub.f32 %v4178, %v4818
  %v4883 = vsub.f32 %v4179, %v4819
  %v4884 = vsub.f32 %v4180, %v4820
  %v4885 = vsub.f32 %v4181, %v4821
  %v4886 = vsub.f32 %v4182, %v4822
  %4887 = vst [vmem:[%s7] sm:$0xff] %v4823
  %4888 = vst [vmem:[%s7 + $0x8] sm:$0xff] %v4824
  %4889 = vst [vmem:[%s7 + $0x10] sm:$0xff] %v4825
  %4890 = vst [vmem:[%s7 + $0x18] sm:$0xff] %v4826
  %4891 = vst [vmem:[%s7 + $0x20] sm:$0xff] %v4827
  %4892 = vst [vmem:[%s7 + $0x28] sm:$0xff] %v4828
  %4893 = vst [vmem:[%s7 + $0x30] sm:$0xff] %v4829
  %4894 = vst [vmem:[%s7 + $0x38] sm:$0xff] %v4830
  %4895 = vst [vmem:[%s7 + $0x40] sm:$0xff] %v4831
  %4896 = vst [vmem:[%s7 + $0x48] sm:$0xff] %v4832
  %4897 = vst [vmem:[%s7 + $0x50] sm:$0xff] %v4833
  %4898 = vst [vmem:[%s7 + $0x58] sm:$0xff] %v4834
  %4899 = vst [vmem:[%s7 + $0x60] sm:$0xff] %v4835
  %4900 = vst [vmem:[%s7 + $0x68] sm:$0xff] %v4836
  %4901 = vst [vmem:[%s7 + $0x70] sm:$0xff] %v4837
  %4902 = vst [vmem:[%s7 + $0x78] sm:$0xff] %v4838
  %4903 = vst [vmem:[%s7 + $0x80] sm:$0xff] %v4839
  %4904 = vst [vmem:[%s7 + $0x88] sm:$0xff] %v4840
  %4905 = vst [vmem:[%s7 + $0x90] sm:$0xff] %v4841
  %4906 = vst [vmem:[%s7 + $0x98] sm:$0xff] %v4842
  %4907 = vst [vmem:[%s7 + $0xa0] sm:$0xff] %v4843
  %4908 = vst [vmem:[%s7 + $0xa8] sm:$0xff] %v4844
  %4909 = vst [vmem:[%s7 + $0xb0] sm:$0xff] %v4845
  %4910 = vst [vmem:[%s7 + $0xb8] sm:$0xff] %v4846
  %4911 = vst [vmem:[%s7 + $0xc0] sm:$0xff] %v4847
  %4912 = vst [vmem:[%s7 + $0xc8] sm:$0xff] %v4848
  %4913 = vst [vmem:[%s7 + $0xd0] sm:$0xff] %v4849
  %4914 = vst [vmem:[%s7 + $0xd8] sm:$0xff] %v4850
  %4915 = vst [vmem:[%s7 + $0xe0] sm:$0xff] %v4851
  %4916 = vst [vmem:[%s7 + $0xe8] sm:$0xff] %v4852
  %4917 = vst [vmem:[%s7 + $0xf0] sm:$0xff] %v4853
  %4918 = vst [vmem:[%s7 + $0xf8] sm:$0xff] %v4854
  %4919 = vst [vmem:[%s7 + $0x100] sm:$0xff] %v4855
  %4920 = vst [vmem:[%s7 + $0x108] sm:$0xff] %v4856
  %4921 = vst [vmem:[%s7 + $0x110] sm:$0xff] %v4857
  %4922 = vst [vmem:[%s7 + $0x118] sm:$0xff] %v4858
  %4923 = vst [vmem:[%s7 + $0x120] sm:$0xff] %v4859
  %4924 = vst [vmem:[%s7 + $0x128] sm:$0xff] %v4860
  %4925 = vst [vmem:[%s7 + $0x130] sm:$0xff] %v4861
  %4926 = vst [vmem:[%s7 + $0x138] sm:$0xff] %v4862
  %4927 = vst [vmem:[%s7 + $0x140] sm:$0xff] %v4863
  %4928 = vst [vmem:[%s7 + $0x148] sm:$0xff] %v4864
  %4929 = vst [vmem:[%s7 + $0x150] sm:$0xff] %v4865
  %4930 = vst [vmem:[%s7 + $0x158] sm:$0xff] %v4866
  %4931 = vst [vmem:[%s7 + $0x160] sm:$0xff] %v4867
  %4932 = vst [vmem:[%s7 + $0x168] sm:$0xff] %v4868
  %4933 = vst [vmem:[%s7 + $0x170] sm:$0xff] %v4869
  %4934 = vst [vmem:[%s7 + $0x178] sm:$0xff] %v4870
  %4935 = vst [vmem:[%s7 + $0x180] sm:$0xff] %v4871
  %4936 = vst [vmem:[%s7 + $0x188] sm:$0xff] %v4872
  %4937 = vst [vmem:[%s7 + $0x190] sm:$0xff] %v4873
  %4938 = vst [vmem:[%s7 + $0x198] sm:$0xff] %v4874
  %4939 = vst [vmem:[%s7 + $0x1a0] sm:$0xff] %v4875
  %4940 = vst [vmem:[%s7 + $0x1a8] sm:$0xff] %v4876
  %4941 = vst [vmem:[%s7 + $0x1b0] sm:$0xff] %v4877
  %4942 = vst [vmem:[%s7 + $0x1b8] sm:$0xff] %v4878
  %4943 = vst [vmem:[%s7 + $0x1c0] sm:$0xff] %v4879
  %4944 = vst [vmem:[%s7 + $0x1c8] sm:$0xff] %v4880
  %4945 = vst [vmem:[%s7 + $0x1d0] sm:$0xff] %v4881
  %4946 = vst [vmem:[%s7 + $0x1d8] sm:$0xff] %v4882
  %4947 = vst [vmem:[%s7 + $0x1e0] sm:$0xff] %v4883
  %4948 = vst [vmem:[%s7 + $0x1e8] sm:$0xff] %v4884
  %4949 = vst [vmem:[%s7 + $0x1f0] sm:$0xff] %v4885
  %4950 = vst [vmem:[%s7 + $0x1f8] sm:$0xff] %v4886
  // Predicated region
  $region30: #{gcn_forward.1} parent=0 // pred_check
    _
  $region31: #{gcn_forward.1} parent=0 // pred_check_branch
    %4952 = sbr.rel (0) target = $region33
  $region32: #{gcn_forward.1} parent=0 // pred_region
    _
  $region33: #{gcn_forward.1} parent=0 // pred_fallthru
    _
  // Predicated region
  $region34: #{gcn_forward.1} parent=0 // pred_check
    _
  $region35: #{gcn_forward.1} parent=0 // pred_check_branch
    %4954 = sbr.rel (0) target = $region37
  $region36: #{gcn_forward.1} parent=0 // pred_region
    _
  $region37: #{gcn_forward.1} parent=0 // pred_fallthru
    _

</llo_original>
